<compile_context>
chip_gen: v7x
topology: tpu7x:2x2x1
jax: 0.10.0
libtpu: 0.0.40
codegen_flags: <defaults>
</compile_context>

<pallas_src>
import functools

import jax
import jax.numpy as jnp
from jax import lax
from jax.experimental import pallas as pl
from jax.experimental.pallas import tpu as pltpu

EPS = 1e-5


def resblock_kernel(x_ref, w1e_ref, g1_ref, b1_ref, w2e_ref, g2_ref, b2_ref,
                    r1_ref, r1t_ref, r2_ref, r2t_ref,
                    o_ref, xp_ref, y1p_ref):
    # x_ref:    (N, H, W*Cin)        lane-dense input (also the skip connection)
    # w1e_ref:  (K, W*Cin, W*Cf)     banded conv1 operands (one per kh tap)
    # g1/b1:    (1, Cf)              BN1 gamma / beta
    # w2e_ref:  (K, W*Cf, W*Cin)     banded conv2 operands
    # g2/b2:    (1, Cin)             BN2 gamma / beta
    # r1/r1t:   (W*Cf, Cf)/(Cf, W*Cf)    channel reduce / broadcast matrices
    # r2/r2t:   (W*Cin, Cin)/(Cin, W*Cin)
    # o_ref:    (N, H, W*Cin)        output
    # xp_ref:   (N, H+2P, W*Cin)     scratch: H-padded input
    # y1p_ref:  (N, H+2P, W*Cf)      scratch: H-padded, normalized conv1 output
    f32 = jnp.float32
    N, H, WCin = x_ref.shape
    K = w1e_ref.shape[0]
    WCf = w1e_ref.shape[2]
    Cf = g1_ref.shape[1]
    Cin = g2_ref.shape[1]
    Hp = xp_ref.shape[1]
    P = (Hp - H) // 2
    W = WCin // Cin
    cnt = float(N * H * W)

    # ---- stage input into an H-padded, lane-dense scratch (halo = conv1 zero pad)
    for n in range(N):
        xp_ref[n, 0:P, :] = jnp.zeros((P, WCin), f32)
        xp_ref[n, P:P + H, :] = x_ref[n]
        xp_ref[n, P + H:Hp, :] = jnp.zeros((P, WCin), f32)

    # ---- conv1 (K banded matmuls per batch element) + fused BN1 statistics -----
    s1 = jnp.zeros((1, WCf), f32)
    q1 = jnp.zeros((1, WCf), f32)
    for n in range(N):
        acc = jnp.zeros((H, WCf), f32)
        for kh in range(K):
            acc = acc + jnp.dot(xp_ref[n, kh:kh + H, :], w1e_ref[kh],
                                preferred_element_type=f32)
        y1p_ref[n, 0:P, :] = jnp.zeros((P, WCf), f32)       # halo = conv2 zero pad
        y1p_ref[n, P:P + H, :] = acc
        y1p_ref[n, P + H:Hp, :] = jnp.zeros((P, WCf), f32)
        s1 = s1 + jnp.sum(acc, axis=0, keepdims=True)
        q1 = q1 + jnp.sum(acc * acc, axis=0, keepdims=True)

    # ---- BN1: per-channel stats via channel-reduction matmul, broadcast via r1t
    ch_s1 = jnp.dot(s1, r1_ref[...], preferred_element_type=f32)    # (1, Cf)
    ch_q1 = jnp.dot(q1, r1_ref[...], preferred_element_type=f32)
    mean1 = ch_s1 / cnt
    var1 = ch_q1 / cnt - mean1 * mean1                               # biased var
    scale1 = g1_ref[...] * lax.rsqrt(var1 + EPS)
    shift1 = b1_ref[...] - mean1 * scale1
    scale1w = jnp.dot(scale1, r1t_ref[...], preferred_element_type=f32)  # (1, W*Cf)
    shift1w = jnp.dot(shift1, r1t_ref[...], preferred_element_type=f32)

    # Normalize interior rows in place (halo rows stay exactly zero).
    for n in range(N):
        y1p_ref[n, P:P + H, :] = y1p_ref[n, P:P + H, :] * scale1w + shift1w

    # ---- conv2 + fused BN2 statistics (conv2 results kept live as values) ------
    s2 = jnp.zeros((1, WCin), f32)
    q2 = jnp.zeros((1, WCin), f32)
    y2 = []
    for n in range(N):
        acc = jnp.zeros((H, WCin), f32)
        for kh in range(K):
            acc = acc + jnp.dot(y1p_ref[n, kh:kh + H, :], w2e_ref[kh],
                                preferred_element_type=f32)
        y2.append(acc)
        s2 = s2 + jnp.sum(acc, axis=0, keepdims=True)
        q2 = q2 + jnp.sum(acc * acc, axis=0, keepdims=True)

    ch_s2 = jnp.dot(s2, r2_ref[...], preferred_element_type=f32)    # (1, Cin)
    ch_q2 = jnp.dot(q2, r2_ref[...], preferred_element_type=f32)
    mean2 = ch_s2 / cnt
    var2 = ch_q2 / cnt - mean2 * mean2
    scale2 = g2_ref[...] * lax.rsqrt(var2 + EPS)
    shift2 = b2_ref[...] - mean2 * scale2
    scale2w = jnp.dot(scale2, r2t_ref[...], preferred_element_type=f32)  # (1, W*Cin)
    shift2w = jnp.dot(shift2, r2t_ref[...], preferred_element_type=f32)

    # ---- BN2 + residual add + ELU, written lane-dense --------------------------
    for n in range(N):
        z = y2[n] * scale2w + shift2w + x_ref[n]
        o_ref[n] = jnp.where(z > 0.0, z, jnp.exp(z) - 1.0)


def _expand_conv_weights(w_hwio, w_spatial, padding):
    """HWIO (K, K, Ci, Co) -> (K, W*Ci, W*Co) banded matmul operands (one per kh).

    M[kh][wi*Ci + ci, wo*Co + co] = w[kh, wi - wo + padding, ci, co] (0 if the tap
    is out of range), so y[:, h, :] = sum_kh x_pad[:, h+kh, :] @ M[kh] performs the
    whole W-direction convolution (including zero padding) in one lane-dense dot.
    """
    K = w_hwio.shape[0]
    mats = []
    for kh in range(K):
        m = None
        for kw in range(K):
            band = jnp.kron(
                jnp.eye(w_spatial, w_spatial, k=padding - kw, dtype=w_hwio.dtype),
                w_hwio[kh, kw])
            m = band if m is None else m + band
        mats.append(m)
    return jnp.stack(mats, axis=0)


@functools.partial(jax.jit, static_argnames=("padding",))
def resblock_forward(x, w1, g1, b1, w2, g2, b2, *, padding):
    """x: (N, H, W, Cin) NHWC float32. Conv weights in HWIO layout."""
    N, H, W, Cin = x.shape
    K, _, _, Cf = w1.shape
    assert w2.shape == (K, K, Cf, Cin), "channels_last must equal channels_input for the skip"
    P = padding
    Hp = H + 2 * P

    x2 = x.reshape(N, H, W * Cin).astype(jnp.float32)
    w1e = _expand_conv_weights(w1.astype(jnp.float32), W, P)     # (K, W*Cin, W*Cf)
    w2e = _expand_conv_weights(w2.astype(jnp.float32), W, P)     # (K, W*Cf, W*Cin)
    r1 = jnp.tile(jnp.eye(Cf, dtype=jnp.float32), (W, 1))        # (W*Cf, Cf)
    r2 = jnp.tile(jnp.eye(Cin, dtype=jnp.float32), (W, 1))       # (W*Cin, Cin)

    g1r = g1.reshape(1, Cf).astype(jnp.float32)
    b1r = b1.reshape(1, Cf).astype(jnp.float32)
    g2r = g2.reshape(1, Cin).astype(jnp.float32)
    b2r = b2.reshape(1, Cin).astype(jnp.float32)

    vmem = pl.BlockSpec(memory_space=pltpu.MemorySpace.VMEM)
    out = pl.pallas_call(
        resblock_kernel,
        out_shape=jax.ShapeDtypeStruct((N, H, W * Cin), jnp.float32),
        in_specs=[vmem] * 11,
        out_specs=vmem,
        scratch_shapes=[
            pltpu.VMEM((N, Hp, W * Cin), jnp.float32),   # H-padded input
            pltpu.VMEM((N, Hp, W * Cf), jnp.float32),    # H-padded BN1(conv1(x))
        ],
        # For large N/H/W: tile H (with halo) / N on a "parallel" grid and make BN
        # two-phase; unnecessary at these shapes (everything fits in VMEM).
    )(x2, w1e, g1r, b1r, w2e, g2r, b2r, r1, r1.T, r2, r2.T)
    return out.reshape(N, H, W, Cin)


def resblock_reference(x, w1, g1, b1, w2, g2, b2, padding):
    """Pure-JAX reference (NHWC), mirroring the PyTorch forward in training mode."""
    def conv(a, w):
        return lax.conv_general_dilated(
            a, w, window_strides=(1, 1),
            padding=[(padding, padding), (padding, padding)],
            dimension_numbers=("NHWC", "HWIO", "NHWC"))

    def bn(y, g, b):
        mean = jnp.mean(y, axis=(0, 1, 2), keepdims=True)
        var = jnp.mean((y - mean) ** 2, axis=(0, 1, 2), keepdims=True)
        return (y - mean) / jnp.sqrt(var + EPS) * g.reshape(1, 1, 1, -1) + b.reshape(1, 1, 1, -1)

    y = bn(conv(x, w1), g1, b1)
    y = bn(conv(y, w2), g2, b2)
    z = y + x
    return jnp.where(z > 0, z, jnp.exp(z) - 1.0)


if __name__ == "__main__":
    # channels_input == channels_last (required by the residual add), kernel_size=3,
    # padding=1 so spatial dims are preserved.
    N, H, W = 2, 16, 16
    C_IN, C_FIRST, C_LAST = 4, 8, 4
    K, PAD = 3, 1

    key = jax.random.PRNGKey(0)
    k_x, k_w1, k_w2, k_g1, k_b1, k_g2, k_b2 = jax.random.split(key, 7)

    x = jax.random.normal(k_x, (N, H, W, C_IN), dtype=jnp.float32)
    w1 = 0.1 * jax.random.normal(k_w1, (K, K, C_IN, C_FIRST), dtype=jnp.float32)
    w2 = 0.1 * jax.random.normal(k_w2, (K, K, C_FIRST, C_LAST), dtype=jnp.float32)
    g1 = 1.0 + 0.1 * jax.random.normal(k_g1, (C_FIRST,), dtype=jnp.float32)
    b1 = 0.1 * jax.random.normal(k_b1, (C_FIRST,), dtype=jnp.float32)
    g2 = 1.0 + 0.1 * jax.random.normal(k_g2, (C_LAST,), dtype=jnp.float32)
    b2 = 0.1 * jax.random.normal(k_b2, (C_LAST,), dtype=jnp.float32)

    out = resblock_forward(x, w1, g1, b1, w2, g2, b2, padding=PAD)
    out = jax.block_until_ready(out)

    ref = resblock_reference(x, w1, g1, b1, w2, g2, b2, PAD)
    assert out.shape == (N, H, W, C_LAST)
    err = float(jnp.max(jnp.abs(out - ref)))
    assert jnp.allclose(out, ref, atol=2e-3, rtol=2e-3), err

    print("KERNEL_OK")
</pallas_src>

<mosaic_0001>
module attributes {stable_mosaic.version = 11 : i64} {
  func.func @resblock_kernel(%arg0: memref<2x16x64xf32, #tpu.memory_space<vmem>>, %arg1: memref<3x64x128xf32, #tpu.memory_space<vmem>>, %arg2: memref<1x8xf32, #tpu.memory_space<vmem>>, %arg3: memref<1x8xf32, #tpu.memory_space<vmem>>, %arg4: memref<3x128x64xf32, #tpu.memory_space<vmem>>, %arg5: memref<1x4xf32, #tpu.memory_space<vmem>>, %arg6: memref<1x4xf32, #tpu.memory_space<vmem>>, %arg7: memref<128x8xf32, #tpu.memory_space<vmem>>, %arg8: memref<8x128xf32, #tpu.memory_space<vmem>>, %arg9: memref<64x4xf32, #tpu.memory_space<vmem>>, %arg10: memref<4x64xf32, #tpu.memory_space<vmem>>, %arg11: memref<2x16x64xf32, #tpu.memory_space<vmem>>, %arg12: memref<2x18x64xf32, #tpu.memory_space<vmem>>, %arg13: memref<2x18x128xf32, #tpu.memory_space<vmem>>) attributes {dimension_semantics = [], scalar_prefetch = 0 : i64, scratch_operands = 2 : i64, tpu.core_type = #tpu.core_type<tc>} {
    %cst = arith.constant 0.000000e+00 : f32
    %0 = vector.broadcast %cst : f32 to vector<1x64xf32>
    %c0 = arith.constant 0 : index
    %c0_0 = arith.constant 0 : index
    %c0_1 = arith.constant 0 : index
    %1 = vector.load %arg12[%c0, %c0_0, %c0_1] : memref<2x18x64xf32, #tpu.memory_space<vmem>>, vector<1x1x64xf32>
    %2 = vector.shape_cast %1 : vector<1x1x64xf32> to vector<1x64xf32>
    %3 = vector.shape_cast %0 : vector<1x64xf32> to vector<1x1x64xf32>
    tpu.vector_store %arg12[%c0, %c0_0, %c0_1], %3 {strides = array<i32>} : memref<2x18x64xf32, #tpu.memory_space<vmem>>, vector<1x1x64xf32>,
    %c0_2 = arith.constant 0 : index
    %c0_3 = arith.constant 0 : index
    %c0_4 = arith.constant 0 : index
    %4 = vector.load %arg0[%c0_2, %c0_3, %c0_4] : memref<2x16x64xf32, #tpu.memory_space<vmem>>, vector<1x16x64xf32>
    %5 = vector.shape_cast %4 : vector<1x16x64xf32> to vector<16x64xf32>
    %c0_5 = arith.constant 0 : index
    %c1 = arith.constant 1 : index
    %c0_6 = arith.constant 0 : index
    %6 = vector.load %arg12[%c0_5, %c1, %c0_6] : memref<2x18x64xf32, #tpu.memory_space<vmem>>, vector<1x16x64xf32>
    %7 = vector.shape_cast %6 : vector<1x16x64xf32> to vector<16x64xf32>
    %8 = vector.shape_cast %5 : vector<16x64xf32> to vector<1x16x64xf32>
    tpu.vector_store %arg12[%c0_5, %c1, %c0_6], %8 {strides = array<i32>} : memref<2x18x64xf32, #tpu.memory_space<vmem>>, vector<1x16x64xf32>,
    %cst_7 = arith.constant 0.000000e+00 : f32
    %9 = vector.broadcast %cst_7 : f32 to vector<1x64xf32>
    %c0_8 = arith.constant 0 : index
    %c17 = arith.constant 17 : index
    %c0_9 = arith.constant 0 : index
    %10 = vector.load %arg12[%c0_8, %c17, %c0_9] : memref<2x18x64xf32, #tpu.memory_space<vmem>>, vector<1x1x64xf32>
    %11 = vector.shape_cast %10 : vector<1x1x64xf32> to vector<1x64xf32>
    %12 = vector.shape_cast %9 : vector<1x64xf32> to vector<1x1x64xf32>
    tpu.vector_store %arg12[%c0_8, %c17, %c0_9], %12 {strides = array<i32>} : memref<2x18x64xf32, #tpu.memory_space<vmem>>, vector<1x1x64xf32>,
    %cst_10 = arith.constant 0.000000e+00 : f32
    %13 = vector.broadcast %cst_10 : f32 to vector<1x64xf32>
    %c1_11 = arith.constant 1 : index
    %c0_12 = arith.constant 0 : index
    %c0_13 = arith.constant 0 : index
    %14 = vector.load %arg12[%c1_11, %c0_12, %c0_13] : memref<2x18x64xf32, #tpu.memory_space<vmem>>, vector<1x1x64xf32>
    %15 = vector.shape_cast %14 : vector<1x1x64xf32> to vector<1x64xf32>
    %16 = vector.shape_cast %13 : vector<1x64xf32> to vector<1x1x64xf32>
    tpu.vector_store %arg12[%c1_11, %c0_12, %c0_13], %16 {strides = array<i32>} : memref<2x18x64xf32, #tpu.memory_space<vmem>>, vector<1x1x64xf32>,
    %c1_14 = arith.constant 1 : index
    %c0_15 = arith.constant 0 : index
    %c0_16 = arith.constant 0 : index
    %17 = vector.load %arg0[%c1_14, %c0_15, %c0_16] : memref<2x16x64xf32, #tpu.memory_space<vmem>>, vector<1x16x64xf32>
    %18 = vector.shape_cast %17 : vector<1x16x64xf32> to vector<16x64xf32>
    %c1_17 = arith.constant 1 : index
    %c1_18 = arith.constant 1 : index
    %c0_19 = arith.constant 0 : index
    %19 = vector.load %arg12[%c1_17, %c1_18, %c0_19] : memref<2x18x64xf32, #tpu.memory_space<vmem>>, vector<1x16x64xf32>
    %20 = vector.shape_cast %19 : vector<1x16x64xf32> to vector<16x64xf32>
    %21 = vector.shape_cast %18 : vector<16x64xf32> to vector<1x16x64xf32>
    tpu.vector_store %arg12[%c1_17, %c1_18, %c0_19], %21 {strides = array<i32>} : memref<2x18x64xf32, #tpu.memory_space<vmem>>, vector<1x16x64xf32>,
    %cst_20 = arith.constant 0.000000e+00 : f32
    %22 = vector.broadcast %cst_20 : f32 to vector<1x64xf32>
    %c1_21 = arith.constant 1 : index
    %c17_22 = arith.constant 17 : index
    %c0_23 = arith.constant 0 : index
    %23 = vector.load %arg12[%c1_21, %c17_22, %c0_23] : memref<2x18x64xf32, #tpu.memory_space<vmem>>, vector<1x1x64xf32>
    %24 = vector.shape_cast %23 : vector<1x1x64xf32> to vector<1x64xf32>
    %25 = vector.shape_cast %22 : vector<1x64xf32> to vector<1x1x64xf32>
    tpu.vector_store %arg12[%c1_21, %c17_22, %c0_23], %25 {strides = array<i32>} : memref<2x18x64xf32, #tpu.memory_space<vmem>>, vector<1x1x64xf32>,
    %cst_24 = arith.constant 0.000000e+00 : f32
    %26 = vector.broadcast %cst_24 : f32 to vector<1x128xf32>
    %cst_25 = arith.constant 0.000000e+00 : f32
    %27 = vector.broadcast %cst_25 : f32 to vector<1x128xf32>
    %cst_26 = arith.constant 0.000000e+00 : f32
    %28 = vector.broadcast %cst_26 : f32 to vector<16x128xf32>
    %c0_27 = arith.constant 0 : index
    %c0_28 = arith.constant 0 : index
    %c0_29 = arith.constant 0 : index
    %29 = vector.load %arg12[%c0_27, %c0_28, %c0_29] : memref<2x18x64xf32, #tpu.memory_space<vmem>>, vector<1x16x64xf32>
    %30 = vector.shape_cast %29 : vector<1x16x64xf32> to vector<16x64xf32>
    %c0_30 = arith.constant 0 : index
    %c0_31 = arith.constant 0 : index
    %c0_32 = arith.constant 0 : index
    %31 = vector.load %arg1[%c0_30, %c0_31, %c0_32] : memref<3x64x128xf32, #tpu.memory_space<vmem>>, vector<1x64x128xf32>
    %32 = vector.shape_cast %31 : vector<1x64x128xf32> to vector<64x128xf32>
    %cst_33 = arith.constant dense<0.000000e+00> : vector<16x128xf32>
    %33 = tpu.matmul %30, %32, %cst_33 {dimension_numbers = #tpu.dot_dimension_numbers<[1], [0], [0], [1], [0, 0, 1, 1], [], []>} : vector<16x64xf32>, vector<64x128xf32>, vector<16x128xf32> -> vector<16x128xf32>
    %34 = arith.addf %28, %33 : vector<16x128xf32>
    %c0_34 = arith.constant 0 : index
    %c1_35 = arith.constant 1 : index
    %c0_36 = arith.constant 0 : index
    %35 = vector.load %arg12[%c0_34, %c1_35, %c0_36] : memref<2x18x64xf32, #tpu.memory_space<vmem>>, vector<1x16x64xf32>
    %36 = vector.shape_cast %35 : vector<1x16x64xf32> to vector<16x64xf32>
    %c1_37 = arith.constant 1 : index
    %c0_38 = arith.constant 0 : index
    %c0_39 = arith.constant 0 : index
    %37 = vector.load %arg1[%c1_37, %c0_38, %c0_39] : memref<3x64x128xf32, #tpu.memory_space<vmem>>, vector<1x64x128xf32>
    %38 = vector.shape_cast %37 : vector<1x64x128xf32> to vector<64x128xf32>
    %cst_40 = arith.constant dense<0.000000e+00> : vector<16x128xf32>
    %39 = tpu.matmul %36, %38, %cst_40 {dimension_numbers = #tpu.dot_dimension_numbers<[1], [0], [0], [1], [0, 0, 1, 1], [], []>} : vector<16x64xf32>, vector<64x128xf32>, vector<16x128xf32> -> vector<16x128xf32>
    %40 = arith.addf %34, %39 : vector<16x128xf32>
    %c0_41 = arith.constant 0 : index
    %c2 = arith.constant 2 : index
    %c0_42 = arith.constant 0 : index
    %41 = vector.load %arg12[%c0_41, %c2, %c0_42] : memref<2x18x64xf32, #tpu.memory_space<vmem>>, vector<1x16x64xf32>
    %42 = vector.shape_cast %41 : vector<1x16x64xf32> to vector<16x64xf32>
    %c2_43 = arith.constant 2 : index
    %c0_44 = arith.constant 0 : index
    %c0_45 = arith.constant 0 : index
    %43 = vector.load %arg1[%c2_43, %c0_44, %c0_45] : memref<3x64x128xf32, #tpu.memory_space<vmem>>, vector<1x64x128xf32>
    %44 = vector.shape_cast %43 : vector<1x64x128xf32> to vector<64x128xf32>
    %cst_46 = arith.constant dense<0.000000e+00> : vector<16x128xf32>
    %45 = tpu.matmul %42, %44, %cst_46 {dimension_numbers = #tpu.dot_dimension_numbers<[1], [0], [0], [1], [0, 0, 1, 1], [], []>} : vector<16x64xf32>, vector<64x128xf32>, vector<16x128xf32> -> vector<16x128xf32>
    %46 = arith.addf %40, %45 : vector<16x128xf32>
    %cst_47 = arith.constant 0.000000e+00 : f32
    %47 = vector.broadcast %cst_47 : f32 to vector<1x128xf32>
    %c0_48 = arith.constant 0 : index
    %c0_49 = arith.constant 0 : index
    %c0_50 = arith.constant 0 : index
    %48 = vector.load %arg13[%c0_48, %c0_49, %c0_50] : memref<2x18x128xf32, #tpu.memory_space<vmem>>, vector<1x1x128xf32>
    %49 = vector.shape_cast %48 : vector<1x1x128xf32> to vector<1x128xf32>
    %50 = vector.shape_cast %47 : vector<1x128xf32> to vector<1x1x128xf32>
    tpu.vector_store %arg13[%c0_48, %c0_49, %c0_50], %50 {strides = array<i32>} : memref<2x18x128xf32, #tpu.memory_space<vmem>>, vector<1x1x128xf32>,
    %c0_51 = arith.constant 0 : index
    %c1_52 = arith.constant 1 : index
    %c0_53 = arith.constant 0 : index
    %51 = vector.load %arg13[%c0_51, %c1_52, %c0_53] : memref<2x18x128xf32, #tpu.memory_space<vmem>>, vector<1x16x128xf32>
    %52 = vector.shape_cast %51 : vector<1x16x128xf32> to vector<16x128xf32>
    %53 = vector.shape_cast %46 : vector<16x128xf32> to vector<1x16x128xf32>
    tpu.vector_store %arg13[%c0_51, %c1_52, %c0_53], %53 {strides = array<i32>} : memref<2x18x128xf32, #tpu.memory_space<vmem>>, vector<1x16x128xf32>,
    %cst_54 = arith.constant 0.000000e+00 : f32
    %54 = vector.broadcast %cst_54 : f32 to vector<1x128xf32>
    %c0_55 = arith.constant 0 : index
    %c17_56 = arith.constant 17 : index
    %c0_57 = arith.constant 0 : index
    %55 = vector.load %arg13[%c0_55, %c17_56, %c0_57] : memref<2x18x128xf32, #tpu.memory_space<vmem>>, vector<1x1x128xf32>
    %56 = vector.shape_cast %55 : vector<1x1x128xf32> to vector<1x128xf32>
    %57 = vector.shape_cast %54 : vector<1x128xf32> to vector<1x1x128xf32>
    tpu.vector_store %arg13[%c0_55, %c17_56, %c0_57], %57 {strides = array<i32>} : memref<2x18x128xf32, #tpu.memory_space<vmem>>, vector<1x1x128xf32>,
    %cst_58 = arith.constant dense<0.000000e+00> : vector<128xf32>
    %58 = vector.multi_reduction <add>, %46, %cst_58 [0] : vector<16x128xf32> to vector<128xf32>
    %59 = vector.shape_cast %58 : vector<128xf32> to vector<1x128xf32>
    %60 = arith.addf %26, %59 : vector<1x128xf32>
    %61 = arith.mulf %46, %46 : vector<16x128xf32>
    %cst_59 = arith.constant dense<0.000000e+00> : vector<128xf32>
    %62 = vector.multi_reduction <add>, %61, %cst_59 [0] : vector<16x128xf32> to vector<128xf32>
    %63 = vector.shape_cast %62 : vector<128xf32> to vector<1x128xf32>
    %64 = arith.addf %27, %63 : vector<1x128xf32>
    %cst_60 = arith.constant 0.000000e+00 : f32
    %65 = vector.broadcast %cst_60 : f32 to vector<16x128xf32>
    %c1_61 = arith.constant 1 : index
    %c0_62 = arith.constant 0 : index
    %c0_63 = arith.constant 0 : index
    %66 = vector.load %arg12[%c1_61, %c0_62, %c0_63] : memref<2x18x64xf32, #tpu.memory_space<vmem>>, vector<1x16x64xf32>
    %67 = vector.shape_cast %66 : vector<1x16x64xf32> to vector<16x64xf32>
    %c0_64 = arith.constant 0 : index
    %c0_65 = arith.constant 0 : index
    %c0_66 = arith.constant 0 : index
    %68 = vector.load %arg1[%c0_64, %c0_65, %c0_66] : memref<3x64x128xf32, #tpu.memory_space<vmem>>, vector<1x64x128xf32>
    %69 = vector.shape_cast %68 : vector<1x64x128xf32> to vector<64x128xf32>
    %cst_67 = arith.constant dense<0.000000e+00> : vector<16x128xf32>
    %70 = tpu.matmul %67, %69, %cst_67 {dimension_numbers = #tpu.dot_dimension_numbers<[1], [0], [0], [1], [0, 0, 1, 1], [], []>} : vector<16x64xf32>, vector<64x128xf32>, vector<16x128xf32> -> vector<16x128xf32>
    %71 = arith.addf %65, %70 : vector<16x128xf32>
    %c1_68 = arith.constant 1 : index
    %c1_69 = arith.constant 1 : index
    %c0_70 = arith.constant 0 : index
    %72 = vector.load %arg12[%c1_68, %c1_69, %c0_70] : memref<2x18x64xf32, #tpu.memory_space<vmem>>, vector<1x16x64xf32>
    %73 = vector.shape_cast %72 : vector<1x16x64xf32> to vector<16x64xf32>
    %c1_71 = arith.constant 1 : index
    %c0_72 = arith.constant 0 : index
    %c0_73 = arith.constant 0 : index
    %74 = vector.load %arg1[%c1_71, %c0_72, %c0_73] : memref<3x64x128xf32, #tpu.memory_space<vmem>>, vector<1x64x128xf32>
    %75 = vector.shape_cast %74 : vector<1x64x128xf32> to vector<64x128xf32>
    %cst_74 = arith.constant dense<0.000000e+00> : vector<16x128xf32>
    %76 = tpu.matmul %73, %75, %cst_74 {dimension_numbers = #tpu.dot_dimension_numbers<[1], [0], [0], [1], [0, 0, 1, 1], [], []>} : vector<16x64xf32>, vector<64x128xf32>, vector<16x128xf32> -> vector<16x128xf32>
    %77 = arith.addf %71, %76 : vector<16x128xf32>
    %c1_75 = arith.constant 1 : index
    %c2_76 = arith.constant 2 : index
    %c0_77 = arith.constant 0 : index
    %78 = vector.load %arg12[%c1_75, %c2_76, %c0_77] : memref<2x18x64xf32, #tpu.memory_space<vmem>>, vector<1x16x64xf32>
    %79 = vector.shape_cast %78 : vector<1x16x64xf32> to vector<16x64xf32>
    %c2_78 = arith.constant 2 : index
    %c0_79 = arith.constant 0 : index
    %c0_80 = arith.constant 0 : index
    %80 = vector.load %arg1[%c2_78, %c0_79, %c0_80] : memref<3x64x128xf32, #tpu.memory_space<vmem>>, vector<1x64x128xf32>
    %81 = vector.shape_cast %80 : vector<1x64x128xf32> to vector<64x128xf32>
    %cst_81 = arith.constant dense<0.000000e+00> : vector<16x128xf32>
    %82 = tpu.matmul %79, %81, %cst_81 {dimension_numbers = #tpu.dot_dimension_numbers<[1], [0], [0], [1], [0, 0, 1, 1], [], []>} : vector<16x64xf32>, vector<64x128xf32>, vector<16x128xf32> -> vector<16x128xf32>
    %83 = arith.addf %77, %82 : vector<16x128xf32>
    %cst_82 = arith.constant 0.000000e+00 : f32
    %84 = vector.broadcast %cst_82 : f32 to vector<1x128xf32>
    %c1_83 = arith.constant 1 : index
    %c0_84 = arith.constant 0 : index
    %c0_85 = arith.constant 0 : index
    %85 = vector.load %arg13[%c1_83, %c0_84, %c0_85] : memref<2x18x128xf32, #tpu.memory_space<vmem>>, vector<1x1x128xf32>
    %86 = vector.shape_cast %85 : vector<1x1x128xf32> to vector<1x128xf32>
    %87 = vector.shape_cast %84 : vector<1x128xf32> to vector<1x1x128xf32>
    tpu.vector_store %arg13[%c1_83, %c0_84, %c0_85], %87 {strides = array<i32>} : memref<2x18x128xf32, #tpu.memory_space<vmem>>, vector<1x1x128xf32>,
    %c1_86 = arith.constant 1 : index
    %c1_87 = arith.constant 1 : index
    %c0_88 = arith.constant 0 : index
    %88 = vector.load %arg13[%c1_86, %c1_87, %c0_88] : memref<2x18x128xf32, #tpu.memory_space<vmem>>, vector<1x16x128xf32>
    %89 = vector.shape_cast %88 : vector<1x16x128xf32> to vector<16x128xf32>
    %90 = vector.shape_cast %83 : vector<16x128xf32> to vector<1x16x128xf32>
    tpu.vector_store %arg13[%c1_86, %c1_87, %c0_88], %90 {strides = array<i32>} : memref<2x18x128xf32, #tpu.memory_space<vmem>>, vector<1x16x128xf32>,
    %cst_89 = arith.constant 0.000000e+00 : f32
    %91 = vector.broadcast %cst_89 : f32 to vector<1x128xf32>
    %c1_90 = arith.constant 1 : index
    %c17_91 = arith.constant 17 : index
    %c0_92 = arith.constant 0 : index
    %92 = vector.load %arg13[%c1_90, %c17_91, %c0_92] : memref<2x18x128xf32, #tpu.memory_space<vmem>>, vector<1x1x128xf32>
    %93 = vector.shape_cast %92 : vector<1x1x128xf32> to vector<1x128xf32>
    %94 = vector.shape_cast %91 : vector<1x128xf32> to vector<1x1x128xf32>
    tpu.vector_store %arg13[%c1_90, %c17_91, %c0_92], %94 {strides = array<i32>} : memref<2x18x128xf32, #tpu.memory_space<vmem>>, vector<1x1x128xf32>,
    %cst_93 = arith.constant dense<0.000000e+00> : vector<128xf32>
    %95 = vector.multi_reduction <add>, %83, %cst_93 [0] : vector<16x128xf32> to vector<128xf32>
    %96 = vector.shape_cast %95 : vector<128xf32> to vector<1x128xf32>
    %97 = arith.addf %60, %96 : vector<1x128xf32>
    %98 = arith.mulf %83, %83 : vector<16x128xf32>
    %cst_94 = arith.constant dense<0.000000e+00> : vector<128xf32>
    %99 = vector.multi_reduction <add>, %98, %cst_94 [0] : vector<16x128xf32> to vector<128xf32>
    %100 = vector.shape_cast %99 : vector<128xf32> to vector<1x128xf32>
    %101 = arith.addf %64, %100 : vector<1x128xf32>
    %c0_95 = arith.constant 0 : index
    %c0_96 = arith.constant 0 : index
    %102 = vector.load %arg7[%c0_95, %c0_96] : memref<128x8xf32, #tpu.memory_space<vmem>>, vector<128x8xf32>
    %cst_97 = arith.constant dense<0.000000e+00> : vector<1x8xf32>
    %103 = tpu.matmul %97, %102, %cst_97 {dimension_numbers = #tpu.dot_dimension_numbers<[1], [0], [0], [1], [0, 0, 1, 1], [], []>} : vector<1x128xf32>, vector<128x8xf32>, vector<1x8xf32> -> vector<1x8xf32>
    %c0_98 = arith.constant 0 : index
    %c0_99 = arith.constant 0 : index
    %104 = vector.load %arg7[%c0_98, %c0_99] : memref<128x8xf32, #tpu.memory_space<vmem>>, vector<128x8xf32>
    %cst_100 = arith.constant dense<0.000000e+00> : vector<1x8xf32>
    %105 = tpu.matmul %101, %104, %cst_100 {dimension_numbers = #tpu.dot_dimension_numbers<[1], [0], [0], [1], [0, 0, 1, 1], [], []>} : vector<1x128xf32>, vector<128x8xf32>, vector<1x8xf32> -> vector<1x8xf32>
    %cst_101 = arith.constant 5.120000e+02 : f32
    %106 = vector.broadcast %cst_101 : f32 to vector<1x8xf32>
    %107 = arith.divf %103, %106 : vector<1x8xf32>
    %cst_102 = arith.constant 5.120000e+02 : f32
    %108 = vector.broadcast %cst_102 : f32 to vector<1x8xf32>
    %109 = arith.divf %105, %108 : vector<1x8xf32>
    %110 = arith.mulf %107, %107 : vector<1x8xf32>
    %111 = arith.subf %109, %110 : vector<1x8xf32>
    %c0_103 = arith.constant 0 : index
    %c0_104 = arith.constant 0 : index
    %112 = vector.load %arg2[%c0_103, %c0_104] : memref<1x8xf32, #tpu.memory_space<vmem>>, vector<1x8xf32>
    %cst_105 = arith.constant 9.99999974E-6 : f32
    %113 = vector.broadcast %cst_105 : f32 to vector<1x8xf32>
    %114 = arith.addf %111, %113 : vector<1x8xf32>
    %115 = math.rsqrt %114 : vector<1x8xf32>
    %116 = arith.mulf %112, %115 : vector<1x8xf32>
    %c0_106 = arith.constant 0 : index
    %c0_107 = arith.constant 0 : index
    %117 = vector.load %arg3[%c0_106, %c0_107] : memref<1x8xf32, #tpu.memory_space<vmem>>, vector<1x8xf32>
    %118 = arith.mulf %107, %116 : vector<1x8xf32>
    %119 = arith.subf %117, %118 : vector<1x8xf32>
    %c0_108 = arith.constant 0 : index
    %c0_109 = arith.constant 0 : index
    %120 = vector.load %arg8[%c0_108, %c0_109] : memref<8x128xf32, #tpu.memory_space<vmem>>, vector<8x128xf32>
    %cst_110 = arith.constant dense<0.000000e+00> : vector<1x128xf32>
    %121 = tpu.matmul %116, %120, %cst_110 {dimension_numbers = #tpu.dot_dimension_numbers<[1], [0], [0], [1], [0, 0, 1, 1], [], []>} : vector<1x8xf32>, vector<8x128xf32>, vector<1x128xf32> -> vector<1x128xf32>
    %c0_111 = arith.constant 0 : index
    %c0_112 = arith.constant 0 : index
    %122 = vector.load %arg8[%c0_111, %c0_112] : memref<8x128xf32, #tpu.memory_space<vmem>>, vector<8x128xf32>
    %cst_113 = arith.constant dense<0.000000e+00> : vector<1x128xf32>
    %123 = tpu.matmul %119, %122, %cst_113 {dimension_numbers = #tpu.dot_dimension_numbers<[1], [0], [0], [1], [0, 0, 1, 1], [], []>} : vector<1x8xf32>, vector<8x128xf32>, vector<1x128xf32> -> vector<1x128xf32>
    %c0_114 = arith.constant 0 : index
    %c1_115 = arith.constant 1 : index
    %c0_116 = arith.constant 0 : index
    %124 = vector.load %arg13[%c0_114, %c1_115, %c0_116] : memref<2x18x128xf32, #tpu.memory_space<vmem>>, vector<1x16x128xf32>
    %125 = vector.shape_cast %124 : vector<1x16x128xf32> to vector<16x128xf32>
    %126 = vector.broadcast %121 : vector<1x128xf32> to vector<16x128xf32>
    %127 = arith.mulf %125, %126 : vector<16x128xf32>
    %128 = vector.broadcast %123 : vector<1x128xf32> to vector<16x128xf32>
    %129 = arith.addf %127, %128 : vector<16x128xf32>
    %c0_117 = arith.constant 0 : index
    %c1_118 = arith.constant 1 : index
    %c0_119 = arith.constant 0 : index
    %130 = vector.load %arg13[%c0_117, %c1_118, %c0_119] : memref<2x18x128xf32, #tpu.memory_space<vmem>>, vector<1x16x128xf32>
    %131 = vector.shape_cast %130 : vector<1x16x128xf32> to vector<16x128xf32>
    %132 = vector.shape_cast %129 : vector<16x128xf32> to vector<1x16x128xf32>
    tpu.vector_store %arg13[%c0_117, %c1_118, %c0_119], %132 {strides = array<i32>} : memref<2x18x128xf32, #tpu.memory_space<vmem>>, vector<1x16x128xf32>,
    %c1_120 = arith.constant 1 : index
    %c1_121 = arith.constant 1 : index
    %c0_122 = arith.constant 0 : index
    %133 = vector.load %arg13[%c1_120, %c1_121, %c0_122] : memref<2x18x128xf32, #tpu.memory_space<vmem>>, vector<1x16x128xf32>
    %134 = vector.shape_cast %133 : vector<1x16x128xf32> to vector<16x128xf32>
    %135 = vector.broadcast %121 : vector<1x128xf32> to vector<16x128xf32>
    %136 = arith.mulf %134, %135 : vector<16x128xf32>
    %137 = vector.broadcast %123 : vector<1x128xf32> to vector<16x128xf32>
    %138 = arith.addf %136, %137 : vector<16x128xf32>
    %c1_123 = arith.constant 1 : index
    %c1_124 = arith.constant 1 : index
    %c0_125 = arith.constant 0 : index
    %139 = vector.load %arg13[%c1_123, %c1_124, %c0_125] : memref<2x18x128xf32, #tpu.memory_space<vmem>>, vector<1x16x128xf32>
    %140 = vector.shape_cast %139 : vector<1x16x128xf32> to vector<16x128xf32>
    %141 = vector.shape_cast %138 : vector<16x128xf32> to vector<1x16x128xf32>
    tpu.vector_store %arg13[%c1_123, %c1_124, %c0_125], %141 {strides = array<i32>} : memref<2x18x128xf32, #tpu.memory_space<vmem>>, vector<1x16x128xf32>,
    %cst_126 = arith.constant 0.000000e+00 : f32
    %142 = vector.broadcast %cst_126 : f32 to vector<1x64xf32>
    %cst_127 = arith.constant 0.000000e+00 : f32
    %143 = vector.broadcast %cst_127 : f32 to vector<1x64xf32>
    %cst_128 = arith.constant 0.000000e+00 : f32
    %144 = vector.broadcast %cst_128 : f32 to vector<16x64xf32>
    %c0_129 = arith.constant 0 : index
    %c0_130 = arith.constant 0 : index
    %c0_131 = arith.constant 0 : index
    %145 = vector.load %arg13[%c0_129, %c0_130, %c0_131] : memref<2x18x128xf32, #tpu.memory_space<vmem>>, vector<1x16x128xf32>
    %146 = vector.shape_cast %145 : vector<1x16x128xf32> to vector<16x128xf32>
    %c0_132 = arith.constant 0 : index
    %c0_133 = arith.constant 0 : index
    %c0_134 = arith.constant 0 : index
    %147 = vector.load %arg4[%c0_132, %c0_133, %c0_134] : memref<3x128x64xf32, #tpu.memory_space<vmem>>, vector<1x128x64xf32>
    %148 = vector.shape_cast %147 : vector<1x128x64xf32> to vector<128x64xf32>
    %cst_135 = arith.constant dense<0.000000e+00> : vector<16x64xf32>
    %149 = tpu.matmul %146, %148, %cst_135 {dimension_numbers = #tpu.dot_dimension_numbers<[1], [0], [0], [1], [0, 0, 1, 1], [], []>} : vector<16x128xf32>, vector<128x64xf32>, vector<16x64xf32> -> vector<16x64xf32>
    %150 = arith.addf %144, %149 : vector<16x64xf32>
    %c0_136 = arith.constant 0 : index
    %c1_137 = arith.constant 1 : index
    %c0_138 = arith.constant 0 : index
    %151 = vector.load %arg13[%c0_136, %c1_137, %c0_138] : memref<2x18x128xf32, #tpu.memory_space<vmem>>, vector<1x16x128xf32>
    %152 = vector.shape_cast %151 : vector<1x16x128xf32> to vector<16x128xf32>
    %c1_139 = arith.constant 1 : index
    %c0_140 = arith.constant 0 : index
    %c0_141 = arith.constant 0 : index
    %153 = vector.load %arg4[%c1_139, %c0_140, %c0_141] : memref<3x128x64xf32, #tpu.memory_space<vmem>>, vector<1x128x64xf32>
    %154 = vector.shape_cast %153 : vector<1x128x64xf32> to vector<128x64xf32>
    %cst_142 = arith.constant dense<0.000000e+00> : vector<16x64xf32>
    %155 = tpu.matmul %152, %154, %cst_142 {dimension_numbers = #tpu.dot_dimension_numbers<[1], [0], [0], [1], [0, 0, 1, 1], [], []>} : vector<16x128xf32>, vector<128x64xf32>, vector<16x64xf32> -> vector<16x64xf32>
    %156 = arith.addf %150, %155 : vector<16x64xf32>
    %c0_143 = arith.constant 0 : index
    %c2_144 = arith.constant 2 : index
    %c0_145 = arith.constant 0 : index
    %157 = vector.load %arg13[%c0_143, %c2_144, %c0_145] : memref<2x18x128xf32, #tpu.memory_space<vmem>>, vector<1x16x128xf32>
    %158 = vector.shape_cast %157 : vector<1x16x128xf32> to vector<16x128xf32>
    %c2_146 = arith.constant 2 : index
    %c0_147 = arith.constant 0 : index
    %c0_148 = arith.constant 0 : index
    %159 = vector.load %arg4[%c2_146, %c0_147, %c0_148] : memref<3x128x64xf32, #tpu.memory_space<vmem>>, vector<1x128x64xf32>
    %160 = vector.shape_cast %159 : vector<1x128x64xf32> to vector<128x64xf32>
    %cst_149 = arith.constant dense<0.000000e+00> : vector<16x64xf32>
    %161 = tpu.matmul %158, %160, %cst_149 {dimension_numbers = #tpu.dot_dimension_numbers<[1], [0], [0], [1], [0, 0, 1, 1], [], []>} : vector<16x128xf32>, vector<128x64xf32>, vector<16x64xf32> -> vector<16x64xf32>
    %162 = arith.addf %156, %161 : vector<16x64xf32>
    %cst_150 = arith.constant dense<0.000000e+00> : vector<64xf32>
    %163 = vector.multi_reduction <add>, %162, %cst_150 [0] : vector<16x64xf32> to vector<64xf32>
    %164 = vector.shape_cast %163 : vector<64xf32> to vector<1x64xf32>
    %165 = arith.addf %142, %164 : vector<1x64xf32>
    %166 = arith.mulf %162, %162 : vector<16x64xf32>
    %cst_151 = arith.constant dense<0.000000e+00> : vector<64xf32>
    %167 = vector.multi_reduction <add>, %166, %cst_151 [0] : vector<16x64xf32> to vector<64xf32>
    %168 = vector.shape_cast %167 : vector<64xf32> to vector<1x64xf32>
    %169 = arith.addf %143, %168 : vector<1x64xf32>
    %cst_152 = arith.constant 0.000000e+00 : f32
    %170 = vector.broadcast %cst_152 : f32 to vector<16x64xf32>
    %c1_153 = arith.constant 1 : index
    %c0_154 = arith.constant 0 : index
    %c0_155 = arith.constant 0 : index
    %171 = vector.load %arg13[%c1_153, %c0_154, %c0_155] : memref<2x18x128xf32, #tpu.memory_space<vmem>>, vector<1x16x128xf32>
    %172 = vector.shape_cast %171 : vector<1x16x128xf32> to vector<16x128xf32>
    %c0_156 = arith.constant 0 : index
    %c0_157 = arith.constant 0 : index
    %c0_158 = arith.constant 0 : index
    %173 = vector.load %arg4[%c0_156, %c0_157, %c0_158] : memref<3x128x64xf32, #tpu.memory_space<vmem>>, vector<1x128x64xf32>
    %174 = vector.shape_cast %173 : vector<1x128x64xf32> to vector<128x64xf32>
    %cst_159 = arith.constant dense<0.000000e+00> : vector<16x64xf32>
    %175 = tpu.matmul %172, %174, %cst_159 {dimension_numbers = #tpu.dot_dimension_numbers<[1], [0], [0], [1], [0, 0, 1, 1], [], []>} : vector<16x128xf32>, vector<128x64xf32>, vector<16x64xf32> -> vector<16x64xf32>
    %176 = arith.addf %170, %175 : vector<16x64xf32>
    %c1_160 = arith.constant 1 : index
    %c1_161 = arith.constant 1 : index
    %c0_162 = arith.constant 0 : index
    %177 = vector.load %arg13[%c1_160, %c1_161, %c0_162] : memref<2x18x128xf32, #tpu.memory_space<vmem>>, vector<1x16x128xf32>
    %178 = vector.shape_cast %177 : vector<1x16x128xf32> to vector<16x128xf32>
    %c1_163 = arith.constant 1 : index
    %c0_164 = arith.constant 0 : index
    %c0_165 = arith.constant 0 : index
    %179 = vector.load %arg4[%c1_163, %c0_164, %c0_165] : memref<3x128x64xf32, #tpu.memory_space<vmem>>, vector<1x128x64xf32>
    %180 = vector.shape_cast %179 : vector<1x128x64xf32> to vector<128x64xf32>
    %cst_166 = arith.constant dense<0.000000e+00> : vector<16x64xf32>
    %181 = tpu.matmul %178, %180, %cst_166 {dimension_numbers = #tpu.dot_dimension_numbers<[1], [0], [0], [1], [0, 0, 1, 1], [], []>} : vector<16x128xf32>, vector<128x64xf32>, vector<16x64xf32> -> vector<16x64xf32>
    %182 = arith.addf %176, %181 : vector<16x64xf32>
    %c1_167 = arith.constant 1 : index
    %c2_168 = arith.constant 2 : index
    %c0_169 = arith.constant 0 : index
    %183 = vector.load %arg13[%c1_167, %c2_168, %c0_169] : memref<2x18x128xf32, #tpu.memory_space<vmem>>, vector<1x16x128xf32>
    %184 = vector.shape_cast %183 : vector<1x16x128xf32> to vector<16x128xf32>
    %c2_170 = arith.constant 2 : index
    %c0_171 = arith.constant 0 : index
    %c0_172 = arith.constant 0 : index
    %185 = vector.load %arg4[%c2_170, %c0_171, %c0_172] : memref<3x128x64xf32, #tpu.memory_space<vmem>>, vector<1x128x64xf32>
    %186 = vector.shape_cast %185 : vector<1x128x64xf32> to vector<128x64xf32>
    %cst_173 = arith.constant dense<0.000000e+00> : vector<16x64xf32>
    %187 = tpu.matmul %184, %186, %cst_173 {dimension_numbers = #tpu.dot_dimension_numbers<[1], [0], [0], [1], [0, 0, 1, 1], [], []>} : vector<16x128xf32>, vector<128x64xf32>, vector<16x64xf32> -> vector<16x64xf32>
    %188 = arith.addf %182, %187 : vector<16x64xf32>
    %cst_174 = arith.constant dense<0.000000e+00> : vector<64xf32>
    %189 = vector.multi_reduction <add>, %188, %cst_174 [0] : vector<16x64xf32> to vector<64xf32>
    %190 = vector.shape_cast %189 : vector<64xf32> to vector<1x64xf32>
    %191 = arith.addf %165, %190 : vector<1x64xf32>
    %192 = arith.mulf %188, %188 : vector<16x64xf32>
    %cst_175 = arith.constant dense<0.000000e+00> : vector<64xf32>
    %193 = vector.multi_reduction <add>, %192, %cst_175 [0] : vector<16x64xf32> to vector<64xf32>
    %194 = vector.shape_cast %193 : vector<64xf32> to vector<1x64xf32>
    %195 = arith.addf %169, %194 : vector<1x64xf32>
    %c0_176 = arith.constant 0 : index
    %c0_177 = arith.constant 0 : index
    %196 = vector.load %arg9[%c0_176, %c0_177] : memref<64x4xf32, #tpu.memory_space<vmem>>, vector<64x4xf32>
    %cst_178 = arith.constant dense<0.000000e+00> : vector<1x4xf32>
    %197 = tpu.matmul %191, %196, %cst_178 {dimension_numbers = #tpu.dot_dimension_numbers<[1], [0], [0], [1], [0, 0, 1, 1], [], []>} : vector<1x64xf32>, vector<64x4xf32>, vector<1x4xf32> -> vector<1x4xf32>
    %c0_179 = arith.constant 0 : index
    %c0_180 = arith.constant 0 : index
    %198 = vector.load %arg9[%c0_179, %c0_180] : memref<64x4xf32, #tpu.memory_space<vmem>>, vector<64x4xf32>
    %cst_181 = arith.constant dense<0.000000e+00> : vector<1x4xf32>
    %199 = tpu.matmul %195, %198, %cst_181 {dimension_numbers = #tpu.dot_dimension_numbers<[1], [0], [0], [1], [0, 0, 1, 1], [], []>} : vector<1x64xf32>, vector<64x4xf32>, vector<1x4xf32> -> vector<1x4xf32>
    %cst_182 = arith.constant 5.120000e+02 : f32
    %200 = vector.broadcast %cst_182 : f32 to vector<1x4xf32>
    %201 = arith.divf %197, %200 : vector<1x4xf32>
    %cst_183 = arith.constant 5.120000e+02 : f32
    %202 = vector.broadcast %cst_183 : f32 to vector<1x4xf32>
    %203 = arith.divf %199, %202 : vector<1x4xf32>
    %204 = arith.mulf %201, %201 : vector<1x4xf32>
    %205 = arith.subf %203, %204 : vector<1x4xf32>
    %c0_184 = arith.constant 0 : index
    %c0_185 = arith.constant 0 : index
    %206 = vector.load %arg5[%c0_184, %c0_185] : memref<1x4xf32, #tpu.memory_space<vmem>>, vector<1x4xf32>
    %cst_186 = arith.constant 9.99999974E-6 : f32
    %207 = vector.broadcast %cst_186 : f32 to vector<1x4xf32>
    %208 = arith.addf %205, %207 : vector<1x4xf32>
    %209 = math.rsqrt %208 : vector<1x4xf32>
    %210 = arith.mulf %206, %209 : vector<1x4xf32>
    %c0_187 = arith.constant 0 : index
    %c0_188 = arith.constant 0 : index
    %211 = vector.load %arg6[%c0_187, %c0_188] : memref<1x4xf32, #tpu.memory_space<vmem>>, vector<1x4xf32>
    %212 = arith.mulf %201, %210 : vector<1x4xf32>
    %213 = arith.subf %211, %212 : vector<1x4xf32>
    %c0_189 = arith.constant 0 : index
    %c0_190 = arith.constant 0 : index
    %214 = vector.load %arg10[%c0_189, %c0_190] : memref<4x64xf32, #tpu.memory_space<vmem>>, vector<4x64xf32>
    %cst_191 = arith.constant dense<0.000000e+00> : vector<1x64xf32>
    %215 = tpu.matmul %210, %214, %cst_191 {dimension_numbers = #tpu.dot_dimension_numbers<[1], [0], [0], [1], [0, 0, 1, 1], [], []>} : vector<1x4xf32>, vector<4x64xf32>, vector<1x64xf32> -> vector<1x64xf32>
    %c0_192 = arith.constant 0 : index
    %c0_193 = arith.constant 0 : index
    %216 = vector.load %arg10[%c0_192, %c0_193] : memref<4x64xf32, #tpu.memory_space<vmem>>, vector<4x64xf32>
    %cst_194 = arith.constant dense<0.000000e+00> : vector<1x64xf32>
    %217 = tpu.matmul %213, %216, %cst_194 {dimension_numbers = #tpu.dot_dimension_numbers<[1], [0], [0], [1], [0, 0, 1, 1], [], []>} : vector<1x4xf32>, vector<4x64xf32>, vector<1x64xf32> -> vector<1x64xf32>
    %218 = vector.broadcast %215 : vector<1x64xf32> to vector<16x64xf32>
    %219 = arith.mulf %162, %218 : vector<16x64xf32>
    %220 = vector.broadcast %217 : vector<1x64xf32> to vector<16x64xf32>
    %221 = arith.addf %219, %220 : vector<16x64xf32>
    %c0_195 = arith.constant 0 : index
    %c0_196 = arith.constant 0 : index
    %c0_197 = arith.constant 0 : index
    %222 = vector.load %arg0[%c0_195, %c0_196, %c0_197] : memref<2x16x64xf32, #tpu.memory_space<vmem>>, vector<1x16x64xf32>
    %223 = vector.shape_cast %222 : vector<1x16x64xf32> to vector<16x64xf32>
    %224 = arith.addf %221, %223 : vector<16x64xf32>
    %cst_198 = arith.constant 0.000000e+00 : f32
    %225 = vector.broadcast %cst_198 : f32 to vector<16x64xf32>
    %226 = arith.cmpf ogt, %224, %225 : vector<16x64xf32>
    %227 = math.exp %224 : vector<16x64xf32>
    %cst_199 = arith.constant 1.000000e+00 : f32
    %228 = vector.broadcast %cst_199 : f32 to vector<16x64xf32>
    %229 = arith.subf %227, %228 : vector<16x64xf32>
    %230 = arith.select %226, %224, %229 : vector<16x64xi1>, vector<16x64xf32>
    %c0_200 = arith.constant 0 : index
    %c0_201 = arith.constant 0 : index
    %c0_202 = arith.constant 0 : index
    %231 = vector.load %arg11[%c0_200, %c0_201, %c0_202] : memref<2x16x64xf32, #tpu.memory_space<vmem>>, vector<1x16x64xf32>
    %232 = vector.shape_cast %231 : vector<1x16x64xf32> to vector<16x64xf32>
    %233 = vector.shape_cast %230 : vector<16x64xf32> to vector<1x16x64xf32>
    tpu.vector_store %arg11[%c0_200, %c0_201, %c0_202], %233 {strides = array<i32>} : memref<2x16x64xf32, #tpu.memory_space<vmem>>, vector<1x16x64xf32>,
    %234 = vector.broadcast %215 : vector<1x64xf32> to vector<16x64xf32>
    %235 = arith.mulf %188, %234 : vector<16x64xf32>
    %236 = vector.broadcast %217 : vector<1x64xf32> to vector<16x64xf32>
    %237 = arith.addf %235, %236 : vector<16x64xf32>
    %c1_203 = arith.constant 1 : index
    %c0_204 = arith.constant 0 : index
    %c0_205 = arith.constant 0 : index
    %238 = vector.load %arg0[%c1_203, %c0_204, %c0_205] : memref<2x16x64xf32, #tpu.memory_space<vmem>>, vector<1x16x64xf32>
    %239 = vector.shape_cast %238 : vector<1x16x64xf32> to vector<16x64xf32>
    %240 = arith.addf %237, %239 : vector<16x64xf32>
    %cst_206 = arith.constant 0.000000e+00 : f32
    %241 = vector.broadcast %cst_206 : f32 to vector<16x64xf32>
    %242 = arith.cmpf ogt, %240, %241 : vector<16x64xf32>
    %243 = math.exp %240 : vector<16x64xf32>
    %cst_207 = arith.constant 1.000000e+00 : f32
    %244 = vector.broadcast %cst_207 : f32 to vector<16x64xf32>
    %245 = arith.subf %243, %244 : vector<16x64xf32>
    %246 = arith.select %242, %240, %245 : vector<16x64xi1>, vector<16x64xf32>
    %c1_208 = arith.constant 1 : index
    %c0_209 = arith.constant 0 : index
    %c0_210 = arith.constant 0 : index
    %247 = vector.load %arg11[%c1_208, %c0_209, %c0_210] : memref<2x16x64xf32, #tpu.memory_space<vmem>>, vector<1x16x64xf32>
    %248 = vector.shape_cast %247 : vector<1x16x64xf32> to vector<16x64xf32>
    %249 = vector.shape_cast %246 : vector<16x64xf32> to vector<1x16x64xf32>
    tpu.vector_store %arg11[%c1_208, %c0_209, %c0_210], %249 {strides = array<i32>} : memref<2x16x64xf32, #tpu.memory_space<vmem>>, vector<1x16x64xf32>,
    return
  }
}

</mosaic_0001>

<llo_original>
// kernel: tile.14
$region0: #{tile.14}
  %s0 = inlined_call_operand.vmem [shape: f32[16,8,8], index: 0, kind: input, shape index: {}]
  %s1 = inlined_call_operand.vmem [shape: f32[128,8], index: 1, kind: output, shape index: {}]
  %s2 = smov 3
  %v3 = vld [vmem:[%s0] ss:$16 sm:%s2]
  %s4 = smov 12
  %v5 = vld [vmem:[%s0] ss:$16 sm:%s4]
  %vm6 = vcmask 1043458
  %v7 = vsel %vm6, %v5, %v3
  %s8 = smov 48
  %v9 = vld [vmem:[%s0] ss:$16 sm:%s8]
  %vm10 = vcmask 1045508
  %v11 = vsel %vm10, %v9, %v7
  %s12 = smov 192
  %v13 = vld [vmem:[%s0] ss:$16 sm:%s12]
  %vm14 = vcmask 1047558
  %v15 = vsel %vm14, %v13, %v11
  %vm16 = vcmask 64512
  %17 = vst.msk [vmem:[%s1] sm:$0xff] %vm16, %v15
  %s18 = scalar_lea.vmem %s0, 15
  %s19 = smov 3
  %v20 = vld [vmem:[%s18] ss:$16 sm:%s19]
  %s21 = scalar_lea.vmem %s0, 15
  %s22 = smov 12
  %v23 = vld [vmem:[%s21] ss:$16 sm:%s22]
  %vm24 = vcmask 1043458
  %v25 = vsel %vm24, %v23, %v20
  %s26 = scalar_lea.vmem %s0, 15
  %s27 = smov 48
  %v28 = vld [vmem:[%s26] ss:$16 sm:%s27]
  %vm29 = vcmask 1045508
  %v30 = vsel %vm29, %v28, %v25
  %s31 = scalar_lea.vmem %s0, 15
  %s32 = smov 192
  %v33 = vld [vmem:[%s31] ss:$16 sm:%s32]
  %vm34 = vcmask 1047558
  %v35 = vsel %vm34, %v33, %v30
  %36 = vrot.lane.b32.xlu0 %v35, 120
  %v37 = vpop.permute.xlu0 %36
  %vm38 = vcmask 1048512
  %39 = vst.msk [vmem:[%s1] sm:$0xff] %vm38, %v37
  %s40 = scalar_lea.vmem %s0, 14
  %s41 = smov 3
  %v42 = vld [vmem:[%s40] ss:$16 sm:%s41]
  %s43 = scalar_lea.vmem %s0, 14
  %s44 = smov 12
  %v45 = vld [vmem:[%s43] ss:$16 sm:%s44]
  %vm46 = vcmask 1043458
  %v47 = vsel %vm46, %v45, %v42
  %s48 = scalar_lea.vmem %s0, 14
  %s49 = smov 48
  %v50 = vld [vmem:[%s48] ss:$16 sm:%s49]
  %vm51 = vcmask 1045508
  %v52 = vsel %vm51, %v50, %v47
  %s53 = scalar_lea.vmem %s0, 14
  %s54 = smov 192
  %v55 = vld [vmem:[%s53] ss:$16 sm:%s54]
  %vm56 = vcmask 1047558
  %v57 = vsel %vm56, %v55, %v52
  %58 = vrot.lane.b32.xlu0 %v57, 112
  %v59 = vpop.permute.xlu0 %58
  %vm60 = vcmask 982912
  %61 = vst.msk [vmem:[%s1] sm:$0xff] %vm60, %v59
  %s62 = scalar_lea.vmem %s0, 13
  %s63 = smov 3
  %v64 = vld [vmem:[%s62] ss:$16 sm:%s63]
  %s65 = scalar_lea.vmem %s0, 13
  %s66 = smov 12
  %v67 = vld [vmem:[%s65] ss:$16 sm:%s66]
  %vm68 = vcmask 1043458
  %v69 = vsel %vm68, %v67, %v64
  %s70 = scalar_lea.vmem %s0, 13
  %s71 = smov 48
  %v72 = vld [vmem:[%s70] ss:$16 sm:%s71]
  %vm73 = vcmask 1045508
  %v74 = vsel %vm73, %v72, %v69
  %s75 = scalar_lea.vmem %s0, 13
  %s76 = smov 192
  %v77 = vld [vmem:[%s75] ss:$16 sm:%s76]
  %vm78 = vcmask 1047558
  %v79 = vsel %vm78, %v77, %v74
  %80 = vrot.lane.b32.xlu0 %v79, 104
  %v81 = vpop.permute.xlu0 %80
  %vm82 = vcmask 917312
  %83 = vst.msk [vmem:[%s1] sm:$0xff] %vm82, %v81
  %s84 = scalar_lea.vmem %s0, 12
  %s85 = smov 3
  %v86 = vld [vmem:[%s84] ss:$16 sm:%s85]
  %s87 = scalar_lea.vmem %s0, 12
  %s88 = smov 12
  %v89 = vld [vmem:[%s87] ss:$16 sm:%s88]
  %vm90 = vcmask 1043458
  %v91 = vsel %vm90, %v89, %v86
  %s92 = scalar_lea.vmem %s0, 12
  %s93 = smov 48
  %v94 = vld [vmem:[%s92] ss:$16 sm:%s93]
  %vm95 = vcmask 1045508
  %v96 = vsel %vm95, %v94, %v91
  %s97 = scalar_lea.vmem %s0, 12
  %s98 = smov 192
  %v99 = vld [vmem:[%s97] ss:$16 sm:%s98]
  %vm100 = vcmask 1047558
  %v101 = vsel %vm100, %v99, %v96
  %102 = vrot.lane.b32.xlu0 %v101, 96
  %v103 = vpop.permute.xlu0 %102
  %vm104 = vcmask 851712
  %105 = vst.msk [vmem:[%s1] sm:$0xff] %vm104, %v103
  %s106 = scalar_lea.vmem %s0, 11
  %s107 = smov 3
  %v108 = vld [vmem:[%s106] ss:$16 sm:%s107]
  %s109 = scalar_lea.vmem %s0, 11
  %s110 = smov 12
  %v111 = vld [vmem:[%s109] ss:$16 sm:%s110]
  %vm112 = vcmask 1043458
  %v113 = vsel %vm112, %v111, %v108
  %s114 = scalar_lea.vmem %s0, 11
  %s115 = smov 48
  %v116 = vld [vmem:[%s114] ss:$16 sm:%s115]
  %vm117 = vcmask 1045508
  %v118 = vsel %vm117, %v116, %v113
  %s119 = scalar_lea.vmem %s0, 11
  %s120 = smov 192
  %v121 = vld [vmem:[%s119] ss:$16 sm:%s120]
  %vm122 = vcmask 1047558
  %v123 = vsel %vm122, %v121, %v118
  %124 = vrot.lane.b32.xlu0 %v123, 88
  %v125 = vpop.permute.xlu0 %124
  %vm126 = vcmask 786112
  %127 = vst.msk [vmem:[%s1] sm:$0xff] %vm126, %v125
  %s128 = scalar_lea.vmem %s0, 10
  %s129 = smov 3
  %v130 = vld [vmem:[%s128] ss:$16 sm:%s129]
  %s131 = scalar_lea.vmem %s0, 10
  %s132 = smov 12
  %v133 = vld [vmem:[%s131] ss:$16 sm:%s132]
  %vm134 = vcmask 1043458
  %v135 = vsel %vm134, %v133, %v130
  %s136 = scalar_lea.vmem %s0, 10
  %s137 = smov 48
  %v138 = vld [vmem:[%s136] ss:$16 sm:%s137]
  %vm139 = vcmask 1045508
  %v140 = vsel %vm139, %v138, %v135
  %s141 = scalar_lea.vmem %s0, 10
  %s142 = smov 192
  %v143 = vld [vmem:[%s141] ss:$16 sm:%s142]
  %vm144 = vcmask 1047558
  %v145 = vsel %vm144, %v143, %v140
  %146 = vrot.lane.b32.xlu0 %v145, 80
  %v147 = vpop.permute.xlu0 %146
  %vm148 = vcmask 720512
  %149 = vst.msk [vmem:[%s1] sm:$0xff] %vm148, %v147
  %s150 = scalar_lea.vmem %s0, 9
  %s151 = smov 3
  %v152 = vld [vmem:[%s150] ss:$16 sm:%s151]
  %s153 = scalar_lea.vmem %s0, 9
  %s154 = smov 12
  %v155 = vld [vmem:[%s153] ss:$16 sm:%s154]
  %vm156 = vcmask 1043458
  %v157 = vsel %vm156, %v155, %v152
  %s158 = scalar_lea.vmem %s0, 9
  %s159 = smov 48
  %v160 = vld [vmem:[%s158] ss:$16 sm:%s159]
  %vm161 = vcmask 1045508
  %v162 = vsel %vm161, %v160, %v157
  %s163 = scalar_lea.vmem %s0, 9
  %s164 = smov 192
  %v165 = vld [vmem:[%s163] ss:$16 sm:%s164]
  %vm166 = vcmask 1047558
  %v167 = vsel %vm166, %v165, %v162
  %168 = vrot.lane.b32.xlu0 %v167, 72
  %v169 = vpop.permute.xlu0 %168
  %vm170 = vcmask 654912
  %171 = vst.msk [vmem:[%s1] sm:$0xff] %vm170, %v169
  %s172 = scalar_lea.vmem %s0, 8
  %s173 = smov 3
  %v174 = vld [vmem:[%s172] ss:$16 sm:%s173]
  %s175 = scalar_lea.vmem %s0, 8
  %s176 = smov 12
  %v177 = vld [vmem:[%s175] ss:$16 sm:%s176]
  %vm178 = vcmask 1043458
  %v179 = vsel %vm178, %v177, %v174
  %s180 = scalar_lea.vmem %s0, 8
  %s181 = smov 48
  %v182 = vld [vmem:[%s180] ss:$16 sm:%s181]
  %vm183 = vcmask 1045508
  %v184 = vsel %vm183, %v182, %v179
  %s185 = scalar_lea.vmem %s0, 8
  %s186 = smov 192
  %v187 = vld [vmem:[%s185] ss:$16 sm:%s186]
  %vm188 = vcmask 1047558
  %v189 = vsel %vm188, %v187, %v184
  %190 = vrot.lane.b32.xlu0 %v189, 64
  %v191 = vpop.permute.xlu0 %190
  %vm192 = vcmask 589312
  %193 = vst.msk [vmem:[%s1] sm:$0xff] %vm192, %v191
  %s194 = scalar_lea.vmem %s0, 7
  %s195 = smov 3
  %v196 = vld [vmem:[%s194] ss:$16 sm:%s195]
  %s197 = scalar_lea.vmem %s0, 7
  %s198 = smov 12
  %v199 = vld [vmem:[%s197] ss:$16 sm:%s198]
  %vm200 = vcmask 1043458
  %v201 = vsel %vm200, %v199, %v196
  %s202 = scalar_lea.vmem %s0, 7
  %s203 = smov 48
  %v204 = vld [vmem:[%s202] ss:$16 sm:%s203]
  %vm205 = vcmask 1045508
  %v206 = vsel %vm205, %v204, %v201
  %s207 = scalar_lea.vmem %s0, 7
  %s208 = smov 192
  %v209 = vld [vmem:[%s207] ss:$16 sm:%s208]
  %vm210 = vcmask 1047558
  %v211 = vsel %vm210, %v209, %v206
  %212 = vrot.lane.b32.xlu0 %v211, 56
  %v213 = vpop.permute.xlu0 %212
  %vm214 = vcmask 523712
  %215 = vst.msk [vmem:[%s1] sm:$0xff] %vm214, %v213
  %s216 = scalar_lea.vmem %s0, 6
  %s217 = smov 3
  %v218 = vld [vmem:[%s216] ss:$16 sm:%s217]
  %s219 = scalar_lea.vmem %s0, 6
  %s220 = smov 12
  %v221 = vld [vmem:[%s219] ss:$16 sm:%s220]
  %vm222 = vcmask 1043458
  %v223 = vsel %vm222, %v221, %v218
  %s224 = scalar_lea.vmem %s0, 6
  %s225 = smov 48
  %v226 = vld [vmem:[%s224] ss:$16 sm:%s225]
  %vm227 = vcmask 1045508
  %v228 = vsel %vm227, %v226, %v223
  %s229 = scalar_lea.vmem %s0, 6
  %s230 = smov 192
  %v231 = vld [vmem:[%s229] ss:$16 sm:%s230]
  %vm232 = vcmask 1047558
  %v233 = vsel %vm232, %v231, %v228
  %234 = vrot.lane.b32.xlu0 %v233, 48
  %v235 = vpop.permute.xlu0 %234
  %vm236 = vcmask 458112
  %237 = vst.msk [vmem:[%s1] sm:$0xff] %vm236, %v235
  %s238 = scalar_lea.vmem %s0, 5
  %s239 = smov 3
  %v240 = vld [vmem:[%s238] ss:$16 sm:%s239]
  %s241 = scalar_lea.vmem %s0, 5
  %s242 = smov 12
  %v243 = vld [vmem:[%s241] ss:$16 sm:%s242]
  %vm244 = vcmask 1043458
  %v245 = vsel %vm244, %v243, %v240
  %s246 = scalar_lea.vmem %s0, 5
  %s247 = smov 48
  %v248 = vld [vmem:[%s246] ss:$16 sm:%s247]
  %vm249 = vcmask 1045508
  %v250 = vsel %vm249, %v248, %v245
  %s251 = scalar_lea.vmem %s0, 5
  %s252 = smov 192
  %v253 = vld [vmem:[%s251] ss:$16 sm:%s252]
  %vm254 = vcmask 1047558
  %v255 = vsel %vm254, %v253, %v250
  %256 = vrot.lane.b32.xlu0 %v255, 40
  %v257 = vpop.permute.xlu0 %256
  %vm258 = vcmask 392512
  %259 = vst.msk [vmem:[%s1] sm:$0xff] %vm258, %v257
  %s260 = scalar_lea.vmem %s0, 4
  %s261 = smov 3
  %v262 = vld [vmem:[%s260] ss:$16 sm:%s261]
  %s263 = scalar_lea.vmem %s0, 4
  %s264 = smov 12
  %v265 = vld [vmem:[%s263] ss:$16 sm:%s264]
  %vm266 = vcmask 1043458
  %v267 = vsel %vm266, %v265, %v262
  %s268 = scalar_lea.vmem %s0, 4
  %s269 = smov 48
  %v270 = vld [vmem:[%s268] ss:$16 sm:%s269]
  %vm271 = vcmask 1045508
  %v272 = vsel %vm271, %v270, %v267
  %s273 = scalar_lea.vmem %s0, 4
  %s274 = smov 192
  %v275 = vld [vmem:[%s273] ss:$16 sm:%s274]
  %vm276 = vcmask 1047558
  %v277 = vsel %vm276, %v275, %v272
  %278 = vrot.lane.b32.xlu0 %v277, 32
  %v279 = vpop.permute.xlu0 %278
  %vm280 = vcmask 326912
  %281 = vst.msk [vmem:[%s1] sm:$0xff] %vm280, %v279
  %s282 = scalar_lea.vmem %s0, 3
  %s283 = smov 3
  %v284 = vld [vmem:[%s282] ss:$16 sm:%s283]
  %s285 = scalar_lea.vmem %s0, 3
  %s286 = smov 12
  %v287 = vld [vmem:[%s285] ss:$16 sm:%s286]
  %vm288 = vcmask 1043458
  %v289 = vsel %vm288, %v287, %v284
  %s290 = scalar_lea.vmem %s0, 3
  %s291 = smov 48
  %v292 = vld [vmem:[%s290] ss:$16 sm:%s291]
  %vm293 = vcmask 1045508
  %v294 = vsel %vm293, %v292, %v289
  %s295 = scalar_lea.vmem %s0, 3
  %s296 = smov 192
  %v297 = vld [vmem:[%s295] ss:$16 sm:%s296]
  %vm298 = vcmask 1047558
  %v299 = vsel %vm298, %v297, %v294
  %300 = vrot.lane.b32.xlu0 %v299, 24
  %v301 = vpop.permute.xlu0 %300
  %vm302 = vcmask 261312
  %303 = vst.msk [vmem:[%s1] sm:$0xff] %vm302, %v301
  %s304 = scalar_lea.vmem %s0, 2
  %s305 = smov 3
  %v306 = vld [vmem:[%s304] ss:$16 sm:%s305]
  %s307 = scalar_lea.vmem %s0, 2
  %s308 = smov 12
  %v309 = vld [vmem:[%s307] ss:$16 sm:%s308]
  %vm310 = vcmask 1043458
  %v311 = vsel %vm310, %v309, %v306
  %s312 = scalar_lea.vmem %s0, 2
  %s313 = smov 48
  %v314 = vld [vmem:[%s312] ss:$16 sm:%s313]
  %vm315 = vcmask 1045508
  %v316 = vsel %vm315, %v314, %v311
  %s317 = scalar_lea.vmem %s0, 2
  %s318 = smov 192
  %v319 = vld [vmem:[%s317] ss:$16 sm:%s318]
  %vm320 = vcmask 1047558
  %v321 = vsel %vm320, %v319, %v316
  %322 = vrot.lane.b32.xlu0 %v321, 16
  %v323 = vpop.permute.xlu0 %322
  %vm324 = vcmask 195712
  %325 = vst.msk [vmem:[%s1] sm:$0xff] %vm324, %v323
  %s326 = scalar_lea.vmem %s0, 1
  %s327 = smov 3
  %v328 = vld [vmem:[%s326] ss:$16 sm:%s327]
  %s329 = scalar_lea.vmem %s0, 1
  %s330 = smov 12
  %v331 = vld [vmem:[%s329] ss:$16 sm:%s330]
  %vm332 = vcmask 1043458
  %v333 = vsel %vm332, %v331, %v328
  %s334 = scalar_lea.vmem %s0, 1
  %s335 = smov 48
  %v336 = vld [vmem:[%s334] ss:$16 sm:%s335]
  %vm337 = vcmask 1045508
  %v338 = vsel %vm337, %v336, %v333
  %s339 = scalar_lea.vmem %s0, 1
  %s340 = smov 192
  %v341 = vld [vmem:[%s339] ss:$16 sm:%s340]
  %vm342 = vcmask 1047558
  %v343 = vsel %vm342, %v341, %v338
  %344 = vrot.lane.b32.xlu0 %v343, 8
  %v345 = vpop.permute.xlu0 %344
  %vm346 = vcmask 130112
  %347 = vst.msk [vmem:[%s1] sm:$0xff] %vm346, %v345

// kernel: tile.19
$region0: #{tile.19}
  %s0 = inlined_call_operand.vmem [shape: f32[16,4,4], index: 0, kind: input, shape index: {}]
  %s1 = inlined_call_operand.vmem [shape: f32[64,4], index: 1, kind: output, shape index: {}]
  $region1: #{tile.19} parent=0
    #allocation0 [shape = 'u8[4096]{0}', space=vmem, size = 0x1000, scoped, tag = 'scoped mem for output reshape']
    %s2 = smov 3
    %v3 = vld [vmem:[%s0] ss:$16 sm:%s2]
    %s4 = smov 12
    %v5 = vld [vmem:[%s0] ss:$16 sm:%s4]
    %vm6 = vcmask 1043458
    %v7 = vsel %vm6, %v5, %v3
    %vm8 = vcmask 31744
    %9 = vst.msk [vmem:[#allocation0] sm:$0xf] %vm8, %v7
    %s10 = scalar_lea.vmem %s0, 15
    %s11 = smov 3
    %v12 = vld [vmem:[%s10] ss:$16 sm:%s11]
    %s13 = scalar_lea.vmem %s0, 15
    %s14 = smov 12
    %v15 = vld [vmem:[%s13] ss:$16 sm:%s14]
    %vm16 = vcmask 1043458
    %v17 = vsel %vm16, %v15, %v12
    %18 = vrot.lane.b32.xlu0 %v17, 60
    %v19 = vpop.permute.xlu0 %18
    %vm20 = vcmask 523744
    %21 = vst.msk [vmem:[#allocation0] sm:$0xf] %vm20, %v19
    %s22 = scalar_lea.vmem %s0, 14
    %s23 = smov 3
    %v24 = vld [vmem:[%s22] ss:$16 sm:%s23]
    %s25 = scalar_lea.vmem %s0, 14
    %s26 = smov 12
    %v27 = vld [vmem:[%s25] ss:$16 sm:%s26]
    %vm28 = vcmask 1043458
    %v29 = vsel %vm28, %v27, %v24
    %30 = vrot.lane.b32.xlu0 %v29, 56
    %v31 = vpop.permute.xlu0 %30
    %vm32 = vcmask 490944
    %33 = vst.msk [vmem:[#allocation0] sm:$0xf] %vm32, %v31
    %s34 = scalar_lea.vmem %s0, 13
    %s35 = smov 3
    %v36 = vld [vmem:[%s34] ss:$16 sm:%s35]
    %s37 = scalar_lea.vmem %s0, 13
    %s38 = smov 12
    %v39 = vld [vmem:[%s37] ss:$16 sm:%s38]
    %vm40 = vcmask 1043458
    %v41 = vsel %vm40, %v39, %v36
    %42 = vrot.lane.b32.xlu0 %v41, 52
    %v43 = vpop.permute.xlu0 %42
    %vm44 = vcmask 458144
    %45 = vst.msk [vmem:[#allocation0] sm:$0xf] %vm44, %v43
    %s46 = scalar_lea.vmem %s0, 12
    %s47 = smov 3
    %v48 = vld [vmem:[%s46] ss:$16 sm:%s47]
    %s49 = scalar_lea.vmem %s0, 12
    %s50 = smov 12
    %v51 = vld [vmem:[%s49] ss:$16 sm:%s50]
    %vm52 = vcmask 1043458
    %v53 = vsel %vm52, %v51, %v48
    %54 = vrot.lane.b32.xlu0 %v53, 48
    %v55 = vpop.permute.xlu0 %54
    %vm56 = vcmask 425344
    %57 = vst.msk [vmem:[#allocation0] sm:$0xf] %vm56, %v55
    %s58 = scalar_lea.vmem %s0, 11
    %s59 = smov 3
    %v60 = vld [vmem:[%s58] ss:$16 sm:%s59]
    %s61 = scalar_lea.vmem %s0, 11
    %s62 = smov 12
    %v63 = vld [vmem:[%s61] ss:$16 sm:%s62]
    %vm64 = vcmask 1043458
    %v65 = vsel %vm64, %v63, %v60
    %66 = vrot.lane.b32.xlu0 %v65, 44
    %v67 = vpop.permute.xlu0 %66
    %vm68 = vcmask 392544
    %69 = vst.msk [vmem:[#allocation0] sm:$0xf] %vm68, %v67
    %s70 = scalar_lea.vmem %s0, 10
    %s71 = smov 3
    %v72 = vld [vmem:[%s70] ss:$16 sm:%s71]
    %s73 = scalar_lea.vmem %s0, 10
    %s74 = smov 12
    %v75 = vld [vmem:[%s73] ss:$16 sm:%s74]
    %vm76 = vcmask 1043458
    %v77 = vsel %vm76, %v75, %v72
    %78 = vrot.lane.b32.xlu0 %v77, 40
    %v79 = vpop.permute.xlu0 %78
    %vm80 = vcmask 359744
    %81 = vst.msk [vmem:[#allocation0] sm:$0xf] %vm80, %v79
    %s82 = scalar_lea.vmem %s0, 9
    %s83 = smov 3
    %v84 = vld [vmem:[%s82] ss:$16 sm:%s83]
    %s85 = scalar_lea.vmem %s0, 9
    %s86 = smov 12
    %v87 = vld [vmem:[%s85] ss:$16 sm:%s86]
    %vm88 = vcmask 1043458
    %v89 = vsel %vm88, %v87, %v84
    %90 = vrot.lane.b32.xlu0 %v89, 36
    %v91 = vpop.permute.xlu0 %90
    %vm92 = vcmask 326944
    %93 = vst.msk [vmem:[#allocation0] sm:$0xf] %vm92, %v91
    %s94 = scalar_lea.vmem %s0, 8
    %s95 = smov 3
    %v96 = vld [vmem:[%s94] ss:$16 sm:%s95]
    %s97 = scalar_lea.vmem %s0, 8
    %s98 = smov 12
    %v99 = vld [vmem:[%s97] ss:$16 sm:%s98]
    %vm100 = vcmask 1043458
    %v101 = vsel %vm100, %v99, %v96
    %102 = vrot.lane.b32.xlu0 %v101, 32
    %v103 = vpop.permute.xlu0 %102
    %vm104 = vcmask 294144
    %105 = vst.msk [vmem:[#allocation0] sm:$0xf] %vm104, %v103
    %s106 = scalar_lea.vmem %s0, 7
    %s107 = smov 3
    %v108 = vld [vmem:[%s106] ss:$16 sm:%s107]
    %s109 = scalar_lea.vmem %s0, 7
    %s110 = smov 12
    %v111 = vld [vmem:[%s109] ss:$16 sm:%s110]
    %vm112 = vcmask 1043458
    %v113 = vsel %vm112, %v111, %v108
    %114 = vrot.lane.b32.xlu0 %v113, 28
    %v115 = vpop.permute.xlu0 %114
    %vm116 = vcmask 261344
    %117 = vst.msk [vmem:[#allocation0] sm:$0xf] %vm116, %v115
    %s118 = scalar_lea.vmem %s0, 6
    %s119 = smov 3
    %v120 = vld [vmem:[%s118] ss:$16 sm:%s119]
    %s121 = scalar_lea.vmem %s0, 6
    %s122 = smov 12
    %v123 = vld [vmem:[%s121] ss:$16 sm:%s122]
    %vm124 = vcmask 1043458
    %v125 = vsel %vm124, %v123, %v120
    %126 = vrot.lane.b32.xlu0 %v125, 24
    %v127 = vpop.permute.xlu0 %126
    %vm128 = vcmask 228544
    %129 = vst.msk [vmem:[#allocation0] sm:$0xf] %vm128, %v127
    %s130 = scalar_lea.vmem %s0, 5
    %s131 = smov 3
    %v132 = vld [vmem:[%s130] ss:$16 sm:%s131]
    %s133 = scalar_lea.vmem %s0, 5
    %s134 = smov 12
    %v135 = vld [vmem:[%s133] ss:$16 sm:%s134]
    %vm136 = vcmask 1043458
    %v137 = vsel %vm136, %v135, %v132
    %138 = vrot.lane.b32.xlu0 %v137, 20
    %v139 = vpop.permute.xlu0 %138
    %vm140 = vcmask 195744
    %141 = vst.msk [vmem:[#allocation0] sm:$0xf] %vm140, %v139
    %s142 = scalar_lea.vmem %s0, 4
    %s143 = smov 3
    %v144 = vld [vmem:[%s142] ss:$16 sm:%s143]
    %s145 = scalar_lea.vmem %s0, 4
    %s146 = smov 12
    %v147 = vld [vmem:[%s145] ss:$16 sm:%s146]
    %vm148 = vcmask 1043458
    %v149 = vsel %vm148, %v147, %v144
    %150 = vrot.lane.b32.xlu0 %v149, 16
    %v151 = vpop.permute.xlu0 %150
    %vm152 = vcmask 162944
    %153 = vst.msk [vmem:[#allocation0] sm:$0xf] %vm152, %v151
    %s154 = scalar_lea.vmem %s0, 3
    %s155 = smov 3
    %v156 = vld [vmem:[%s154] ss:$16 sm:%s155]
    %s157 = scalar_lea.vmem %s0, 3
    %s158 = smov 12
    %v159 = vld [vmem:[%s157] ss:$16 sm:%s158]
    %vm160 = vcmask 1043458
    %v161 = vsel %vm160, %v159, %v156
    %162 = vrot.lane.b32.xlu0 %v161, 12
    %v163 = vpop.permute.xlu0 %162
    %vm164 = vcmask 130144
    %165 = vst.msk [vmem:[#allocation0] sm:$0xf] %vm164, %v163
    %s166 = scalar_lea.vmem %s0, 2
    %s167 = smov 3
    %v168 = vld [vmem:[%s166] ss:$16 sm:%s167]
    %s169 = scalar_lea.vmem %s0, 2
    %s170 = smov 12
    %v171 = vld [vmem:[%s169] ss:$16 sm:%s170]
    %vm172 = vcmask 1043458
    %v173 = vsel %vm172, %v171, %v168
    %174 = vrot.lane.b32.xlu0 %v173, 8
    %v175 = vpop.permute.xlu0 %174
    %vm176 = vcmask 97344
    %177 = vst.msk [vmem:[#allocation0] sm:$0xf] %vm176, %v175
    %s178 = scalar_lea.vmem %s0, 1
    %s179 = smov 3
    %v180 = vld [vmem:[%s178] ss:$16 sm:%s179]
    %s181 = scalar_lea.vmem %s0, 1
    %s182 = smov 12
    %v183 = vld [vmem:[%s181] ss:$16 sm:%s182]
    %vm184 = vcmask 1043458
    %v185 = vsel %vm184, %v183, %v180
    %186 = vrot.lane.b32.xlu0 %v185, 4
    %v187 = vpop.permute.xlu0 %186
    %vm188 = vcmask 64544
    %189 = vst.msk [vmem:[#allocation0] sm:$0xf] %vm188, %v187
    %s191 = sshllo.u32 0, 4
    %v193 = vld [vmem:[#allocation0] sm:%s191]
    %s194 = sshllo.u32 0, 4
    %195 = vst [vmem:[%s1] sm:%s194] %v193

// kernel: resblock_forward.1
$region0: #{resblock_forward.1}
  #allocation0 [shape = 'u32[]', space=smem, size = 0x4, offset = 0x4, fixed_abs, tag = 'smem constant byte address 0x4 - core index']
  #allocation1 [shape = 'u32[144,128]{1,0:T(1,128)}', space=vmem, size = 0x12000, scoped, tag = 'internal scratch']
  #allocation2 [shape = 'f32[2,18,64]{2,1,0:T(8,128)}', space=vmem, size = 0x6000, scoped, tag = 'scratch operand']
  #allocation3 [shape = 'f32[2,18,128]{2,1,0:T(8,128)}', space=vmem, size = 0x6000, scoped, tag = 'scratch operand']
  %s0 = inlined_call_operand.vmem [shape: f32[2,16,64], index: 0, kind: input, shape index: {}]
  %s1 = inlined_call_operand.vmem [shape: f32[3,64,128], index: 1, kind: input, shape index: {}]
  %s2 = inlined_call_operand.vmem [shape: f32[1,8], index: 2, kind: input, shape index: {}]
  %s3 = inlined_call_operand.vmem [shape: f32[1,8], index: 3, kind: input, shape index: {}]
  %s4 = inlined_call_operand.vmem [shape: f32[3,128,64], index: 4, kind: input, shape index: {}]
  %s5 = inlined_call_operand.vmem [shape: f32[1,4], index: 5, kind: input, shape index: {}]
  %s6 = inlined_call_operand.vmem [shape: f32[1,4], index: 6, kind: input, shape index: {}]
  %s7 = inlined_call_operand.vmem [shape: f32[128,8], index: 7, kind: input, shape index: {}]
  %s8 = inlined_call_operand.vmem [shape: f32[8,128], index: 8, kind: input, shape index: {}]
  %s9 = inlined_call_operand.vmem [shape: f32[64,4], index: 9, kind: input, shape index: {}]
  %s10 = inlined_call_operand.vmem [shape: f32[4,64], index: 10, kind: input, shape index: {}]
  %s11 = inlined_call_operand.vmem [shape: f32[2,16,64], index: 11, kind: output, shape index: {}]
  %s12 = sld [smem:[#allocation0]]
  $region54: #{resblock_forward.1} parent=0
    _
  %s14 = ssub.s32 1, %s12
  %s15 = scalar_select 0, %s14, %s12
  // Predicated region
  $region2: #{resblock_forward.1} parent=0 // pred_check
    _
  $region3: #{resblock_forward.1} parent=0 // pred_check_branch
    %17 = sbr.rel (0) target = $region5
  $region4: #{resblock_forward.1} parent=0 // pred_region
    _
  $region5: #{resblock_forward.1} parent=0 // pred_fallthru
    _
  // Predicated region
  $region6: #{resblock_forward.1} parent=0 // pred_check
    _
  $region7: #{resblock_forward.1} parent=0 // pred_check_branch
    %19 = sbr.rel (0) target = $region9
  $region8: #{resblock_forward.1} parent=0 // pred_region
    _
  $region9: #{resblock_forward.1} parent=0 // pred_fallthru
    _
  // Predicated region
  $region10: #{resblock_forward.1} parent=0 // pred_check
    _
  $region11: #{resblock_forward.1} parent=0 // pred_check_branch
    %21 = sbr.rel (0) target = $region13
  $region12: #{resblock_forward.1} parent=0 // pred_region
    _
  $region13: #{resblock_forward.1} parent=0 // pred_fallthru
    _
  // Predicated region
  $region14: #{resblock_forward.1} parent=0 // pred_check
    _
  $region15: #{resblock_forward.1} parent=0 // pred_check_branch
    %23 = sbr.rel (0) target = $region17
  $region16: #{resblock_forward.1} parent=0 // pred_region
    _
  $region17: #{resblock_forward.1} parent=0 // pred_fallthru
    _
  // Predicated region
  $region18: #{resblock_forward.1} parent=0 // pred_check
    _
  $region19: #{resblock_forward.1} parent=0 // pred_check_branch
    %25 = sbr.rel (0) target = $region21
  $region20: #{resblock_forward.1} parent=0 // pred_region
    _
  $region21: #{resblock_forward.1} parent=0 // pred_fallthru
    _
  // Predicated region
  $region22: #{resblock_forward.1} parent=0 // pred_check
    _
  $region23: #{resblock_forward.1} parent=0 // pred_check_branch
    %27 = sbr.rel (0) target = $region25
  $region24: #{resblock_forward.1} parent=0 // pred_region
    _
  $region25: #{resblock_forward.1} parent=0 // pred_fallthru
    _
  // Predicated region
  $region26: #{resblock_forward.1} parent=0 // pred_check
    _
  $region27: #{resblock_forward.1} parent=0 // pred_check_branch
    %29 = sbr.rel (0) target = $region29
  $region28: #{resblock_forward.1} parent=0 // pred_region
    _
  $region29: #{resblock_forward.1} parent=0 // pred_fallthru
    _
  // Predicated region
  $region30: #{resblock_forward.1} parent=0 // pred_check
    _
  $region31: #{resblock_forward.1} parent=0 // pred_check_branch
    %31 = sbr.rel (0) target = $region33
  $region32: #{resblock_forward.1} parent=0 // pred_region
    _
  $region33: #{resblock_forward.1} parent=0 // pred_fallthru
    _
  // Predicated region
  $region34: #{resblock_forward.1} parent=0 // pred_check
    _
  $region35: #{resblock_forward.1} parent=0 // pred_check_branch
    %33 = sbr.rel (0) target = $region37
  $region36: #{resblock_forward.1} parent=0 // pred_region
    _
  $region37: #{resblock_forward.1} parent=0 // pred_fallthru
    _
  // Predicated region
  $region38: #{resblock_forward.1} parent=0 // pred_check
    _
  $region39: #{resblock_forward.1} parent=0 // pred_check_branch
    %35 = sbr.rel (0) target = $region41
  $region40: #{resblock_forward.1} parent=0 // pred_region
    _
  $region41: #{resblock_forward.1} parent=0 // pred_fallthru
    _
  // Predicated region
  $region42: #{resblock_forward.1} parent=0 // pred_check
    _
  $region43: #{resblock_forward.1} parent=0 // pred_check_branch
    %37 = sbr.rel (0) target = $region45
  $region44: #{resblock_forward.1} parent=0 // pred_region
    _
  $region45: #{resblock_forward.1} parent=0 // pred_fallthru
    _
  %vm38 = vcmask 516096
  %39 = vst.msk [vmem:[#allocation2] sm:$0x1] %vm38, 0.0
  %v40 = vld [vmem:[%s0] sm:$0xff]
  %v41 = vld [vmem:[%s0 + $0x8] sm:$0xff]
  %vm42 = vcmask 523264
  %43 = vst.msk [vmem:[#allocation2 + $0x1] sm:$0xff] %vm42, %v40
  %44 = vst.msk [vmem:[#allocation2 + $0x9] sm:$0xff] %vm42, %v41
  %45 = vst.msk [vmem:[#allocation2 + $0x11] sm:$0x1] %vm38, 0.0
  %s46 = scalar_lea.vmem [#allocation2], 24
  %47 = vst.msk [vmem:[%s46] sm:$0x1] %vm38, 0.0
  %s48 = scalar_lea.vmem %s0, 16
  %v49 = vld [vmem:[%s48] sm:$0xff]
  %v50 = vld [vmem:[%s48 + $0x8] sm:$0xff]
  %51 = vst.msk [vmem:[%s46 + $0x1] sm:$0xff] %vm42, %v49
  %52 = vst.msk [vmem:[%s46 + $0x9] sm:$0xff] %vm42, %v50
  %53 = vst.msk [vmem:[%s46 + $0x11] sm:$0x1] %vm38, 0.0
  %v54 = vld [vmem:[#allocation2] sm:$0xff]
  %v55 = vld [vmem:[#allocation2 + $0x8] sm:$0xff]
  %v56 = vld [vmem:[%s1] sm:$0xff]
  %v57 = vld [vmem:[%s1 + $0x8] sm:$0xff]
  %v58 = vld [vmem:[%s1 + $0x10] sm:$0xff]
  %v59 = vld [vmem:[%s1 + $0x18] sm:$0xff]
  %v60 = vld [vmem:[%s1 + $0x20] sm:$0xff]
  %v61 = vld [vmem:[%s1 + $0x28] sm:$0xff]
  %v62 = vld [vmem:[%s1 + $0x30] sm:$0xff]
  %v63 = vld [vmem:[%s1 + $0x38] sm:$0xff]
  %v64 = vld [vmem:[#allocation2 + $0x1] sm:$0xff]
  %v65 = vld [vmem:[#allocation2 + $0x9] sm:$0xff]
  %s66 = scalar_lea.vmem %s1, 64
  %v67 = vld [vmem:[%s66] sm:$0xff]
  %v68 = vld [vmem:[%s66 + $0x8] sm:$0xff]
  %v69 = vld [vmem:[%s66 + $0x10] sm:$0xff]
  %v70 = vld [vmem:[%s66 + $0x18] sm:$0xff]
  %v71 = vld [vmem:[%s66 + $0x20] sm:$0xff]
  %v72 = vld [vmem:[%s66 + $0x28] sm:$0xff]
  %v73 = vld [vmem:[%s66 + $0x30] sm:$0xff]
  %v74 = vld [vmem:[%s66 + $0x38] sm:$0xff]
  %v76 = vsel %vm42, %v64, 0
  %v79 = vsel %vm42, %v65, 0
  %81 = vmatprep.subr.mxu0 0.0
  %82 = vmatpush1.msra.mxu0 %v67
  %83 = vmatprep.subr.mxu0 0.0
  %84 = vmatpush1.msra.mxu0 %v68
  %85 = vmatprep.subr.mxu0 0.0
  %86 = vmatpush1.msra.mxu0 %v69
  %87 = vmatprep.subr.mxu0 0.0
  %88 = vmatpush1.msra.mxu0 %v70
  %89 = vmatprep.subr.mxu0 0.0
  %90 = vmatpush1.msra.mxu0 %v71
  %91 = vmatprep.subr.mxu0 0.0
  %92 = vmatpush1.msra.mxu0 %v72
  %93 = vmatprep.subr.mxu0 0.0
  %94 = vmatpush1.msra.mxu0 %v73
  %95 = vmatprep.subr.mxu0 0.0
  %96 = vmatpush1.msra.mxu0 %v74
  %97 = vmatprep.subr.mxu0 0.0
  %98 = vmatpush1.msra.mxu0 0.0
  %99 = vmatprep.subr.mxu0 0.0
  %100 = vmatpush1.msra.mxu0 0.0
  %101 = vmatprep.subr.mxu0 0.0
  %102 = vmatpush1.msra.mxu0 0.0
  %103 = vmatprep.subr.mxu0 0.0
  %104 = vmatpush1.msra.mxu0 0.0
  %105 = vmatprep.subr.mxu0 0.0
  %106 = vmatpush1.msra.mxu0 0.0
  %107 = vmatprep.subr.mxu0 0.0
  %108 = vmatpush1.msra.mxu0 0.0
  %109 = vmatprep.subr.mxu0 0.0
  %110 = vmatpush1.msra.mxu0 0.0
  %111 = vmatprep.subr.mxu0 0.0
  %112 = vmatpush1.msra.mxu0 0.0
  %113 = vmatprep.subr.mxu0 0.0
  %114 = vmatpush1.msra.mxu0 0.0
  %115 = vmatprep.subr.mxu0 0.0
  %116 = vmatpush1.msra.mxu0 0.0
  %117 = vmatprep.subr.mxu0 0.0
  %118 = vmatpush1.msra.mxu0 0.0
  %119 = vmatprep.subr.mxu0 0.0
  %120 = vmatpush1.msra.mxu0 0.0
  %121 = vmatprep.subr.mxu0 0.0
  %122 = vmatpush1.msra.mxu0 0.0
  %123 = vmatprep.subr.mxu0 0.0
  %124 = vmatpush1.msra.mxu0 0.0
  %125 = vmatprep.subr.mxu0 0.0
  %126 = vmatpush1.msra.mxu0 0.0
  %127 = vmatprep.subr.mxu0 0.0
  %128 = vmatpush1.msra.mxu0 0.0
  %129 = vmatprep.subr.mxu0 0.0
  %130 = vmatpush1.msra.mxu0 0.0
  %131 = vmatprep.subr.mxu0 0.0
  %132 = vmatpush1.msra.mxu0 0.0
  %133 = vmatprep.subr.mxu0 0.0
  %134 = vmatpush1.msra.mxu0 0.0
  %135 = vmatprep.subr.mxu0 0.0
  %136 = vmatpush1.msra.mxu0 0.0
  %137 = vmatprep.subr.mxu0 0.0
  %138 = vmatpush1.msra.mxu0 0.0
  %139 = vmatprep.subr.mxu0 0.0
  %140 = vmatpush1.msra.mxu0 0.0
  %141 = vmatprep.subr.mxu0 0.0
  %142 = vmatpush1.msra.mxu0 0.0
  %143 = vmatprep.subr.mxu0 0.0
  %144 = vmatpush1.msra.mxu0 0.0
  %145 = vmatprep.mubr.f32.mxu0 0.0
  %146 = vmatmul.mubr.f32.gmra.mrb[0].mxu0 %v76
  %v147 = vpop.f32.mrb[0].mxu0
  %v148 = vadd.f32 0.0, %v147
  %v149 = vpop.f32.mrb[0].mxu0
  %150 = vmatprep.mubr.f32.mxu0 0.0
  %151 = vmatmul.mubr.f32.gmra.mrb[0].mxu0 %v79
  %v152 = vpop.f32.mrb[0].mxu0
  %v153 = vadd.f32 0.0, %v152
  %v154 = vpop.f32.mrb[0].mxu0
  %155 = vdwg.mxu0
  %v157 = vsel %vm42, %v54, 0
  %v160 = vsel %vm42, %v55, 0
  %162 = vmatprep.subr.mxu0 0.0
  %163 = vmatpush1.msra.mxu0 %v56
  %164 = vmatprep.subr.mxu0 0.0
  %165 = vmatpush1.msra.mxu0 %v57
  %166 = vmatprep.subr.mxu0 0.0
  %167 = vmatpush1.msra.mxu0 %v58
  %168 = vmatprep.subr.mxu0 0.0
  %169 = vmatpush1.msra.mxu0 %v59
  %170 = vmatprep.subr.mxu0 0.0
  %171 = vmatpush1.msra.mxu0 %v60
  %172 = vmatprep.subr.mxu0 0.0
  %173 = vmatpush1.msra.mxu0 %v61
  %174 = vmatprep.subr.mxu0 0.0
  %175 = vmatpush1.msra.mxu0 %v62
  %176 = vmatprep.subr.mxu0 0.0
  %177 = vmatpush1.msra.mxu0 %v63
  %178 = vmatprep.subr.mxu0 0.0
  %179 = vmatpush1.msra.mxu0 0.0
  %180 = vmatprep.subr.mxu0 0.0
  %181 = vmatpush1.msra.mxu0 0.0
  %182 = vmatprep.subr.mxu0 0.0
  %183 = vmatpush1.msra.mxu0 0.0
  %184 = vmatprep.subr.mxu0 0.0
  %185 = vmatpush1.msra.mxu0 0.0
  %186 = vmatprep.subr.mxu0 0.0
  %187 = vmatpush1.msra.mxu0 0.0
  %188 = vmatprep.subr.mxu0 0.0
  %189 = vmatpush1.msra.mxu0 0.0
  %190 = vmatprep.subr.mxu0 0.0
  %191 = vmatpush1.msra.mxu0 0.0
  %192 = vmatprep.subr.mxu0 0.0
  %193 = vmatpush1.msra.mxu0 0.0
  %194 = vmatprep.subr.mxu0 0.0
  %195 = vmatpush1.msra.mxu0 0.0
  %196 = vmatprep.subr.mxu0 0.0
  %197 = vmatpush1.msra.mxu0 0.0
  %198 = vmatprep.subr.mxu0 0.0
  %199 = vmatpush1.msra.mxu0 0.0
  %200 = vmatprep.subr.mxu0 0.0
  %201 = vmatpush1.msra.mxu0 0.0
  %202 = vmatprep.subr.mxu0 0.0
  %203 = vmatpush1.msra.mxu0 0.0
  %204 = vmatprep.subr.mxu0 0.0
  %205 = vmatpush1.msra.mxu0 0.0
  %206 = vmatprep.subr.mxu0 0.0
  %207 = vmatpush1.msra.mxu0 0.0
  %208 = vmatprep.subr.mxu0 0.0
  %209 = vmatpush1.msra.mxu0 0.0
  %210 = vmatprep.subr.mxu0 0.0
  %211 = vmatpush1.msra.mxu0 0.0
  %212 = vmatprep.subr.mxu0 0.0
  %213 = vmatpush1.msra.mxu0 0.0
  %214 = vmatprep.subr.mxu0 0.0
  %215 = vmatpush1.msra.mxu0 0.0
  %216 = vmatprep.subr.mxu0 0.0
  %217 = vmatpush1.msra.mxu0 0.0
  %218 = vmatprep.subr.mxu0 0.0
  %219 = vmatpush1.msra.mxu0 0.0
  %220 = vmatprep.subr.mxu0 0.0
  %221 = vmatpush1.msra.mxu0 0.0
  %222 = vmatprep.subr.mxu0 0.0
  %223 = vmatpush1.msra.mxu0 0.0
  %224 = vmatprep.subr.mxu0 0.0
  %225 = vmatpush1.msra.mxu0 0.0
  %226 = vmatprep.mubr.f32.mxu0 0.0
  %227 = vmatmul.mubr.f32.gmra.mrb[0].mxu0 %v157
  %v228 = vpop.f32.mrb[0].mxu0
  %v229 = vadd.f32 %v148, %v228
  %v230 = vpop.f32.mrb[0].mxu0
  %231 = vmatprep.mubr.f32.mxu0 0.0
  %232 = vmatmul.mubr.f32.gmra.mrb[0].mxu0 %v160
  %v233 = vpop.f32.mrb[0].mxu0
  %v234 = vadd.f32 %v153, %v233
  %v235 = vpop.f32.mrb[0].mxu0
  %236 = vdwg.mxu0
  %v237 = vld [vmem:[#allocation2 + $0x2] sm:$0xff]
  %v238 = vld [vmem:[#allocation2 + $0xa] sm:$0xff]
  %s239 = scalar_lea.vmem %s1, 128
  %v240 = vld [vmem:[%s239] sm:$0xff]
  %v241 = vld [vmem:[%s239 + $0x8] sm:$0xff]
  %v242 = vld [vmem:[%s239 + $0x10] sm:$0xff]
  %v243 = vld [vmem:[%s239 + $0x18] sm:$0xff]
  %v244 = vld [vmem:[%s239 + $0x20] sm:$0xff]
  %v245 = vld [vmem:[%s239 + $0x28] sm:$0xff]
  %v246 = vld [vmem:[%s239 + $0x30] sm:$0xff]
  %v247 = vld [vmem:[%s239 + $0x38] sm:$0xff]
  %v249 = vsel %vm42, %v237, 0
  %v252 = vsel %vm42, %v238, 0
  %254 = vmatprep.subr.mxu0 0.0
  %255 = vmatpush1.msra.mxu0 %v240
  %256 = vmatprep.subr.mxu0 0.0
  %257 = vmatpush1.msra.mxu0 %v241
  %258 = vmatprep.subr.mxu0 0.0
  %259 = vmatpush1.msra.mxu0 %v242
  %260 = vmatprep.subr.mxu0 0.0
  %261 = vmatpush1.msra.mxu0 %v243
  %262 = vmatprep.subr.mxu0 0.0
  %263 = vmatpush1.msra.mxu0 %v244
  %264 = vmatprep.subr.mxu0 0.0
  %265 = vmatpush1.msra.mxu0 %v245
  %266 = vmatprep.subr.mxu0 0.0
  %267 = vmatpush1.msra.mxu0 %v246
  %268 = vmatprep.subr.mxu0 0.0
  %269 = vmatpush1.msra.mxu0 %v247
  %270 = vmatprep.subr.mxu0 0.0
  %271 = vmatpush1.msra.mxu0 0.0
  %272 = vmatprep.subr.mxu0 0.0
  %273 = vmatpush1.msra.mxu0 0.0
  %274 = vmatprep.subr.mxu0 0.0
  %275 = vmatpush1.msra.mxu0 0.0
  %276 = vmatprep.subr.mxu0 0.0
  %277 = vmatpush1.msra.mxu0 0.0
  %278 = vmatprep.subr.mxu0 0.0
  %279 = vmatpush1.msra.mxu0 0.0
  %280 = vmatprep.subr.mxu0 0.0
  %281 = vmatpush1.msra.mxu0 0.0
  %282 = vmatprep.subr.mxu0 0.0
  %283 = vmatpush1.msra.mxu0 0.0
  %284 = vmatprep.subr.mxu0 0.0
  %285 = vmatpush1.msra.mxu0 0.0
  %286 = vmatprep.subr.mxu0 0.0
  %287 = vmatpush1.msra.mxu0 0.0
  %288 = vmatprep.subr.mxu0 0.0
  %289 = vmatpush1.msra.mxu0 0.0
  %290 = vmatprep.subr.mxu0 0.0
  %291 = vmatpush1.msra.mxu0 0.0
  %292 = vmatprep.subr.mxu0 0.0
  %293 = vmatpush1.msra.mxu0 0.0
  %294 = vmatprep.subr.mxu0 0.0
  %295 = vmatpush1.msra.mxu0 0.0
  %296 = vmatprep.subr.mxu0 0.0
  %297 = vmatpush1.msra.mxu0 0.0
  %298 = vmatprep.subr.mxu0 0.0
  %299 = vmatpush1.msra.mxu0 0.0
  %300 = vmatprep.subr.mxu0 0.0
  %301 = vmatpush1.msra.mxu0 0.0
  %302 = vmatprep.subr.mxu0 0.0
  %303 = vmatpush1.msra.mxu0 0.0
  %304 = vmatprep.subr.mxu0 0.0
  %305 = vmatpush1.msra.mxu0 0.0
  %306 = vmatprep.subr.mxu0 0.0
  %307 = vmatpush1.msra.mxu0 0.0
  %308 = vmatprep.subr.mxu0 0.0
  %309 = vmatpush1.msra.mxu0 0.0
  %310 = vmatprep.subr.mxu0 0.0
  %311 = vmatpush1.msra.mxu0 0.0
  %312 = vmatprep.subr.mxu0 0.0
  %313 = vmatpush1.msra.mxu0 0.0
  %314 = vmatprep.subr.mxu0 0.0
  %315 = vmatpush1.msra.mxu0 0.0
  %316 = vmatprep.subr.mxu0 0.0
  %317 = vmatpush1.msra.mxu0 0.0
  %318 = vmatprep.mubr.f32.mxu0 0.0
  %319 = vmatmul.mubr.f32.gmra.mrb[0].mxu0 %v249
  %v320 = vpop.f32.mrb[0].mxu0
  %v321 = vadd.f32 0.0, %v320
  %v322 = vpop.f32.mrb[0].mxu0
  %323 = vmatprep.mubr.f32.mxu0 0.0
  %324 = vmatmul.mubr.f32.gmra.mrb[0].mxu0 %v252
  %v325 = vpop.f32.mrb[0].mxu0
  %v326 = vadd.f32 0.0, %v325
  %v327 = vpop.f32.mrb[0].mxu0
  %328 = vdwg.mxu0
  %v329 = vadd.f32 %v229, %v321
  %v330 = vadd.f32 %v234, %v326
  %331 = vst [vmem:[#allocation3] sm:$0x1] 0.0
  %332 = vst [vmem:[#allocation3 + $0x1] sm:$0xff] %v329
  %333 = vst [vmem:[#allocation3 + $0x9] sm:$0xff] %v330
  %334 = vst [vmem:[#allocation3 + $0x11] sm:$0x1] 0.0
  %v335 = vadd.f32 %v329, %v330
  %v336 = vrot.slane %v335, 4
  %v337 = vadd.f32 %v335, %v336
  %v338 = vrot.slane %v337, 2
  %v339 = vadd.f32 %v337, %v338
  %v340 = vrot.slane %v339, 1
  %v341 = vadd.f32 %v339, %v340
  %v342 = vadd.f32 %v341, 0.0
  %v343 = vmul.f32 %v329, %v329
  %v344 = vmul.f32 %v330, %v330
  %v345 = vadd.f32 %v343, %v344
  %v346 = vrot.slane %v345, 4
  %v347 = vadd.f32 %v345, %v346
  %v348 = vrot.slane %v347, 2
  %v349 = vadd.f32 %v347, %v348
  %v350 = vrot.slane %v349, 1
  %v351 = vadd.f32 %v349, %v350
  %v352 = vadd.f32 %v351, 0.0
  %v353 = vld [vmem:[%s46] sm:$0xff]
  %v354 = vld [vmem:[%s46 + $0x8] sm:$0xff]
  %v355 = vld [vmem:[%s1] sm:$0xff]
  %v356 = vld [vmem:[%s1 + $0x8] sm:$0xff]
  %v357 = vld [vmem:[%s1 + $0x10] sm:$0xff]
  %v358 = vld [vmem:[%s1 + $0x18] sm:$0xff]
  %v359 = vld [vmem:[%s1 + $0x20] sm:$0xff]
  %v360 = vld [vmem:[%s1 + $0x28] sm:$0xff]
  %v361 = vld [vmem:[%s1 + $0x30] sm:$0xff]
  %v362 = vld [vmem:[%s1 + $0x38] sm:$0xff]
  %v363 = vld [vmem:[%s46 + $0x1] sm:$0xff]
  %v364 = vld [vmem:[%s46 + $0x9] sm:$0xff]
  %v365 = vld [vmem:[%s66] sm:$0xff]
  %v366 = vld [vmem:[%s66 + $0x8] sm:$0xff]
  %v367 = vld [vmem:[%s66 + $0x10] sm:$0xff]
  %v368 = vld [vmem:[%s66 + $0x18] sm:$0xff]
  %v369 = vld [vmem:[%s66 + $0x20] sm:$0xff]
  %v370 = vld [vmem:[%s66 + $0x28] sm:$0xff]
  %v371 = vld [vmem:[%s66 + $0x30] sm:$0xff]
  %v372 = vld [vmem:[%s66 + $0x38] sm:$0xff]
  %v374 = vsel %vm42, %v363, 0
  %v377 = vsel %vm42, %v364, 0
  %379 = vmatprep.subr.mxu0 0.0
  %380 = vmatpush1.msra.mxu0 %v365
  %381 = vmatprep.subr.mxu0 0.0
  %382 = vmatpush1.msra.mxu0 %v366
  %383 = vmatprep.subr.mxu0 0.0
  %384 = vmatpush1.msra.mxu0 %v367
  %385 = vmatprep.subr.mxu0 0.0
  %386 = vmatpush1.msra.mxu0 %v368
  %387 = vmatprep.subr.mxu0 0.0
  %388 = vmatpush1.msra.mxu0 %v369
  %389 = vmatprep.subr.mxu0 0.0
  %390 = vmatpush1.msra.mxu0 %v370
  %391 = vmatprep.subr.mxu0 0.0
  %392 = vmatpush1.msra.mxu0 %v371
  %393 = vmatprep.subr.mxu0 0.0
  %394 = vmatpush1.msra.mxu0 %v372
  %395 = vmatprep.subr.mxu0 0.0
  %396 = vmatpush1.msra.mxu0 0.0
  %397 = vmatprep.subr.mxu0 0.0
  %398 = vmatpush1.msra.mxu0 0.0
  %399 = vmatprep.subr.mxu0 0.0
  %400 = vmatpush1.msra.mxu0 0.0
  %401 = vmatprep.subr.mxu0 0.0
  %402 = vmatpush1.msra.mxu0 0.0
  %403 = vmatprep.subr.mxu0 0.0
  %404 = vmatpush1.msra.mxu0 0.0
  %405 = vmatprep.subr.mxu0 0.0
  %406 = vmatpush1.msra.mxu0 0.0
  %407 = vmatprep.subr.mxu0 0.0
  %408 = vmatpush1.msra.mxu0 0.0
  %409 = vmatprep.subr.mxu0 0.0
  %410 = vmatpush1.msra.mxu0 0.0
  %411 = vmatprep.subr.mxu0 0.0
  %412 = vmatpush1.msra.mxu0 0.0
  %413 = vmatprep.subr.mxu0 0.0
  %414 = vmatpush1.msra.mxu0 0.0
  %415 = vmatprep.subr.mxu0 0.0
  %416 = vmatpush1.msra.mxu0 0.0
  %417 = vmatprep.subr.mxu0 0.0
  %418 = vmatpush1.msra.mxu0 0.0
  %419 = vmatprep.subr.mxu0 0.0
  %420 = vmatpush1.msra.mxu0 0.0
  %421 = vmatprep.subr.mxu0 0.0
  %422 = vmatpush1.msra.mxu0 0.0
  %423 = vmatprep.subr.mxu0 0.0
  %424 = vmatpush1.msra.mxu0 0.0
  %425 = vmatprep.subr.mxu0 0.0
  %426 = vmatpush1.msra.mxu0 0.0
  %427 = vmatprep.subr.mxu0 0.0
  %428 = vmatpush1.msra.mxu0 0.0
  %429 = vmatprep.subr.mxu0 0.0
  %430 = vmatpush1.msra.mxu0 0.0
  %431 = vmatprep.subr.mxu0 0.0
  %432 = vmatpush1.msra.mxu0 0.0
  %433 = vmatprep.subr.mxu0 0.0
  %434 = vmatpush1.msra.mxu0 0.0
  %435 = vmatprep.subr.mxu0 0.0
  %436 = vmatpush1.msra.mxu0 0.0
  %437 = vmatprep.subr.mxu0 0.0
  %438 = vmatpush1.msra.mxu0 0.0
  %439 = vmatprep.subr.mxu0 0.0
  %440 = vmatpush1.msra.mxu0 0.0
  %441 = vmatprep.subr.mxu0 0.0
  %442 = vmatpush1.msra.mxu0 0.0
  %443 = vmatprep.mubr.f32.mxu0 0.0
  %444 = vmatmul.mubr.f32.gmra.mrb[0].mxu0 %v374
  %v445 = vpop.f32.mrb[0].mxu0
  %v446 = vadd.f32 0.0, %v445
  %v447 = vpop.f32.mrb[0].mxu0
  %448 = vmatprep.mubr.f32.mxu0 0.0
  %449 = vmatmul.mubr.f32.gmra.mrb[0].mxu0 %v377
  %v450 = vpop.f32.mrb[0].mxu0
  %v451 = vadd.f32 0.0, %v450
  %v452 = vpop.f32.mrb[0].mxu0
  %453 = vdwg.mxu0
  %v455 = vsel %vm42, %v353, 0
  %v458 = vsel %vm42, %v354, 0
  %460 = vmatprep.subr.mxu0 0.0
  %461 = vmatpush1.msra.mxu0 %v355
  %462 = vmatprep.subr.mxu0 0.0
  %463 = vmatpush1.msra.mxu0 %v356
  %464 = vmatprep.subr.mxu0 0.0
  %465 = vmatpush1.msra.mxu0 %v357
  %466 = vmatprep.subr.mxu0 0.0
  %467 = vmatpush1.msra.mxu0 %v358
  %468 = vmatprep.subr.mxu0 0.0
  %469 = vmatpush1.msra.mxu0 %v359
  %470 = vmatprep.subr.mxu0 0.0
  %471 = vmatpush1.msra.mxu0 %v360
  %472 = vmatprep.subr.mxu0 0.0
  %473 = vmatpush1.msra.mxu0 %v361
  %474 = vmatprep.subr.mxu0 0.0
  %475 = vmatpush1.msra.mxu0 %v362
  %476 = vmatprep.subr.mxu0 0.0
  %477 = vmatpush1.msra.mxu0 0.0
  %478 = vmatprep.subr.mxu0 0.0
  %479 = vmatpush1.msra.mxu0 0.0
  %480 = vmatprep.subr.mxu0 0.0
  %481 = vmatpush1.msra.mxu0 0.0
  %482 = vmatprep.subr.mxu0 0.0
  %483 = vmatpush1.msra.mxu0 0.0
  %484 = vmatprep.subr.mxu0 0.0
  %485 = vmatpush1.msra.mxu0 0.0
  %486 = vmatprep.subr.mxu0 0.0
  %487 = vmatpush1.msra.mxu0 0.0
  %488 = vmatprep.subr.mxu0 0.0
  %489 = vmatpush1.msra.mxu0 0.0
  %490 = vmatprep.subr.mxu0 0.0
  %491 = vmatpush1.msra.mxu0 0.0
  %492 = vmatprep.subr.mxu0 0.0
  %493 = vmatpush1.msra.mxu0 0.0
  %494 = vmatprep.subr.mxu0 0.0
  %495 = vmatpush1.msra.mxu0 0.0
  %496 = vmatprep.subr.mxu0 0.0
  %497 = vmatpush1.msra.mxu0 0.0
  %498 = vmatprep.subr.mxu0 0.0
  %499 = vmatpush1.msra.mxu0 0.0
  %500 = vmatprep.subr.mxu0 0.0
  %501 = vmatpush1.msra.mxu0 0.0
  %502 = vmatprep.subr.mxu0 0.0
  %503 = vmatpush1.msra.mxu0 0.0
  %504 = vmatprep.subr.mxu0 0.0
  %505 = vmatpush1.msra.mxu0 0.0
  %506 = vmatprep.subr.mxu0 0.0
  %507 = vmatpush1.msra.mxu0 0.0
  %508 = vmatprep.subr.mxu0 0.0
  %509 = vmatpush1.msra.mxu0 0.0
  %510 = vmatprep.subr.mxu0 0.0
  %511 = vmatpush1.msra.mxu0 0.0
  %512 = vmatprep.subr.mxu0 0.0
  %513 = vmatpush1.msra.mxu0 0.0
  %514 = vmatprep.subr.mxu0 0.0
  %515 = vmatpush1.msra.mxu0 0.0
  %516 = vmatprep.subr.mxu0 0.0
  %517 = vmatpush1.msra.mxu0 0.0
  %518 = vmatprep.subr.mxu0 0.0
  %519 = vmatpush1.msra.mxu0 0.0
  %520 = vmatprep.subr.mxu0 0.0
  %521 = vmatpush1.msra.mxu0 0.0
  %522 = vmatprep.subr.mxu0 0.0
  %523 = vmatpush1.msra.mxu0 0.0
  %524 = vmatprep.mubr.f32.mxu0 0.0
  %525 = vmatmul.mubr.f32.gmra.mrb[0].mxu0 %v455
  %v526 = vpop.f32.mrb[0].mxu0
  %v527 = vadd.f32 %v446, %v526
  %v528 = vpop.f32.mrb[0].mxu0
  %529 = vmatprep.mubr.f32.mxu0 0.0
  %530 = vmatmul.mubr.f32.gmra.mrb[0].mxu0 %v458
  %v531 = vpop.f32.mrb[0].mxu0
  %v532 = vadd.f32 %v451, %v531
  %v533 = vpop.f32.mrb[0].mxu0
  %534 = vdwg.mxu0
  %v535 = vld [vmem:[%s46 + $0x2] sm:$0xff]
  %v536 = vld [vmem:[%s46 + $0xa] sm:$0xff]
  %v537 = vld [vmem:[%s239] sm:$0xff]
  %v538 = vld [vmem:[%s239 + $0x8] sm:$0xff]
  %v539 = vld [vmem:[%s239 + $0x10] sm:$0xff]
  %v540 = vld [vmem:[%s239 + $0x18] sm:$0xff]
  %v541 = vld [vmem:[%s239 + $0x20] sm:$0xff]
  %v542 = vld [vmem:[%s239 + $0x28] sm:$0xff]
  %v543 = vld [vmem:[%s239 + $0x30] sm:$0xff]
  %v544 = vld [vmem:[%s239 + $0x38] sm:$0xff]
  %v546 = vsel %vm42, %v535, 0
  %v549 = vsel %vm42, %v536, 0
  %551 = vmatprep.subr.mxu0 0.0
  %552 = vmatpush1.msra.mxu0 %v537
  %553 = vmatprep.subr.mxu0 0.0
  %554 = vmatpush1.msra.mxu0 %v538
  %555 = vmatprep.subr.mxu0 0.0
  %556 = vmatpush1.msra.mxu0 %v539
  %557 = vmatprep.subr.mxu0 0.0
  %558 = vmatpush1.msra.mxu0 %v540
  %559 = vmatprep.subr.mxu0 0.0
  %560 = vmatpush1.msra.mxu0 %v541
  %561 = vmatprep.subr.mxu0 0.0
  %562 = vmatpush1.msra.mxu0 %v542
  %563 = vmatprep.subr.mxu0 0.0
  %564 = vmatpush1.msra.mxu0 %v543
  %565 = vmatprep.subr.mxu0 0.0
  %566 = vmatpush1.msra.mxu0 %v544
  %567 = vmatprep.subr.mxu0 0.0
  %568 = vmatpush1.msra.mxu0 0.0
  %569 = vmatprep.subr.mxu0 0.0
  %570 = vmatpush1.msra.mxu0 0.0
  %571 = vmatprep.subr.mxu0 0.0
  %572 = vmatpush1.msra.mxu0 0.0
  %573 = vmatprep.subr.mxu0 0.0
  %574 = vmatpush1.msra.mxu0 0.0
  %575 = vmatprep.subr.mxu0 0.0
  %576 = vmatpush1.msra.mxu0 0.0
  %577 = vmatprep.subr.mxu0 0.0
  %578 = vmatpush1.msra.mxu0 0.0
  %579 = vmatprep.subr.mxu0 0.0
  %580 = vmatpush1.msra.mxu0 0.0
  %581 = vmatprep.subr.mxu0 0.0
  %582 = vmatpush1.msra.mxu0 0.0
  %583 = vmatprep.subr.mxu0 0.0
  %584 = vmatpush1.msra.mxu0 0.0
  %585 = vmatprep.subr.mxu0 0.0
  %586 = vmatpush1.msra.mxu0 0.0
  %587 = vmatprep.subr.mxu0 0.0
  %588 = vmatpush1.msra.mxu0 0.0
  %589 = vmatprep.subr.mxu0 0.0
  %590 = vmatpush1.msra.mxu0 0.0
  %591 = vmatprep.subr.mxu0 0.0
  %592 = vmatpush1.msra.mxu0 0.0
  %593 = vmatprep.subr.mxu0 0.0
  %594 = vmatpush1.msra.mxu0 0.0
  %595 = vmatprep.subr.mxu0 0.0
  %596 = vmatpush1.msra.mxu0 0.0
  %597 = vmatprep.subr.mxu0 0.0
  %598 = vmatpush1.msra.mxu0 0.0
  %599 = vmatprep.subr.mxu0 0.0
  %600 = vmatpush1.msra.mxu0 0.0
  %601 = vmatprep.subr.mxu0 0.0
  %602 = vmatpush1.msra.mxu0 0.0
  %603 = vmatprep.subr.mxu0 0.0
  %604 = vmatpush1.msra.mxu0 0.0
  %605 = vmatprep.subr.mxu0 0.0
  %606 = vmatpush1.msra.mxu0 0.0
  %607 = vmatprep.subr.mxu0 0.0
  %608 = vmatpush1.msra.mxu0 0.0
  %609 = vmatprep.subr.mxu0 0.0
  %610 = vmatpush1.msra.mxu0 0.0
  %611 = vmatprep.subr.mxu0 0.0
  %612 = vmatpush1.msra.mxu0 0.0
  %613 = vmatprep.subr.mxu0 0.0
  %614 = vmatpush1.msra.mxu0 0.0
  %615 = vmatprep.mubr.f32.mxu0 0.0
  %616 = vmatmul.mubr.f32.gmra.mrb[0].mxu0 %v546
  %v617 = vpop.f32.mrb[0].mxu0
  %v618 = vadd.f32 0.0, %v617
  %v619 = vpop.f32.mrb[0].mxu0
  %620 = vmatprep.mubr.f32.mxu0 0.0
  %621 = vmatmul.mubr.f32.gmra.mrb[0].mxu0 %v549
  %v622 = vpop.f32.mrb[0].mxu0
  %v623 = vadd.f32 0.0, %v622
  %v624 = vpop.f32.mrb[0].mxu0
  %625 = vdwg.mxu0
  %v626 = vadd.f32 %v527, %v618
  %v627 = vadd.f32 %v532, %v623
  %s628 = scalar_lea.vmem [#allocation3], 24
  %629 = vst [vmem:[%s628] sm:$0x1] 0.0
  %630 = vst [vmem:[%s628 + $0x1] sm:$0xff] %v626
  %631 = vst [vmem:[%s628 + $0x9] sm:$0xff] %v627
  %632 = vst [vmem:[%s628 + $0x11] sm:$0x1] 0.0
  %v633 = vadd.f32 %v626, %v627
  %v634 = vrot.slane %v633, 4
  %v635 = vadd.f32 %v633, %v634
  %v636 = vrot.slane %v635, 2
  %v637 = vadd.f32 %v635, %v636
  %v638 = vrot.slane %v637, 1
  %v639 = vadd.f32 %v637, %v638
  %v640 = vadd.f32 %v342, %v639
  %v641 = vmul.f32 %v626, %v626
  %v642 = vmul.f32 %v627, %v627
  %v643 = vadd.f32 %v641, %v642
  %v644 = vrot.slane %v643, 4
  %v645 = vadd.f32 %v643, %v644
  %v646 = vrot.slane %v645, 2
  %v647 = vadd.f32 %v645, %v646
  %v648 = vrot.slane %v647, 1
  %v649 = vadd.f32 %v647, %v648
  %v650 = vadd.f32 %v352, %v649
  %v651 = vld [vmem:[%s7] sm:$0xff]
  %v652 = vld [vmem:[%s7 + $0x8] sm:$0xff]
  %v653 = vld [vmem:[%s7 + $0x10] sm:$0xff]
  %v654 = vld [vmem:[%s7 + $0x18] sm:$0xff]
  %v655 = vld [vmem:[%s7 + $0x20] sm:$0xff]
  %v656 = vld [vmem:[%s7 + $0x28] sm:$0xff]
  %v657 = vld [vmem:[%s7 + $0x30] sm:$0xff]
  %v658 = vld [vmem:[%s7 + $0x38] sm:$0xff]
  %v659 = vld [vmem:[%s7 + $0x40] sm:$0xff]
  %v660 = vld [vmem:[%s7 + $0x48] sm:$0xff]
  %v661 = vld [vmem:[%s7 + $0x50] sm:$0xff]
  %v662 = vld [vmem:[%s7 + $0x58] sm:$0xff]
  %v663 = vld [vmem:[%s7 + $0x60] sm:$0xff]
  %v664 = vld [vmem:[%s7 + $0x68] sm:$0xff]
  %v665 = vld [vmem:[%s7 + $0x70] sm:$0xff]
  %v666 = vld [vmem:[%s7 + $0x78] sm:$0xff]
  %667 = vmatprep.subr.mxu0 0.0
  %668 = vmatpush1.msra.mxu0 %v651
  %669 = vmatprep.subr.mxu0 0.0
  %670 = vmatpush1.msra.mxu0 %v652
  %671 = vmatprep.subr.mxu0 0.0
  %672 = vmatpush1.msra.mxu0 %v653
  %673 = vmatprep.subr.mxu0 0.0
  %674 = vmatpush1.msra.mxu0 %v654
  %675 = vmatprep.subr.mxu0 0.0
  %676 = vmatpush1.msra.mxu0 %v655
  %677 = vmatprep.subr.mxu0 0.0
  %678 = vmatpush1.msra.mxu0 %v656
  %679 = vmatprep.subr.mxu0 0.0
  %680 = vmatpush1.msra.mxu0 %v657
  %681 = vmatprep.subr.mxu0 0.0
  %682 = vmatpush1.msra.mxu0 %v658
  %683 = vmatprep.subr.mxu0 0.0
  %684 = vmatpush1.msra.mxu0 %v659
  %685 = vmatprep.subr.mxu0 0.0
  %686 = vmatpush1.msra.mxu0 %v660
  %687 = vmatprep.subr.mxu0 0.0
  %688 = vmatpush1.msra.mxu0 %v661
  %689 = vmatprep.subr.mxu0 0.0
  %690 = vmatpush1.msra.mxu0 %v662
  %691 = vmatprep.subr.mxu0 0.0
  %692 = vmatpush1.msra.mxu0 %v663
  %693 = vmatprep.subr.mxu0 0.0
  %694 = vmatpush1.msra.mxu0 %v664
  %695 = vmatprep.subr.mxu0 0.0
  %696 = vmatpush1.msra.mxu0 %v665
  %697 = vmatprep.subr.mxu0 0.0
  %698 = vmatpush1.msra.mxu0 %v666
  %699 = vmatprep.subr.mxu0 0.0
  %700 = vmatpush1.msra.mxu0 0.0
  %701 = vmatprep.subr.mxu0 0.0
  %702 = vmatpush1.msra.mxu0 0.0
  %703 = vmatprep.subr.mxu0 0.0
  %704 = vmatpush1.msra.mxu0 0.0
  %705 = vmatprep.subr.mxu0 0.0
  %706 = vmatpush1.msra.mxu0 0.0
  %707 = vmatprep.subr.mxu0 0.0
  %708 = vmatpush1.msra.mxu0 0.0
  %709 = vmatprep.subr.mxu0 0.0
  %710 = vmatpush1.msra.mxu0 0.0
  %711 = vmatprep.subr.mxu0 0.0
  %712 = vmatpush1.msra.mxu0 0.0
  %713 = vmatprep.subr.mxu0 0.0
  %714 = vmatpush1.msra.mxu0 0.0
  %715 = vmatprep.subr.mxu0 0.0
  %716 = vmatpush1.msra.mxu0 0.0
  %717 = vmatprep.subr.mxu0 0.0
  %718 = vmatpush1.msra.mxu0 0.0
  %719 = vmatprep.subr.mxu0 0.0
  %720 = vmatpush1.msra.mxu0 0.0
  %721 = vmatprep.subr.mxu0 0.0
  %722 = vmatpush1.msra.mxu0 0.0
  %723 = vmatprep.subr.mxu0 0.0
  %724 = vmatpush1.msra.mxu0 0.0
  %725 = vmatprep.subr.mxu0 0.0
  %726 = vmatpush1.msra.mxu0 0.0
  %727 = vmatprep.subr.mxu0 0.0
  %728 = vmatpush1.msra.mxu0 0.0
  %729 = vmatprep.subr.mxu0 0.0
  %730 = vmatpush1.msra.mxu0 0.0
  %731 = vmatprep.mubr.f32.mxu0 0.0
  %732 = vmatmul.mubr.f32.gmra.mrb[0].mxu0 %v640
  %v733 = vpop.f32.mrb[0].mxu0
  %v734 = vadd.f32 0.0, %v733
  %v735 = vpop.f32.mrb[0].mxu0
  %736 = vdwg.mxu0
  %737 = vmatprep.subr.mxu0 0.0
  %738 = vmatpush1.msra.mxu0 %v651
  %739 = vmatprep.subr.mxu0 0.0
  %740 = vmatpush1.msra.mxu0 %v652
  %741 = vmatprep.subr.mxu0 0.0
  %742 = vmatpush1.msra.mxu0 %v653
  %743 = vmatprep.subr.mxu0 0.0
  %744 = vmatpush1.msra.mxu0 %v654
  %745 = vmatprep.subr.mxu0 0.0
  %746 = vmatpush1.msra.mxu0 %v655
  %747 = vmatprep.subr.mxu0 0.0
  %748 = vmatpush1.msra.mxu0 %v656
  %749 = vmatprep.subr.mxu0 0.0
  %750 = vmatpush1.msra.mxu0 %v657
  %751 = vmatprep.subr.mxu0 0.0
  %752 = vmatpush1.msra.mxu0 %v658
  %753 = vmatprep.subr.mxu0 0.0
  %754 = vmatpush1.msra.mxu0 %v659
  %755 = vmatprep.subr.mxu0 0.0
  %756 = vmatpush1.msra.mxu0 %v660
  %757 = vmatprep.subr.mxu0 0.0
  %758 = vmatpush1.msra.mxu0 %v661
  %759 = vmatprep.subr.mxu0 0.0
  %760 = vmatpush1.msra.mxu0 %v662
  %761 = vmatprep.subr.mxu0 0.0
  %762 = vmatpush1.msra.mxu0 %v663
  %763 = vmatprep.subr.mxu0 0.0
  %764 = vmatpush1.msra.mxu0 %v664
  %765 = vmatprep.subr.mxu0 0.0
  %766 = vmatpush1.msra.mxu0 %v665
  %767 = vmatprep.subr.mxu0 0.0
  %768 = vmatpush1.msra.mxu0 %v666
  %769 = vmatprep.subr.mxu0 0.0
  %770 = vmatpush1.msra.mxu0 0.0
  %771 = vmatprep.subr.mxu0 0.0
  %772 = vmatpush1.msra.mxu0 0.0
  %773 = vmatprep.subr.mxu0 0.0
  %774 = vmatpush1.msra.mxu0 0.0
  %775 = vmatprep.subr.mxu0 0.0
  %776 = vmatpush1.msra.mxu0 0.0
  %777 = vmatprep.subr.mxu0 0.0
  %778 = vmatpush1.msra.mxu0 0.0
  %779 = vmatprep.subr.mxu0 0.0
  %780 = vmatpush1.msra.mxu0 0.0
  %781 = vmatprep.subr.mxu0 0.0
  %782 = vmatpush1.msra.mxu0 0.0
  %783 = vmatprep.subr.mxu0 0.0
  %784 = vmatpush1.msra.mxu0 0.0
  %785 = vmatprep.subr.mxu0 0.0
  %786 = vmatpush1.msra.mxu0 0.0
  %787 = vmatprep.subr.mxu0 0.0
  %788 = vmatpush1.msra.mxu0 0.0
  %789 = vmatprep.subr.mxu0 0.0
  %790 = vmatpush1.msra.mxu0 0.0
  %791 = vmatprep.subr.mxu0 0.0
  %792 = vmatpush1.msra.mxu0 0.0
  %793 = vmatprep.subr.mxu0 0.0
  %794 = vmatpush1.msra.mxu0 0.0
  %795 = vmatprep.subr.mxu0 0.0
  %796 = vmatpush1.msra.mxu0 0.0
  %797 = vmatprep.subr.mxu0 0.0
  %798 = vmatpush1.msra.mxu0 0.0
  %799 = vmatprep.subr.mxu0 0.0
  %800 = vmatpush1.msra.mxu0 0.0
  %801 = vmatprep.mubr.f32.mxu0 0.0
  %802 = vmatmul.mubr.f32.gmra.mrb[0].mxu0 %v650
  %v803 = vpop.f32.mrb[0].mxu0
  %v804 = vadd.f32 0.0, %v803
  %v805 = vpop.f32.mrb[0].mxu0
  %806 = vdwg.mxu0
  %v807 = vrcp.pop 512.0
  %v808 = vmul.f32 %v734, %v807
  %v809 = vmul.f32 %v804, %v807
  %v810 = vmul.f32 %v808, %v808
  %v811 = vsub.f32 %v809, %v810
  %v812 = vld [vmem:[%s2] sm:$0x1]
  %v813 = vadd.f32 %v811, 1e-05
  %v814 = vrsqrt.pop %v813
  %v815 = vmul.f32 %v812, %v814
  %v816 = vld [vmem:[%s3] sm:$0x1]
  %v817 = vmul.f32 %v808, %v815
  %v818 = vsub.f32 %v816, %v817
  %v819 = vld [vmem:[%s8] sm:$0xff]
  %vm820 = vcmask 64512
  %v822 = vsel %vm820, %v815, 0
  %824 = vmatprep.subr.mxu0 0.0
  %825 = vmatpush1.msra.mxu0 %v819
  %826 = vmatprep.subr.mxu0 0.0
  %827 = vmatpush1.msra.mxu0 0.0
  %828 = vmatprep.subr.mxu0 0.0
  %829 = vmatpush1.msra.mxu0 0.0
  %830 = vmatprep.subr.mxu0 0.0
  %831 = vmatpush1.msra.mxu0 0.0
  %832 = vmatprep.subr.mxu0 0.0
  %833 = vmatpush1.msra.mxu0 0.0
  %834 = vmatprep.subr.mxu0 0.0
  %835 = vmatpush1.msra.mxu0 0.0
  %836 = vmatprep.subr.mxu0 0.0
  %837 = vmatpush1.msra.mxu0 0.0
  %838 = vmatprep.subr.mxu0 0.0
  %839 = vmatpush1.msra.mxu0 0.0
  %840 = vmatprep.subr.mxu0 0.0
  %841 = vmatpush1.msra.mxu0 0.0
  %842 = vmatprep.subr.mxu0 0.0
  %843 = vmatpush1.msra.mxu0 0.0
  %844 = vmatprep.subr.mxu0 0.0
  %845 = vmatpush1.msra.mxu0 0.0
  %846 = vmatprep.subr.mxu0 0.0
  %847 = vmatpush1.msra.mxu0 0.0
  %848 = vmatprep.subr.mxu0 0.0
  %849 = vmatpush1.msra.mxu0 0.0
  %850 = vmatprep.subr.mxu0 0.0
  %851 = vmatpush1.msra.mxu0 0.0
  %852 = vmatprep.subr.mxu0 0.0
  %853 = vmatpush1.msra.mxu0 0.0
  %854 = vmatprep.subr.mxu0 0.0
  %855 = vmatpush1.msra.mxu0 0.0
  %856 = vmatprep.subr.mxu0 0.0
  %857 = vmatpush1.msra.mxu0 0.0
  %858 = vmatprep.subr.mxu0 0.0
  %859 = vmatpush1.msra.mxu0 0.0
  %860 = vmatprep.subr.mxu0 0.0
  %861 = vmatpush1.msra.mxu0 0.0
  %862 = vmatprep.subr.mxu0 0.0
  %863 = vmatpush1.msra.mxu0 0.0
  %864 = vmatprep.subr.mxu0 0.0
  %865 = vmatpush1.msra.mxu0 0.0
  %866 = vmatprep.subr.mxu0 0.0
  %867 = vmatpush1.msra.mxu0 0.0
  %868 = vmatprep.subr.mxu0 0.0
  %869 = vmatpush1.msra.mxu0 0.0
  %870 = vmatprep.subr.mxu0 0.0
  %871 = vmatpush1.msra.mxu0 0.0
  %872 = vmatprep.subr.mxu0 0.0
  %873 = vmatpush1.msra.mxu0 0.0
  %874 = vmatprep.subr.mxu0 0.0
  %875 = vmatpush1.msra.mxu0 0.0
  %876 = vmatprep.subr.mxu0 0.0
  %877 = vmatpush1.msra.mxu0 0.0
  %878 = vmatprep.subr.mxu0 0.0
  %879 = vmatpush1.msra.mxu0 0.0
  %880 = vmatprep.subr.mxu0 0.0
  %881 = vmatpush1.msra.mxu0 0.0
  %882 = vmatprep.subr.mxu0 0.0
  %883 = vmatpush1.msra.mxu0 0.0
  %884 = vmatprep.subr.mxu0 0.0
  %885 = vmatpush1.msra.mxu0 0.0
  %886 = vmatprep.subr.mxu0 0.0
  %887 = vmatpush1.msra.mxu0 0.0
  %888 = vmatprep.mubr.f32.mxu0 0.0
  %889 = vmatmul.mubr.f32.gmra.mrb[0].mxu0 %v822
  %v890 = vpop.f32.mrb[0].mxu0
  %v891 = vadd.f32 0.0, %v890
  %v892 = vpop.f32.mrb[0].mxu0
  %893 = vdwg.mxu0
  %v895 = vsel %vm820, %v818, 0
  %897 = vmatprep.subr.mxu0 0.0
  %898 = vmatpush1.msra.mxu0 %v819
  %899 = vmatprep.subr.mxu0 0.0
  %900 = vmatpush1.msra.mxu0 0.0
  %901 = vmatprep.subr.mxu0 0.0
  %902 = vmatpush1.msra.mxu0 0.0
  %903 = vmatprep.subr.mxu0 0.0
  %904 = vmatpush1.msra.mxu0 0.0
  %905 = vmatprep.subr.mxu0 0.0
  %906 = vmatpush1.msra.mxu0 0.0
  %907 = vmatprep.subr.mxu0 0.0
  %908 = vmatpush1.msra.mxu0 0.0
  %909 = vmatprep.subr.mxu0 0.0
  %910 = vmatpush1.msra.mxu0 0.0
  %911 = vmatprep.subr.mxu0 0.0
  %912 = vmatpush1.msra.mxu0 0.0
  %913 = vmatprep.subr.mxu0 0.0
  %914 = vmatpush1.msra.mxu0 0.0
  %915 = vmatprep.subr.mxu0 0.0
  %916 = vmatpush1.msra.mxu0 0.0
  %917 = vmatprep.subr.mxu0 0.0
  %918 = vmatpush1.msra.mxu0 0.0
  %919 = vmatprep.subr.mxu0 0.0
  %920 = vmatpush1.msra.mxu0 0.0
  %921 = vmatprep.subr.mxu0 0.0
  %922 = vmatpush1.msra.mxu0 0.0
  %923 = vmatprep.subr.mxu0 0.0
  %924 = vmatpush1.msra.mxu0 0.0
  %925 = vmatprep.subr.mxu0 0.0
  %926 = vmatpush1.msra.mxu0 0.0
  %927 = vmatprep.subr.mxu0 0.0
  %928 = vmatpush1.msra.mxu0 0.0
  %929 = vmatprep.subr.mxu0 0.0
  %930 = vmatpush1.msra.mxu0 0.0
  %931 = vmatprep.subr.mxu0 0.0
  %932 = vmatpush1.msra.mxu0 0.0
  %933 = vmatprep.subr.mxu0 0.0
  %934 = vmatpush1.msra.mxu0 0.0
  %935 = vmatprep.subr.mxu0 0.0
  %936 = vmatpush1.msra.mxu0 0.0
  %937 = vmatprep.subr.mxu0 0.0
  %938 = vmatpush1.msra.mxu0 0.0
  %939 = vmatprep.subr.mxu0 0.0
  %940 = vmatpush1.msra.mxu0 0.0
  %941 = vmatprep.subr.mxu0 0.0
  %942 = vmatpush1.msra.mxu0 0.0
  %943 = vmatprep.subr.mxu0 0.0
  %944 = vmatpush1.msra.mxu0 0.0
  %945 = vmatprep.subr.mxu0 0.0
  %946 = vmatpush1.msra.mxu0 0.0
  %947 = vmatprep.subr.mxu0 0.0
  %948 = vmatpush1.msra.mxu0 0.0
  %949 = vmatprep.subr.mxu0 0.0
  %950 = vmatpush1.msra.mxu0 0.0
  %951 = vmatprep.subr.mxu0 0.0
  %952 = vmatpush1.msra.mxu0 0.0
  %953 = vmatprep.subr.mxu0 0.0
  %954 = vmatpush1.msra.mxu0 0.0
  %955 = vmatprep.subr.mxu0 0.0
  %956 = vmatpush1.msra.mxu0 0.0
  %957 = vmatprep.subr.mxu0 0.0
  %958 = vmatpush1.msra.mxu0 0.0
  %959 = vmatprep.subr.mxu0 0.0
  %960 = vmatpush1.msra.mxu0 0.0
  %961 = vmatprep.mubr.f32.mxu0 0.0
  %962 = vmatmul.mubr.f32.gmra.mrb[0].mxu0 %v895
  %v963 = vpop.f32.mrb[0].mxu0
  %v964 = vadd.f32 0.0, %v963
  %v965 = vpop.f32.mrb[0].mxu0
  %966 = vdwg.mxu0
  %v967 = vld [vmem:[#allocation3 + $0x1] sm:$0xff]
  %v968 = vld [vmem:[#allocation3 + $0x9] sm:$0xff]
  %v969 = vlaneseq
  %v970 = vshrl.u32 %v969, 7
  %v971 = vsub.s32 0, %v970
  %v972 = vrot.slane %v891, %v971
  %v973 = vmul.f32 %v967, %v972
  %v974 = vmul.f32 %v968, %v972
  %v975 = vlaneseq
  %v976 = vshrl.u32 %v975, 7
  %v977 = vsub.s32 0, %v976
  %v978 = vrot.slane %v964, %v977
  %v979 = vadd.f32 %v973, %v978
  %v980 = vadd.f32 %v974, %v978
  %981 = vst [vmem:[#allocation3 + $0x1] sm:$0xff] %v979
  %982 = vst [vmem:[#allocation3 + $0x9] sm:$0xff] %v980
  %v983 = vld [vmem:[%s628 + $0x1] sm:$0xff]
  %v984 = vld [vmem:[%s628 + $0x9] sm:$0xff]
  %v985 = vmul.f32 %v983, %v972
  %v986 = vmul.f32 %v984, %v972
  %v987 = vadd.f32 %v985, %v978
  %v988 = vadd.f32 %v986, %v978
  %989 = vst [vmem:[%s628 + $0x1] sm:$0xff] %v987
  %990 = vst [vmem:[%s628 + $0x9] sm:$0xff] %v988
  %v991 = vld [vmem:[#allocation3] sm:$0xff]
  %v992 = vld [vmem:[#allocation3 + $0x8] sm:$0xff]
  %v993 = vld [vmem:[%s4] sm:$0xff]
  %v994 = vld [vmem:[%s4 + $0x8] sm:$0xff]
  %v995 = vld [vmem:[%s4 + $0x10] sm:$0xff]
  %v996 = vld [vmem:[%s4 + $0x18] sm:$0xff]
  %v997 = vld [vmem:[%s4 + $0x20] sm:$0xff]
  %v998 = vld [vmem:[%s4 + $0x28] sm:$0xff]
  %v999 = vld [vmem:[%s4 + $0x30] sm:$0xff]
  %v1000 = vld [vmem:[%s4 + $0x38] sm:$0xff]
  %v1001 = vld [vmem:[%s4 + $0x40] sm:$0xff]
  %v1002 = vld [vmem:[%s4 + $0x48] sm:$0xff]
  %v1003 = vld [vmem:[%s4 + $0x50] sm:$0xff]
  %v1004 = vld [vmem:[%s4 + $0x58] sm:$0xff]
  %v1005 = vld [vmem:[%s4 + $0x60] sm:$0xff]
  %v1006 = vld [vmem:[%s4 + $0x68] sm:$0xff]
  %v1007 = vld [vmem:[%s4 + $0x70] sm:$0xff]
  %v1008 = vld [vmem:[%s4 + $0x78] sm:$0xff]
  %v1009 = vld [vmem:[#allocation3 + $0x1] sm:$0xff]
  %v1010 = vld [vmem:[#allocation3 + $0x9] sm:$0xff]
  %s1011 = scalar_lea.vmem %s4, 128
  %v1012 = vld [vmem:[%s1011] sm:$0xff]
  %v1013 = vld [vmem:[%s1011 + $0x8] sm:$0xff]
  %v1014 = vld [vmem:[%s1011 + $0x10] sm:$0xff]
  %v1015 = vld [vmem:[%s1011 + $0x18] sm:$0xff]
  %v1016 = vld [vmem:[%s1011 + $0x20] sm:$0xff]
  %v1017 = vld [vmem:[%s1011 + $0x28] sm:$0xff]
  %v1018 = vld [vmem:[%s1011 + $0x30] sm:$0xff]
  %v1019 = vld [vmem:[%s1011 + $0x38] sm:$0xff]
  %v1020 = vld [vmem:[%s1011 + $0x40] sm:$0xff]
  %v1021 = vld [vmem:[%s1011 + $0x48] sm:$0xff]
  %v1022 = vld [vmem:[%s1011 + $0x50] sm:$0xff]
  %v1023 = vld [vmem:[%s1011 + $0x58] sm:$0xff]
  %v1024 = vld [vmem:[%s1011 + $0x60] sm:$0xff]
  %v1025 = vld [vmem:[%s1011 + $0x68] sm:$0xff]
  %v1026 = vld [vmem:[%s1011 + $0x70] sm:$0xff]
  %v1027 = vld [vmem:[%s1011 + $0x78] sm:$0xff]
  %1028 = vmatprep.subr.mxu0 0.0
  %1029 = vmatpush1.msra.mxu0 %v1012
  %1030 = vmatprep.subr.mxu0 0.0
  %1031 = vmatpush1.msra.mxu0 %v1013
  %1032 = vmatprep.subr.mxu0 0.0
  %1033 = vmatpush1.msra.mxu0 %v1014
  %1034 = vmatprep.subr.mxu0 0.0
  %1035 = vmatpush1.msra.mxu0 %v1015
  %1036 = vmatprep.subr.mxu0 0.0
  %1037 = vmatpush1.msra.mxu0 %v1016
  %1038 = vmatprep.subr.mxu0 0.0
  %1039 = vmatpush1.msra.mxu0 %v1017
  %1040 = vmatprep.subr.mxu0 0.0
  %1041 = vmatpush1.msra.mxu0 %v1018
  %1042 = vmatprep.subr.mxu0 0.0
  %1043 = vmatpush1.msra.mxu0 %v1019
  %1044 = vmatprep.subr.mxu0 0.0
  %1045 = vmatpush1.msra.mxu0 %v1020
  %1046 = vmatprep.subr.mxu0 0.0
  %1047 = vmatpush1.msra.mxu0 %v1021
  %1048 = vmatprep.subr.mxu0 0.0
  %1049 = vmatpush1.msra.mxu0 %v1022
  %1050 = vmatprep.subr.mxu0 0.0
  %1051 = vmatpush1.msra.mxu0 %v1023
  %1052 = vmatprep.subr.mxu0 0.0
  %1053 = vmatpush1.msra.mxu0 %v1024
  %1054 = vmatprep.subr.mxu0 0.0
  %1055 = vmatpush1.msra.mxu0 %v1025
  %1056 = vmatprep.subr.mxu0 0.0
  %1057 = vmatpush1.msra.mxu0 %v1026
  %1058 = vmatprep.subr.mxu0 0.0
  %1059 = vmatpush1.msra.mxu0 %v1027
  %1060 = vmatprep.subr.mxu0 0.0
  %1061 = vmatpush1.msra.mxu0 0.0
  %1062 = vmatprep.subr.mxu0 0.0
  %1063 = vmatpush1.msra.mxu0 0.0
  %1064 = vmatprep.subr.mxu0 0.0
  %1065 = vmatpush1.msra.mxu0 0.0
  %1066 = vmatprep.subr.mxu0 0.0
  %1067 = vmatpush1.msra.mxu0 0.0
  %1068 = vmatprep.subr.mxu0 0.0
  %1069 = vmatpush1.msra.mxu0 0.0
  %1070 = vmatprep.subr.mxu0 0.0
  %1071 = vmatpush1.msra.mxu0 0.0
  %1072 = vmatprep.subr.mxu0 0.0
  %1073 = vmatpush1.msra.mxu0 0.0
  %1074 = vmatprep.subr.mxu0 0.0
  %1075 = vmatpush1.msra.mxu0 0.0
  %1076 = vmatprep.subr.mxu0 0.0
  %1077 = vmatpush1.msra.mxu0 0.0
  %1078 = vmatprep.subr.mxu0 0.0
  %1079 = vmatpush1.msra.mxu0 0.0
  %1080 = vmatprep.subr.mxu0 0.0
  %1081 = vmatpush1.msra.mxu0 0.0
  %1082 = vmatprep.subr.mxu0 0.0
  %1083 = vmatpush1.msra.mxu0 0.0
  %1084 = vmatprep.subr.mxu0 0.0
  %1085 = vmatpush1.msra.mxu0 0.0
  %1086 = vmatprep.subr.mxu0 0.0
  %1087 = vmatpush1.msra.mxu0 0.0
  %1088 = vmatprep.subr.mxu0 0.0
  %1089 = vmatpush1.msra.mxu0 0.0
  %1090 = vmatprep.subr.mxu0 0.0
  %1091 = vmatpush1.msra.mxu0 0.0
  %1092 = vmatprep.mubr.f32.mxu0 0.0
  %1093 = vmatmul.mubr.f32.gmra.mrb[0].mxu0 %v1009
  %v1094 = vpop.f32.mrb[0].mxu0
  %v1095 = vadd.f32 0.0, %v1094
  %v1096 = vpop.f32.mrb[0].mxu0
  %1097 = vmatprep.mubr.f32.mxu0 0.0
  %1098 = vmatmul.mubr.f32.gmra.mrb[0].mxu0 %v1010
  %v1099 = vpop.f32.mrb[0].mxu0
  %v1100 = vadd.f32 0.0, %v1099
  %v1101 = vpop.f32.mrb[0].mxu0
  %1102 = vdwg.mxu0
  %1103 = vmatprep.subr.mxu0 0.0
  %1104 = vmatpush1.msra.mxu0 %v993
  %1105 = vmatprep.subr.mxu0 0.0
  %1106 = vmatpush1.msra.mxu0 %v994
  %1107 = vmatprep.subr.mxu0 0.0
  %1108 = vmatpush1.msra.mxu0 %v995
  %1109 = vmatprep.subr.mxu0 0.0
  %1110 = vmatpush1.msra.mxu0 %v996
  %1111 = vmatprep.subr.mxu0 0.0
  %1112 = vmatpush1.msra.mxu0 %v997
  %1113 = vmatprep.subr.mxu0 0.0
  %1114 = vmatpush1.msra.mxu0 %v998
  %1115 = vmatprep.subr.mxu0 0.0
  %1116 = vmatpush1.msra.mxu0 %v999
  %1117 = vmatprep.subr.mxu0 0.0
  %1118 = vmatpush1.msra.mxu0 %v1000
  %1119 = vmatprep.subr.mxu0 0.0
  %1120 = vmatpush1.msra.mxu0 %v1001
  %1121 = vmatprep.subr.mxu0 0.0
  %1122 = vmatpush1.msra.mxu0 %v1002
  %1123 = vmatprep.subr.mxu0 0.0
  %1124 = vmatpush1.msra.mxu0 %v1003
  %1125 = vmatprep.subr.mxu0 0.0
  %1126 = vmatpush1.msra.mxu0 %v1004
  %1127 = vmatprep.subr.mxu0 0.0
  %1128 = vmatpush1.msra.mxu0 %v1005
  %1129 = vmatprep.subr.mxu0 0.0
  %1130 = vmatpush1.msra.mxu0 %v1006
  %1131 = vmatprep.subr.mxu0 0.0
  %1132 = vmatpush1.msra.mxu0 %v1007
  %1133 = vmatprep.subr.mxu0 0.0
  %1134 = vmatpush1.msra.mxu0 %v1008
  %1135 = vmatprep.subr.mxu0 0.0
  %1136 = vmatpush1.msra.mxu0 0.0
  %1137 = vmatprep.subr.mxu0 0.0
  %1138 = vmatpush1.msra.mxu0 0.0
  %1139 = vmatprep.subr.mxu0 0.0
  %1140 = vmatpush1.msra.mxu0 0.0
  %1141 = vmatprep.subr.mxu0 0.0
  %1142 = vmatpush1.msra.mxu0 0.0
  %1143 = vmatprep.subr.mxu0 0.0
  %1144 = vmatpush1.msra.mxu0 0.0
  %1145 = vmatprep.subr.mxu0 0.0
  %1146 = vmatpush1.msra.mxu0 0.0
  %1147 = vmatprep.subr.mxu0 0.0
  %1148 = vmatpush1.msra.mxu0 0.0
  %1149 = vmatprep.subr.mxu0 0.0
  %1150 = vmatpush1.msra.mxu0 0.0
  %1151 = vmatprep.subr.mxu0 0.0
  %1152 = vmatpush1.msra.mxu0 0.0
  %1153 = vmatprep.subr.mxu0 0.0
  %1154 = vmatpush1.msra.mxu0 0.0
  %1155 = vmatprep.subr.mxu0 0.0
  %1156 = vmatpush1.msra.mxu0 0.0
  %1157 = vmatprep.subr.mxu0 0.0
  %1158 = vmatpush1.msra.mxu0 0.0
  %1159 = vmatprep.subr.mxu0 0.0
  %1160 = vmatpush1.msra.mxu0 0.0
  %1161 = vmatprep.subr.mxu0 0.0
  %1162 = vmatpush1.msra.mxu0 0.0
  %1163 = vmatprep.subr.mxu0 0.0
  %1164 = vmatpush1.msra.mxu0 0.0
  %1165 = vmatprep.subr.mxu0 0.0
  %1166 = vmatpush1.msra.mxu0 0.0
  %1167 = vmatprep.mubr.f32.mxu0 0.0
  %1168 = vmatmul.mubr.f32.gmra.mrb[0].mxu0 %v991
  %v1169 = vpop.f32.mrb[0].mxu0
  %v1170 = vadd.f32 %v1095, %v1169
  %v1171 = vpop.f32.mrb[0].mxu0
  %1172 = vmatprep.mubr.f32.mxu0 0.0
  %1173 = vmatmul.mubr.f32.gmra.mrb[0].mxu0 %v992
  %v1174 = vpop.f32.mrb[0].mxu0
  %v1175 = vadd.f32 %v1100, %v1174
  %v1176 = vpop.f32.mrb[0].mxu0
  %1177 = vdwg.mxu0
  %v1178 = vld [vmem:[#allocation3 + $0x2] sm:$0xff]
  %v1179 = vld [vmem:[#allocation3 + $0xa] sm:$0xff]
  %s1180 = scalar_lea.vmem %s4, 256
  %v1181 = vld [vmem:[%s1180] sm:$0xff]
  %v1182 = vld [vmem:[%s1180 + $0x8] sm:$0xff]
  %v1183 = vld [vmem:[%s1180 + $0x10] sm:$0xff]
  %v1184 = vld [vmem:[%s1180 + $0x18] sm:$0xff]
  %v1185 = vld [vmem:[%s1180 + $0x20] sm:$0xff]
  %v1186 = vld [vmem:[%s1180 + $0x28] sm:$0xff]
  %v1187 = vld [vmem:[%s1180 + $0x30] sm:$0xff]
  %v1188 = vld [vmem:[%s1180 + $0x38] sm:$0xff]
  %v1189 = vld [vmem:[%s1180 + $0x40] sm:$0xff]
  %v1190 = vld [vmem:[%s1180 + $0x48] sm:$0xff]
  %v1191 = vld [vmem:[%s1180 + $0x50] sm:$0xff]
  %v1192 = vld [vmem:[%s1180 + $0x58] sm:$0xff]
  %v1193 = vld [vmem:[%s1180 + $0x60] sm:$0xff]
  %v1194 = vld [vmem:[%s1180 + $0x68] sm:$0xff]
  %v1195 = vld [vmem:[%s1180 + $0x70] sm:$0xff]
  %v1196 = vld [vmem:[%s1180 + $0x78] sm:$0xff]
  %1197 = vmatprep.subr.mxu0 0.0
  %1198 = vmatpush1.msra.mxu0 %v1181
  %1199 = vmatprep.subr.mxu0 0.0
  %1200 = vmatpush1.msra.mxu0 %v1182
  %1201 = vmatprep.subr.mxu0 0.0
  %1202 = vmatpush1.msra.mxu0 %v1183
  %1203 = vmatprep.subr.mxu0 0.0
  %1204 = vmatpush1.msra.mxu0 %v1184
  %1205 = vmatprep.subr.mxu0 0.0
  %1206 = vmatpush1.msra.mxu0 %v1185
  %1207 = vmatprep.subr.mxu0 0.0
  %1208 = vmatpush1.msra.mxu0 %v1186
  %1209 = vmatprep.subr.mxu0 0.0
  %1210 = vmatpush1.msra.mxu0 %v1187
  %1211 = vmatprep.subr.mxu0 0.0
  %1212 = vmatpush1.msra.mxu0 %v1188
  %1213 = vmatprep.subr.mxu0 0.0
  %1214 = vmatpush1.msra.mxu0 %v1189
  %1215 = vmatprep.subr.mxu0 0.0
  %1216 = vmatpush1.msra.mxu0 %v1190
  %1217 = vmatprep.subr.mxu0 0.0
  %1218 = vmatpush1.msra.mxu0 %v1191
  %1219 = vmatprep.subr.mxu0 0.0
  %1220 = vmatpush1.msra.mxu0 %v1192
  %1221 = vmatprep.subr.mxu0 0.0
  %1222 = vmatpush1.msra.mxu0 %v1193
  %1223 = vmatprep.subr.mxu0 0.0
  %1224 = vmatpush1.msra.mxu0 %v1194
  %1225 = vmatprep.subr.mxu0 0.0
  %1226 = vmatpush1.msra.mxu0 %v1195
  %1227 = vmatprep.subr.mxu0 0.0
  %1228 = vmatpush1.msra.mxu0 %v1196
  %1229 = vmatprep.subr.mxu0 0.0
  %1230 = vmatpush1.msra.mxu0 0.0
  %1231 = vmatprep.subr.mxu0 0.0
  %1232 = vmatpush1.msra.mxu0 0.0
  %1233 = vmatprep.subr.mxu0 0.0
  %1234 = vmatpush1.msra.mxu0 0.0
  %1235 = vmatprep.subr.mxu0 0.0
  %1236 = vmatpush1.msra.mxu0 0.0
  %1237 = vmatprep.subr.mxu0 0.0
  %1238 = vmatpush1.msra.mxu0 0.0
  %1239 = vmatprep.subr.mxu0 0.0
  %1240 = vmatpush1.msra.mxu0 0.0
  %1241 = vmatprep.subr.mxu0 0.0
  %1242 = vmatpush1.msra.mxu0 0.0
  %1243 = vmatprep.subr.mxu0 0.0
  %1244 = vmatpush1.msra.mxu0 0.0
  %1245 = vmatprep.subr.mxu0 0.0
  %1246 = vmatpush1.msra.mxu0 0.0
  %1247 = vmatprep.subr.mxu0 0.0
  %1248 = vmatpush1.msra.mxu0 0.0
  %1249 = vmatprep.subr.mxu0 0.0
  %1250 = vmatpush1.msra.mxu0 0.0
  %1251 = vmatprep.subr.mxu0 0.0
  %1252 = vmatpush1.msra.mxu0 0.0
  %1253 = vmatprep.subr.mxu0 0.0
  %1254 = vmatpush1.msra.mxu0 0.0
  %1255 = vmatprep.subr.mxu0 0.0
  %1256 = vmatpush1.msra.mxu0 0.0
  %1257 = vmatprep.subr.mxu0 0.0
  %1258 = vmatpush1.msra.mxu0 0.0
  %1259 = vmatprep.subr.mxu0 0.0
  %1260 = vmatpush1.msra.mxu0 0.0
  %1261 = vmatprep.mubr.f32.mxu0 0.0
  %1262 = vmatmul.mubr.f32.gmra.mrb[0].mxu0 %v1178
  %v1263 = vpop.f32.mrb[0].mxu0
  %v1264 = vadd.f32 0.0, %v1263
  %v1265 = vpop.f32.mrb[0].mxu0
  %1266 = vmatprep.mubr.f32.mxu0 0.0
  %1267 = vmatmul.mubr.f32.gmra.mrb[0].mxu0 %v1179
  %v1268 = vpop.f32.mrb[0].mxu0
  %v1269 = vadd.f32 0.0, %v1268
  %v1270 = vpop.f32.mrb[0].mxu0
  %1271 = vdwg.mxu0
  %v1272 = vadd.f32 %v1170, %v1264
  %v1273 = vadd.f32 %v1175, %v1269
  %v1274 = vsel %vm42, %v1272, 0.0
  %v1275 = vsel %vm42, %v1273, 0.0
  %v1276 = vadd.f32 %v1274, %v1275
  %v1277 = vrot.slane %v1276, 4
  %v1278 = vadd.f32 %v1276, %v1277
  %v1279 = vrot.slane %v1278, 2
  %v1280 = vadd.f32 %v1278, %v1279
  %v1281 = vrot.slane %v1280, 1
  %v1282 = vadd.f32 %v1280, %v1281
  %v1283 = vadd.f32 %v1282, 0.0
  %v1284 = vmul.f32 %v1272, %v1272
  %v1285 = vmul.f32 %v1273, %v1273
  %v1286 = vsel %vm42, %v1284, 0.0
  %v1287 = vsel %vm42, %v1285, 0.0
  %v1288 = vadd.f32 %v1286, %v1287
  %v1289 = vrot.slane %v1288, 4
  %v1290 = vadd.f32 %v1288, %v1289
  %v1291 = vrot.slane %v1290, 2
  %v1292 = vadd.f32 %v1290, %v1291
  %v1293 = vrot.slane %v1292, 1
  %v1294 = vadd.f32 %v1292, %v1293
  %v1295 = vadd.f32 %v1294, 0.0
  %v1296 = vld [vmem:[%s628] sm:$0xff]
  %v1297 = vld [vmem:[%s628 + $0x8] sm:$0xff]
  %v1298 = vld [vmem:[%s628 + $0x1] sm:$0xff]
  %v1299 = vld [vmem:[%s628 + $0x9] sm:$0xff]
  %1300 = vmatprep.subr.mxu0 0.0
  %1301 = vmatpush1.msra.mxu0 %v1012
  %1302 = vmatprep.subr.mxu0 0.0
  %1303 = vmatpush1.msra.mxu0 %v1013
  %1304 = vmatprep.subr.mxu0 0.0
  %1305 = vmatpush1.msra.mxu0 %v1014
  %1306 = vmatprep.subr.mxu0 0.0
  %1307 = vmatpush1.msra.mxu0 %v1015
  %1308 = vmatprep.subr.mxu0 0.0
  %1309 = vmatpush1.msra.mxu0 %v1016
  %1310 = vmatprep.subr.mxu0 0.0
  %1311 = vmatpush1.msra.mxu0 %v1017
  %1312 = vmatprep.subr.mxu0 0.0
  %1313 = vmatpush1.msra.mxu0 %v1018
  %1314 = vmatprep.subr.mxu0 0.0
  %1315 = vmatpush1.msra.mxu0 %v1019
  %1316 = vmatprep.subr.mxu0 0.0
  %1317 = vmatpush1.msra.mxu0 %v1020
  %1318 = vmatprep.subr.mxu0 0.0
  %1319 = vmatpush1.msra.mxu0 %v1021
  %1320 = vmatprep.subr.mxu0 0.0
  %1321 = vmatpush1.msra.mxu0 %v1022
  %1322 = vmatprep.subr.mxu0 0.0
  %1323 = vmatpush1.msra.mxu0 %v1023
  %1324 = vmatprep.subr.mxu0 0.0
  %1325 = vmatpush1.msra.mxu0 %v1024
  %1326 = vmatprep.subr.mxu0 0.0
  %1327 = vmatpush1.msra.mxu0 %v1025
  %1328 = vmatprep.subr.mxu0 0.0
  %1329 = vmatpush1.msra.mxu0 %v1026
  %1330 = vmatprep.subr.mxu0 0.0
  %1331 = vmatpush1.msra.mxu0 %v1027
  %1332 = vmatprep.subr.mxu0 0.0
  %1333 = vmatpush1.msra.mxu0 0.0
  %1334 = vmatprep.subr.mxu0 0.0
  %1335 = vmatpush1.msra.mxu0 0.0
  %1336 = vmatprep.subr.mxu0 0.0
  %1337 = vmatpush1.msra.mxu0 0.0
  %1338 = vmatprep.subr.mxu0 0.0
  %1339 = vmatpush1.msra.mxu0 0.0
  %1340 = vmatprep.subr.mxu0 0.0
  %1341 = vmatpush1.msra.mxu0 0.0
  %1342 = vmatprep.subr.mxu0 0.0
  %1343 = vmatpush1.msra.mxu0 0.0
  %1344 = vmatprep.subr.mxu0 0.0
  %1345 = vmatpush1.msra.mxu0 0.0
  %1346 = vmatprep.subr.mxu0 0.0
  %1347 = vmatpush1.msra.mxu0 0.0
  %1348 = vmatprep.subr.mxu0 0.0
  %1349 = vmatpush1.msra.mxu0 0.0
  %1350 = vmatprep.subr.mxu0 0.0
  %1351 = vmatpush1.msra.mxu0 0.0
  %1352 = vmatprep.subr.mxu0 0.0
  %1353 = vmatpush1.msra.mxu0 0.0
  %1354 = vmatprep.subr.mxu0 0.0
  %1355 = vmatpush1.msra.mxu0 0.0
  %1356 = vmatprep.subr.mxu0 0.0
  %1357 = vmatpush1.msra.mxu0 0.0
  %1358 = vmatprep.subr.mxu0 0.0
  %1359 = vmatpush1.msra.mxu0 0.0
  %1360 = vmatprep.subr.mxu0 0.0
  %1361 = vmatpush1.msra.mxu0 0.0
  %1362 = vmatprep.subr.mxu0 0.0
  %1363 = vmatpush1.msra.mxu0 0.0
  %1364 = vmatprep.mubr.f32.mxu0 0.0
  %1365 = vmatmul.mubr.f32.gmra.mrb[0].mxu0 %v1298
  %v1366 = vpop.f32.mrb[0].mxu0
  %v1367 = vadd.f32 0.0, %v1366
  %v1368 = vpop.f32.mrb[0].mxu0
  %1369 = vmatprep.mubr.f32.mxu0 0.0
  %1370 = vmatmul.mubr.f32.gmra.mrb[0].mxu0 %v1299
  %v1371 = vpop.f32.mrb[0].mxu0
  %v1372 = vadd.f32 0.0, %v1371
  %v1373 = vpop.f32.mrb[0].mxu0
  %1374 = vdwg.mxu0
  %1375 = vmatprep.subr.mxu0 0.0
  %1376 = vmatpush1.msra.mxu0 %v993
  %1377 = vmatprep.subr.mxu0 0.0
  %1378 = vmatpush1.msra.mxu0 %v994
  %1379 = vmatprep.subr.mxu0 0.0
  %1380 = vmatpush1.msra.mxu0 %v995
  %1381 = vmatprep.subr.mxu0 0.0
  %1382 = vmatpush1.msra.mxu0 %v996
  %1383 = vmatprep.subr.mxu0 0.0
  %1384 = vmatpush1.msra.mxu0 %v997
  %1385 = vmatprep.subr.mxu0 0.0
  %1386 = vmatpush1.msra.mxu0 %v998
  %1387 = vmatprep.subr.mxu0 0.0
  %1388 = vmatpush1.msra.mxu0 %v999
  %1389 = vmatprep.subr.mxu0 0.0
  %1390 = vmatpush1.msra.mxu0 %v1000
  %1391 = vmatprep.subr.mxu0 0.0
  %1392 = vmatpush1.msra.mxu0 %v1001
  %1393 = vmatprep.subr.mxu0 0.0
  %1394 = vmatpush1.msra.mxu0 %v1002
  %1395 = vmatprep.subr.mxu0 0.0
  %1396 = vmatpush1.msra.mxu0 %v1003
  %1397 = vmatprep.subr.mxu0 0.0
  %1398 = vmatpush1.msra.mxu0 %v1004
  %1399 = vmatprep.subr.mxu0 0.0
  %1400 = vmatpush1.msra.mxu0 %v1005
  %1401 = vmatprep.subr.mxu0 0.0
  %1402 = vmatpush1.msra.mxu0 %v1006
  %1403 = vmatprep.subr.mxu0 0.0
  %1404 = vmatpush1.msra.mxu0 %v1007
  %1405 = vmatprep.subr.mxu0 0.0
  %1406 = vmatpush1.msra.mxu0 %v1008
  %1407 = vmatprep.subr.mxu0 0.0
  %1408 = vmatpush1.msra.mxu0 0.0
  %1409 = vmatprep.subr.mxu0 0.0
  %1410 = vmatpush1.msra.mxu0 0.0
  %1411 = vmatprep.subr.mxu0 0.0
  %1412 = vmatpush1.msra.mxu0 0.0
  %1413 = vmatprep.subr.mxu0 0.0
  %1414 = vmatpush1.msra.mxu0 0.0
  %1415 = vmatprep.subr.mxu0 0.0
  %1416 = vmatpush1.msra.mxu0 0.0
  %1417 = vmatprep.subr.mxu0 0.0
  %1418 = vmatpush1.msra.mxu0 0.0
  %1419 = vmatprep.subr.mxu0 0.0
  %1420 = vmatpush1.msra.mxu0 0.0
  %1421 = vmatprep.subr.mxu0 0.0
  %1422 = vmatpush1.msra.mxu0 0.0
  %1423 = vmatprep.subr.mxu0 0.0
  %1424 = vmatpush1.msra.mxu0 0.0
  %1425 = vmatprep.subr.mxu0 0.0
  %1426 = vmatpush1.msra.mxu0 0.0
  %1427 = vmatprep.subr.mxu0 0.0
  %1428 = vmatpush1.msra.mxu0 0.0
  %1429 = vmatprep.subr.mxu0 0.0
  %1430 = vmatpush1.msra.mxu0 0.0
  %1431 = vmatprep.subr.mxu0 0.0
  %1432 = vmatpush1.msra.mxu0 0.0
  %1433 = vmatprep.subr.mxu0 0.0
  %1434 = vmatpush1.msra.mxu0 0.0
  %1435 = vmatprep.subr.mxu0 0.0
  %1436 = vmatpush1.msra.mxu0 0.0
  %1437 = vmatprep.subr.mxu0 0.0
  %1438 = vmatpush1.msra.mxu0 0.0
  %1439 = vmatprep.mubr.f32.mxu0 0.0
  %1440 = vmatmul.mubr.f32.gmra.mrb[0].mxu0 %v1296
  %v1441 = vpop.f32.mrb[0].mxu0
  %v1442 = vadd.f32 %v1367, %v1441
  %v1443 = vpop.f32.mrb[0].mxu0
  %1444 = vmatprep.mubr.f32.mxu0 0.0
  %1445 = vmatmul.mubr.f32.gmra.mrb[0].mxu0 %v1297
  %v1446 = vpop.f32.mrb[0].mxu0
  %v1447 = vadd.f32 %v1372, %v1446
  %v1448 = vpop.f32.mrb[0].mxu0
  %1449 = vdwg.mxu0
  %v1450 = vld [vmem:[%s628 + $0x2] sm:$0xff]
  %v1451 = vld [vmem:[%s628 + $0xa] sm:$0xff]
  %1452 = vmatprep.subr.mxu0 0.0
  %1453 = vmatpush1.msra.mxu0 %v1181
  %1454 = vmatprep.subr.mxu0 0.0
  %1455 = vmatpush1.msra.mxu0 %v1182
  %1456 = vmatprep.subr.mxu0 0.0
  %1457 = vmatpush1.msra.mxu0 %v1183
  %1458 = vmatprep.subr.mxu0 0.0
  %1459 = vmatpush1.msra.mxu0 %v1184
  %1460 = vmatprep.subr.mxu0 0.0
  %1461 = vmatpush1.msra.mxu0 %v1185
  %1462 = vmatprep.subr.mxu0 0.0
  %1463 = vmatpush1.msra.mxu0 %v1186
  %1464 = vmatprep.subr.mxu0 0.0
  %1465 = vmatpush1.msra.mxu0 %v1187
  %1466 = vmatprep.subr.mxu0 0.0
  %1467 = vmatpush1.msra.mxu0 %v1188
  %1468 = vmatprep.subr.mxu0 0.0
  %1469 = vmatpush1.msra.mxu0 %v1189
  %1470 = vmatprep.subr.mxu0 0.0
  %1471 = vmatpush1.msra.mxu0 %v1190
  %1472 = vmatprep.subr.mxu0 0.0
  %1473 = vmatpush1.msra.mxu0 %v1191
  %1474 = vmatprep.subr.mxu0 0.0
  %1475 = vmatpush1.msra.mxu0 %v1192
  %1476 = vmatprep.subr.mxu0 0.0
  %1477 = vmatpush1.msra.mxu0 %v1193
  %1478 = vmatprep.subr.mxu0 0.0
  %1479 = vmatpush1.msra.mxu0 %v1194
  %1480 = vmatprep.subr.mxu0 0.0
  %1481 = vmatpush1.msra.mxu0 %v1195
  %1482 = vmatprep.subr.mxu0 0.0
  %1483 = vmatpush1.msra.mxu0 %v1196
  %1484 = vmatprep.subr.mxu0 0.0
  %1485 = vmatpush1.msra.mxu0 0.0
  %1486 = vmatprep.subr.mxu0 0.0
  %1487 = vmatpush1.msra.mxu0 0.0
  %1488 = vmatprep.subr.mxu0 0.0
  %1489 = vmatpush1.msra.mxu0 0.0
  %1490 = vmatprep.subr.mxu0 0.0
  %1491 = vmatpush1.msra.mxu0 0.0
  %1492 = vmatprep.subr.mxu0 0.0
  %1493 = vmatpush1.msra.mxu0 0.0
  %1494 = vmatprep.subr.mxu0 0.0
  %1495 = vmatpush1.msra.mxu0 0.0
  %1496 = vmatprep.subr.mxu0 0.0
  %1497 = vmatpush1.msra.mxu0 0.0
  %1498 = vmatprep.subr.mxu0 0.0
  %1499 = vmatpush1.msra.mxu0 0.0
  %1500 = vmatprep.subr.mxu0 0.0
  %1501 = vmatpush1.msra.mxu0 0.0
  %1502 = vmatprep.subr.mxu0 0.0
  %1503 = vmatpush1.msra.mxu0 0.0
  %1504 = vmatprep.subr.mxu0 0.0
  %1505 = vmatpush1.msra.mxu0 0.0
  %1506 = vmatprep.subr.mxu0 0.0
  %1507 = vmatpush1.msra.mxu0 0.0
  %1508 = vmatprep.subr.mxu0 0.0
  %1509 = vmatpush1.msra.mxu0 0.0
  %1510 = vmatprep.subr.mxu0 0.0
  %1511 = vmatpush1.msra.mxu0 0.0
  %1512 = vmatprep.subr.mxu0 0.0
  %1513 = vmatpush1.msra.mxu0 0.0
  %1514 = vmatprep.subr.mxu0 0.0
  %1515 = vmatpush1.msra.mxu0 0.0
  %1516 = vmatprep.mubr.f32.mxu0 0.0
  %1517 = vmatmul.mubr.f32.gmra.mrb[0].mxu0 %v1450
  %v1518 = vpop.f32.mrb[0].mxu0
  %v1519 = vadd.f32 0.0, %v1518
  %v1520 = vpop.f32.mrb[0].mxu0
  %1521 = vmatprep.mubr.f32.mxu0 0.0
  %1522 = vmatmul.mubr.f32.gmra.mrb[0].mxu0 %v1451
  %v1523 = vpop.f32.mrb[0].mxu0
  %v1524 = vadd.f32 0.0, %v1523
  %v1525 = vpop.f32.mrb[0].mxu0
  %1526 = vdwg.mxu0
  %v1527 = vadd.f32 %v1442, %v1519
  %v1528 = vadd.f32 %v1447, %v1524
  %v1529 = vsel %vm42, %v1527, 0.0
  %v1530 = vsel %vm42, %v1528, 0.0
  %v1531 = vadd.f32 %v1529, %v1530
  %v1532 = vrot.slane %v1531, 4
  %v1533 = vadd.f32 %v1531, %v1532
  %v1534 = vrot.slane %v1533, 2
  %v1535 = vadd.f32 %v1533, %v1534
  %v1536 = vrot.slane %v1535, 1
  %v1537 = vadd.f32 %v1535, %v1536
  %v1538 = vadd.f32 %v1283, %v1537
  %v1539 = vmul.f32 %v1527, %v1527
  %v1540 = vmul.f32 %v1528, %v1528
  %v1541 = vsel %vm42, %v1539, 0.0
  %v1542 = vsel %vm42, %v1540, 0.0
  %v1543 = vadd.f32 %v1541, %v1542
  %v1544 = vrot.slane %v1543, 4
  %v1545 = vadd.f32 %v1543, %v1544
  %v1546 = vrot.slane %v1545, 2
  %v1547 = vadd.f32 %v1545, %v1546
  %v1548 = vrot.slane %v1547, 1
  %v1549 = vadd.f32 %v1547, %v1548
  %v1550 = vadd.f32 %v1295, %v1549
  %v1551 = vld [vmem:[%s9] sm:$0xff]
  %v1552 = vld [vmem:[%s9 + $0x8] sm:$0xff]
  %v1553 = vld [vmem:[%s9 + $0x10] sm:$0xff]
  %v1554 = vld [vmem:[%s9 + $0x18] sm:$0xff]
  %v1555 = vld [vmem:[%s9 + $0x20] sm:$0xff]
  %v1556 = vld [vmem:[%s9 + $0x28] sm:$0xff]
  %v1557 = vld [vmem:[%s9 + $0x30] sm:$0xff]
  %v1558 = vld [vmem:[%s9 + $0x38] sm:$0xff]
  %v1560 = vsel %vm42, %v1538, 0
  %1562 = vmatprep.subr.mxu0 0.0
  %1563 = vmatpush1.msra.mxu0 %v1551
  %1564 = vmatprep.subr.mxu0 0.0
  %1565 = vmatpush1.msra.mxu0 %v1552
  %1566 = vmatprep.subr.mxu0 0.0
  %1567 = vmatpush1.msra.mxu0 %v1553
  %1568 = vmatprep.subr.mxu0 0.0
  %1569 = vmatpush1.msra.mxu0 %v1554
  %1570 = vmatprep.subr.mxu0 0.0
  %1571 = vmatpush1.msra.mxu0 %v1555
  %1572 = vmatprep.subr.mxu0 0.0
  %1573 = vmatpush1.msra.mxu0 %v1556
  %1574 = vmatprep.subr.mxu0 0.0
  %1575 = vmatpush1.msra.mxu0 %v1557
  %1576 = vmatprep.subr.mxu0 0.0
  %1577 = vmatpush1.msra.mxu0 %v1558
  %1578 = vmatprep.subr.mxu0 0.0
  %1579 = vmatpush1.msra.mxu0 0.0
  %1580 = vmatprep.subr.mxu0 0.0
  %1581 = vmatpush1.msra.mxu0 0.0
  %1582 = vmatprep.subr.mxu0 0.0
  %1583 = vmatpush1.msra.mxu0 0.0
  %1584 = vmatprep.subr.mxu0 0.0
  %1585 = vmatpush1.msra.mxu0 0.0
  %1586 = vmatprep.subr.mxu0 0.0
  %1587 = vmatpush1.msra.mxu0 0.0
  %1588 = vmatprep.subr.mxu0 0.0
  %1589 = vmatpush1.msra.mxu0 0.0
  %1590 = vmatprep.subr.mxu0 0.0
  %1591 = vmatpush1.msra.mxu0 0.0
  %1592 = vmatprep.subr.mxu0 0.0
  %1593 = vmatpush1.msra.mxu0 0.0
  %1594 = vmatprep.subr.mxu0 0.0
  %1595 = vmatpush1.msra.mxu0 0.0
  %1596 = vmatprep.subr.mxu0 0.0
  %1597 = vmatpush1.msra.mxu0 0.0
  %1598 = vmatprep.subr.mxu0 0.0
  %1599 = vmatpush1.msra.mxu0 0.0
  %1600 = vmatprep.subr.mxu0 0.0
  %1601 = vmatpush1.msra.mxu0 0.0
  %1602 = vmatprep.subr.mxu0 0.0
  %1603 = vmatpush1.msra.mxu0 0.0
  %1604 = vmatprep.subr.mxu0 0.0
  %1605 = vmatpush1.msra.mxu0 0.0
  %1606 = vmatprep.subr.mxu0 0.0
  %1607 = vmatpush1.msra.mxu0 0.0
  %1608 = vmatprep.subr.mxu0 0.0
  %1609 = vmatpush1.msra.mxu0 0.0
  %1610 = vmatprep.subr.mxu0 0.0
  %1611 = vmatpush1.msra.mxu0 0.0
  %1612 = vmatprep.subr.mxu0 0.0
  %1613 = vmatpush1.msra.mxu0 0.0
  %1614 = vmatprep.subr.mxu0 0.0
  %1615 = vmatpush1.msra.mxu0 0.0
  %1616 = vmatprep.subr.mxu0 0.0
  %1617 = vmatpush1.msra.mxu0 0.0
  %1618 = vmatprep.subr.mxu0 0.0
  %1619 = vmatpush1.msra.mxu0 0.0
  %1620 = vmatprep.subr.mxu0 0.0
  %1621 = vmatpush1.msra.mxu0 0.0
  %1622 = vmatprep.subr.mxu0 0.0
  %1623 = vmatpush1.msra.mxu0 0.0
  %1624 = vmatprep.subr.mxu0 0.0
  %1625 = vmatpush1.msra.mxu0 0.0
  %1626 = vmatprep.mubr.f32.mxu0 0.0
  %1627 = vmatmul.mubr.f32.gmra.mrb[0].mxu0 %v1560
  %v1628 = vpop.f32.mrb[0].mxu0
  %v1629 = vadd.f32 0.0, %v1628
  %v1630 = vpop.f32.mrb[0].mxu0
  %1631 = vdwg.mxu0
  %v1633 = vsel %vm42, %v1550, 0
  %1635 = vmatprep.subr.mxu0 0.0
  %1636 = vmatpush1.msra.mxu0 %v1551
  %1637 = vmatprep.subr.mxu0 0.0
  %1638 = vmatpush1.msra.mxu0 %v1552
  %1639 = vmatprep.subr.mxu0 0.0
  %1640 = vmatpush1.msra.mxu0 %v1553
  %1641 = vmatprep.subr.mxu0 0.0
  %1642 = vmatpush1.msra.mxu0 %v1554
  %1643 = vmatprep.subr.mxu0 0.0
  %1644 = vmatpush1.msra.mxu0 %v1555
  %1645 = vmatprep.subr.mxu0 0.0
  %1646 = vmatpush1.msra.mxu0 %v1556
  %1647 = vmatprep.subr.mxu0 0.0
  %1648 = vmatpush1.msra.mxu0 %v1557
  %1649 = vmatprep.subr.mxu0 0.0
  %1650 = vmatpush1.msra.mxu0 %v1558
  %1651 = vmatprep.subr.mxu0 0.0
  %1652 = vmatpush1.msra.mxu0 0.0
  %1653 = vmatprep.subr.mxu0 0.0
  %1654 = vmatpush1.msra.mxu0 0.0
  %1655 = vmatprep.subr.mxu0 0.0
  %1656 = vmatpush1.msra.mxu0 0.0
  %1657 = vmatprep.subr.mxu0 0.0
  %1658 = vmatpush1.msra.mxu0 0.0
  %1659 = vmatprep.subr.mxu0 0.0
  %1660 = vmatpush1.msra.mxu0 0.0
  %1661 = vmatprep.subr.mxu0 0.0
  %1662 = vmatpush1.msra.mxu0 0.0
  %1663 = vmatprep.subr.mxu0 0.0
  %1664 = vmatpush1.msra.mxu0 0.0
  %1665 = vmatprep.subr.mxu0 0.0
  %1666 = vmatpush1.msra.mxu0 0.0
  %1667 = vmatprep.subr.mxu0 0.0
  %1668 = vmatpush1.msra.mxu0 0.0
  %1669 = vmatprep.subr.mxu0 0.0
  %1670 = vmatpush1.msra.mxu0 0.0
  %1671 = vmatprep.subr.mxu0 0.0
  %1672 = vmatpush1.msra.mxu0 0.0
  %1673 = vmatprep.subr.mxu0 0.0
  %1674 = vmatpush1.msra.mxu0 0.0
  %1675 = vmatprep.subr.mxu0 0.0
  %1676 = vmatpush1.msra.mxu0 0.0
  %1677 = vmatprep.subr.mxu0 0.0
  %1678 = vmatpush1.msra.mxu0 0.0
  %1679 = vmatprep.subr.mxu0 0.0
  %1680 = vmatpush1.msra.mxu0 0.0
  %1681 = vmatprep.subr.mxu0 0.0
  %1682 = vmatpush1.msra.mxu0 0.0
  %1683 = vmatprep.subr.mxu0 0.0
  %1684 = vmatpush1.msra.mxu0 0.0
  %1685 = vmatprep.subr.mxu0 0.0
  %1686 = vmatpush1.msra.mxu0 0.0
  %1687 = vmatprep.subr.mxu0 0.0
  %1688 = vmatpush1.msra.mxu0 0.0
  %1689 = vmatprep.subr.mxu0 0.0
  %1690 = vmatpush1.msra.mxu0 0.0
  %1691 = vmatprep.subr.mxu0 0.0
  %1692 = vmatpush1.msra.mxu0 0.0
  %1693 = vmatprep.subr.mxu0 0.0
  %1694 = vmatpush1.msra.mxu0 0.0
  %1695 = vmatprep.subr.mxu0 0.0
  %1696 = vmatpush1.msra.mxu0 0.0
  %1697 = vmatprep.subr.mxu0 0.0
  %1698 = vmatpush1.msra.mxu0 0.0
  %1699 = vmatprep.mubr.f32.mxu0 0.0
  %1700 = vmatmul.mubr.f32.gmra.mrb[0].mxu0 %v1633
  %v1701 = vpop.f32.mrb[0].mxu0
  %v1702 = vadd.f32 0.0, %v1701
  %v1703 = vpop.f32.mrb[0].mxu0
  %1704 = vdwg.mxu0
  %v1705 = vmul.f32 %v1629, %v807
  %v1706 = vmul.f32 %v1702, %v807
  %v1707 = vmul.f32 %v1705, %v1705
  %v1708 = vsub.f32 %v1706, %v1707
  %v1709 = vld [vmem:[%s5] sm:$0x1]
  %v1710 = vadd.f32 %v1708, 1e-05
  %v1711 = vrsqrt.pop %v1710
  %v1712 = vmul.f32 %v1709, %v1711
  %v1713 = vld [vmem:[%s6] sm:$0x1]
  %v1714 = vmul.f32 %v1705, %v1712
  %v1715 = vsub.f32 %v1713, %v1714
  %v1716 = vld [vmem:[%s10] sm:$0xf]
  %vm1717 = vcmask 31744
  %v1719 = vsel %vm1717, %v1712, 0
  %vm1721 = vcmask 1043456
  %v1723 = vsel %vm1721, %v1716, 0
  %1725 = vmatprep.subr.mxu0 0.0
  %1726 = vmatpush1.msra.mxu0 %v1723
  %1727 = vmatprep.subr.mxu0 0.0
  %1728 = vmatpush1.msra.mxu0 0.0
  %1729 = vmatprep.subr.mxu0 0.0
  %1730 = vmatpush1.msra.mxu0 0.0
  %1731 = vmatprep.subr.mxu0 0.0
  %1732 = vmatpush1.msra.mxu0 0.0
  %1733 = vmatprep.subr.mxu0 0.0
  %1734 = vmatpush1.msra.mxu0 0.0
  %1735 = vmatprep.subr.mxu0 0.0
  %1736 = vmatpush1.msra.mxu0 0.0
  %1737 = vmatprep.subr.mxu0 0.0
  %1738 = vmatpush1.msra.mxu0 0.0
  %1739 = vmatprep.subr.mxu0 0.0
  %1740 = vmatpush1.msra.mxu0 0.0
  %1741 = vmatprep.subr.mxu0 0.0
  %1742 = vmatpush1.msra.mxu0 0.0
  %1743 = vmatprep.subr.mxu0 0.0
  %1744 = vmatpush1.msra.mxu0 0.0
  %1745 = vmatprep.subr.mxu0 0.0
  %1746 = vmatpush1.msra.mxu0 0.0
  %1747 = vmatprep.subr.mxu0 0.0
  %1748 = vmatpush1.msra.mxu0 0.0
  %1749 = vmatprep.subr.mxu0 0.0
  %1750 = vmatpush1.msra.mxu0 0.0
  %1751 = vmatprep.subr.mxu0 0.0
  %1752 = vmatpush1.msra.mxu0 0.0
  %1753 = vmatprep.subr.mxu0 0.0
  %1754 = vmatpush1.msra.mxu0 0.0
  %1755 = vmatprep.subr.mxu0 0.0
  %1756 = vmatpush1.msra.mxu0 0.0
  %1757 = vmatprep.subr.mxu0 0.0
  %1758 = vmatpush1.msra.mxu0 0.0
  %1759 = vmatprep.subr.mxu0 0.0
  %1760 = vmatpush1.msra.mxu0 0.0
  %1761 = vmatprep.subr.mxu0 0.0
  %1762 = vmatpush1.msra.mxu0 0.0
  %1763 = vmatprep.subr.mxu0 0.0
  %1764 = vmatpush1.msra.mxu0 0.0
  %1765 = vmatprep.subr.mxu0 0.0
  %1766 = vmatpush1.msra.mxu0 0.0
  %1767 = vmatprep.subr.mxu0 0.0
  %1768 = vmatpush1.msra.mxu0 0.0
  %1769 = vmatprep.subr.mxu0 0.0
  %1770 = vmatpush1.msra.mxu0 0.0
  %1771 = vmatprep.subr.mxu0 0.0
  %1772 = vmatpush1.msra.mxu0 0.0
  %1773 = vmatprep.subr.mxu0 0.0
  %1774 = vmatpush1.msra.mxu0 0.0
  %1775 = vmatprep.subr.mxu0 0.0
  %1776 = vmatpush1.msra.mxu0 0.0
  %1777 = vmatprep.subr.mxu0 0.0
  %1778 = vmatpush1.msra.mxu0 0.0
  %1779 = vmatprep.subr.mxu0 0.0
  %1780 = vmatpush1.msra.mxu0 0.0
  %1781 = vmatprep.subr.mxu0 0.0
  %1782 = vmatpush1.msra.mxu0 0.0
  %1783 = vmatprep.subr.mxu0 0.0
  %1784 = vmatpush1.msra.mxu0 0.0
  %1785 = vmatprep.subr.mxu0 0.0
  %1786 = vmatpush1.msra.mxu0 0.0
  %1787 = vmatprep.subr.mxu0 0.0
  %1788 = vmatpush1.msra.mxu0 0.0
  %1789 = vmatprep.mubr.f32.mxu0 0.0
  %1790 = vmatmul.mubr.f32.gmra.mrb[0].mxu0 %v1719
  %v1791 = vpop.f32.mrb[0].mxu0
  %v1792 = vadd.f32 0.0, %v1791
  %v1793 = vpop.f32.mrb[0].mxu0
  %1794 = vdwg.mxu0
  %v1796 = vsel %vm1717, %v1715, 0
  %1798 = vmatprep.subr.mxu0 0.0
  %1799 = vmatpush1.msra.mxu0 %v1723
  %1800 = vmatprep.subr.mxu0 0.0
  %1801 = vmatpush1.msra.mxu0 0.0
  %1802 = vmatprep.subr.mxu0 0.0
  %1803 = vmatpush1.msra.mxu0 0.0
  %1804 = vmatprep.subr.mxu0 0.0
  %1805 = vmatpush1.msra.mxu0 0.0
  %1806 = vmatprep.subr.mxu0 0.0
  %1807 = vmatpush1.msra.mxu0 0.0
  %1808 = vmatprep.subr.mxu0 0.0
  %1809 = vmatpush1.msra.mxu0 0.0
  %1810 = vmatprep.subr.mxu0 0.0
  %1811 = vmatpush1.msra.mxu0 0.0
  %1812 = vmatprep.subr.mxu0 0.0
  %1813 = vmatpush1.msra.mxu0 0.0
  %1814 = vmatprep.subr.mxu0 0.0
  %1815 = vmatpush1.msra.mxu0 0.0
  %1816 = vmatprep.subr.mxu0 0.0
  %1817 = vmatpush1.msra.mxu0 0.0
  %1818 = vmatprep.subr.mxu0 0.0
  %1819 = vmatpush1.msra.mxu0 0.0
  %1820 = vmatprep.subr.mxu0 0.0
  %1821 = vmatpush1.msra.mxu0 0.0
  %1822 = vmatprep.subr.mxu0 0.0
  %1823 = vmatpush1.msra.mxu0 0.0
  %1824 = vmatprep.subr.mxu0 0.0
  %1825 = vmatpush1.msra.mxu0 0.0
  %1826 = vmatprep.subr.mxu0 0.0
  %1827 = vmatpush1.msra.mxu0 0.0
  %1828 = vmatprep.subr.mxu0 0.0
  %1829 = vmatpush1.msra.mxu0 0.0
  %1830 = vmatprep.subr.mxu0 0.0
  %1831 = vmatpush1.msra.mxu0 0.0
  %1832 = vmatprep.subr.mxu0 0.0
  %1833 = vmatpush1.msra.mxu0 0.0
  %1834 = vmatprep.subr.mxu0 0.0
  %1835 = vmatpush1.msra.mxu0 0.0
  %1836 = vmatprep.subr.mxu0 0.0
  %1837 = vmatpush1.msra.mxu0 0.0
  %1838 = vmatprep.subr.mxu0 0.0
  %1839 = vmatpush1.msra.mxu0 0.0
  %1840 = vmatprep.subr.mxu0 0.0
  %1841 = vmatpush1.msra.mxu0 0.0
  %1842 = vmatprep.subr.mxu0 0.0
  %1843 = vmatpush1.msra.mxu0 0.0
  %1844 = vmatprep.subr.mxu0 0.0
  %1845 = vmatpush1.msra.mxu0 0.0
  %1846 = vmatprep.subr.mxu0 0.0
  %1847 = vmatpush1.msra.mxu0 0.0
  %1848 = vmatprep.subr.mxu0 0.0
  %1849 = vmatpush1.msra.mxu0 0.0
  %1850 = vmatprep.subr.mxu0 0.0
  %1851 = vmatpush1.msra.mxu0 0.0
  %1852 = vmatprep.subr.mxu0 0.0
  %1853 = vmatpush1.msra.mxu0 0.0
  %1854 = vmatprep.subr.mxu0 0.0
  %1855 = vmatpush1.msra.mxu0 0.0
  %1856 = vmatprep.subr.mxu0 0.0
  %1857 = vmatpush1.msra.mxu0 0.0
  %1858 = vmatprep.subr.mxu0 0.0
  %1859 = vmatpush1.msra.mxu0 0.0
  %1860 = vmatprep.subr.mxu0 0.0
  %1861 = vmatpush1.msra.mxu0 0.0
  %1862 = vmatprep.mubr.f32.mxu0 0.0
  %1863 = vmatmul.mubr.f32.gmra.mrb[0].mxu0 %v1796
  %v1864 = vpop.f32.mrb[0].mxu0
  %v1865 = vadd.f32 0.0, %v1864
  %v1866 = vpop.f32.mrb[0].mxu0
  %1867 = vdwg.mxu0
  %v1868 = vlaneseq
  %v1869 = vshrl.u32 %v1868, 7
  %v1870 = vsub.s32 0, %v1869
  %v1871 = vrot.slane %v1792, %v1870
  %v1872 = vmul.f32 %v1272, %v1871
  %v1873 = vmul.f32 %v1273, %v1871
  %v1874 = vlaneseq
  %v1875 = vshrl.u32 %v1874, 7
  %v1876 = vsub.s32 0, %v1875
  %v1877 = vrot.slane %v1865, %v1876
  %v1878 = vadd.f32 %v1872, %v1877
  %v1879 = vadd.f32 %v1873, %v1877
  %v1880 = vld [vmem:[%s0] sm:$0xff]
  %v1881 = vld [vmem:[%s0 + $0x8] sm:$0xff]
  %v1882 = vadd.f32 %v1878, %v1880
  %v1883 = vadd.f32 %v1879, %v1881
  %vm1884 = vcmp.gt.f32.partialorder %v1882, 0.0
  %vm1885 = vcmp.gt.f32.partialorder %v1883, 0.0
  %v1886 = vmul.f32 %v1882, 1.442695
  %v1887 = vpow.pop %v1886
  %v1888 = vmul.f32 %v1883, 1.442695
  %v1889 = vpow.pop %v1888
  %v1890 = vsub.f32 %v1887, 1.0
  %v1891 = vsub.f32 %v1889, 1.0
  %v1892 = vsel %vm1884, %v1882, %v1890
  %v1893 = vsel %vm1885, %v1883, %v1891
  %1894 = vst.msk [vmem:[%s11] sm:$0xff] %vm42, %v1892
  %1895 = vst.msk [vmem:[%s11 + $0x8] sm:$0xff] %vm42, %v1893
  %v1896 = vmul.f32 %v1527, %v1871
  %v1897 = vmul.f32 %v1528, %v1871
  %v1898 = vadd.f32 %v1896, %v1877
  %v1899 = vadd.f32 %v1897, %v1877
  %v1900 = vld [vmem:[%s48] sm:$0xff]
  %v1901 = vld [vmem:[%s48 + $0x8] sm:$0xff]
  %v1902 = vadd.f32 %v1898, %v1900
  %v1903 = vadd.f32 %v1899, %v1901
  %vm1904 = vcmp.gt.f32.partialorder %v1902, 0.0
  %vm1905 = vcmp.gt.f32.partialorder %v1903, 0.0
  %v1906 = vmul.f32 %v1902, 1.442695
  %v1907 = vpow.pop %v1906
  %v1908 = vmul.f32 %v1903, 1.442695
  %v1909 = vpow.pop %v1908
  %v1910 = vsub.f32 %v1907, 1.0
  %v1911 = vsub.f32 %v1909, 1.0
  %v1912 = vsel %vm1904, %v1902, %v1910
  %v1913 = vsel %vm1905, %v1903, %v1911
  %s1914 = scalar_lea.vmem %s11, 16
  %1915 = vst.msk [vmem:[%s1914] sm:$0xff] %vm42, %v1912
  %1916 = vst.msk [vmem:[%s1914 + $0x8] sm:$0xff] %vm42, %v1913
  // Predicated region
  $region46: #{resblock_forward.1} parent=0 // pred_check
    _
  $region47: #{resblock_forward.1} parent=0 // pred_check_branch
    %1918 = sbr.rel (0) target = $region49
  $region48: #{resblock_forward.1} parent=0 // pred_region
    _
  $region49: #{resblock_forward.1} parent=0 // pred_fallthru
    _
  // Predicated region
  $region50: #{resblock_forward.1} parent=0 // pred_check
    _
  $region51: #{resblock_forward.1} parent=0 // pred_check_branch
    %1920 = sbr.rel (0) target = $region53
  $region52: #{resblock_forward.1} parent=0 // pred_region
    _
  $region53: #{resblock_forward.1} parent=0 // pred_fallthru
    _

</llo_original>
